<compile_context>
chip_gen: v7x
topology: tpu7x:2x2x1
jax: 0.10.0
libtpu: 0.0.40
codegen_flags: <defaults>
</compile_context>

<pallas_src>
import functools

import jax
import jax.numpy as jnp
from jax import lax
from jax.experimental import pallas as pl
from jax.experimental.pallas import tpu as pltpu


# ----------------------------------------------------------------------------
# Kernel helpers
# ----------------------------------------------------------------------------
def _zero_halo(ref):
    """Zero the 1-wide spatial halo of an (n, Hp, Wp, c) padded staging buffer."""
    n, h2, w2, c = ref.shape
    zr = jnp.zeros((n, 1, w2, c), ref.dtype)
    ref[:, 0:1, :, :] = zr
    ref[:, h2 - 1:h2, :, :] = zr
    zc = jnp.zeros((n, h2, 1, c), ref.dtype)
    ref[:, :, 0:1, :] = zc
    ref[:, :, w2 - 1:w2, :] = zc


# ----------------------------------------------------------------------------
# Fused ResBasicBlock kernel (n_tile batch elements per grid step)
# ----------------------------------------------------------------------------
def _resbasic_kernel(*refs, stride, Ho, Wo, has_proj):
    nin = 7 if has_proj else 5
    in_refs, o_ref, scratch = refs[:nin], refs[nin], refs[nin + 1:]
    if has_proj:
        x_ref, wa_ref, ba_ref, wb_ref, bb_ref, wp_ref, bp_ref = in_refs
    else:
        x_ref, wa_ref, ba_ref, wb_ref, bb_ref = in_refs
        wp_ref = bp_ref = None
    if stride == 1:
        xpad_ref, ia_ref, apad_ref, ib_ref = scratch
    else:
        ia_ref, apad_ref, ib_ref = scratch

    s = stride
    n_tile = x_ref.shape[0]
    cin = x_ref.shape[-1] // (s * s)
    cout = wa_ref.shape[-1]
    M = n_tile * Ho * Wo
    taps = [(dy, dx) for dy in range(3) for dx in range(3)]

    # ---- conv a: 3x3 / stride-s conv (+ folded BN + ReLU) as ONE MXU matmul.
    if s == 1:
        # Pad the raw NHWC block in-kernel (no wrapper-side HBM pad copy).
        _zero_halo(xpad_ref)
        xpad_ref[:, 1:Ho + 1, 1:Wo + 1, :] = x_ref[...].astype(xpad_ref.dtype)

        def tap_a(dy, dx):
            return xpad_ref[:, dy:dy + Ho, dx:dx + Wo, :]

        res_src = x_ref[...]                     # identity residual source
    else:
        # Wrapper folded the s*s spatial phases of the padded input into the
        # channel axis, so every tap is a static (unstrided) slice in VMEM.
        def tap_a(dy, dx):
            p = (dy % s) * s + (dx % s)
            r0, c0 = dy // s, dx // s
            return x_ref[:, r0:r0 + Ho, c0:c0 + Wo, p * cin:(p + 1) * cin]

        rp = 1 % s
        r1 = (1 - rp) // s
        pr = rp * s + rp
        res_src = x_ref[:, r1:r1 + Ho, r1:r1 + Wo, pr * cin:(pr + 1) * cin]

    for t, (dy, dx) in enumerate(taps):          # stage im2col (M, 9*cin)
        ia_ref[:, t * cin:(t + 1) * cin] = (
            tap_a(dy, dx).reshape(M, cin).astype(ia_ref.dtype))
    acc_a = jnp.dot(ia_ref[...], wa_ref[...], preferred_element_type=jnp.float32)
    a = jnp.maximum(acc_a + ba_ref[...], 0.0)    # f32 epilogue: BN-a bias + ReLU

    # ---- conv b: 3x3 / stride-1 conv (+ folded BN), again ONE MXU matmul.
    _zero_halo(apad_ref)
    apad_ref[:, 1:Ho + 1, 1:Wo + 1, :] = (
        a.reshape(n_tile, Ho, Wo, cout).astype(apad_ref.dtype))
    for t, (dy, dx) in enumerate(taps):          # stage im2col (M, 9*cout)
        ib_ref[:, t * cout:(t + 1) * cout] = (
            apad_ref[:, dy:dy + Ho, dx:dx + Wo, :]
            .reshape(M, cout).astype(ib_ref.dtype))
    fb = jnp.dot(ib_ref[...], wb_ref[...],
                 preferred_element_type=jnp.float32) + bb_ref[...]   # final_bn

    # ---- residual path: 1x1 strided conv + BN, or identity.
    res_in = res_src.reshape(M, cin)
    if has_proj:
        res = jnp.dot(res_in.astype(jnp.bfloat16), wp_ref[...],
                      preferred_element_type=jnp.float32) + bp_ref[...]
    else:
        res = res_in.astype(jnp.float32)          # stride == 1 and cin == cout

    out = jnp.maximum(fb + res, 0.0)
    # TODO(synk): a lane-dense (..., Wo*cout) output layout would avoid masked
    # 32-lane stores here, but requires a minor-dim-merging relayout in-kernel.
    o_ref[...] = out.reshape(n_tile, Ho * Wo, cout).astype(o_ref.dtype)


# ----------------------------------------------------------------------------
# Wrappers
# ----------------------------------------------------------------------------
def _pick_n_tile(N, P, target_m=512):
    """Images per grid step: M = n_tile*P near target, >=2 grid steps when possible."""
    divs = [d for d in range(1, N + 1) if N % d == 0]
    cands = [d for d in divs if d * P <= target_m] or [1]
    n_tile = max(cands)
    if N // n_tile == 1:                          # keep both v7x TensorCores busy
        two_step = [d for d in cands if N // d >= 2]
        if two_step:
            n_tile = max(two_step)
    return n_tile


def resbasic_block_forward_nhwc(x_nhwc, params):
    """Fused ResBasicBlock forward, NHWC in / NHWC out (preferred for chaining)."""
    s = params["stride"]
    wa, ba, wb, bb = params["wa"], params["ba"], params["wb"], params["bb"]
    wp, bp = params.get("wp"), params.get("bp")
    has_proj = wp is not None

    N, H, W, cin = x_nhwc.shape
    cout = wa.shape[-1]
    if not has_proj:
        assert s == 1 and cin == cout, (
            "identity residual path requires stride == 1 and w_in == w_out")
    Ho, Wo = (H - 1) // s + 1, (W - 1) // s + 1
    P = Ho * Wo
    n_tile = _pick_n_tile(N, P)
    M = n_tile * P

    x = x_nhwc.astype(jnp.bfloat16)               # bf16 MXU inputs, f32 accumulate

    if s == 1:
        op_x = x                                  # padded in-kernel, no XLA pad copy
        x_spec = pl.BlockSpec((n_tile, H, W, cin), lambda n: (n, 0, 0, 0))
    else:
        # One O(activation) repack: pad by 1, round the padded extent up to a
        # multiple of s, and fold the s*s spatial phases into the channel axis
        # so every in-kernel tap read is a static slice.
        xp = jnp.pad(x, ((0, 0), (1, 1), (1, 1), (0, 0)))
        Hp, Wp = H + 2, W + 2
        Hps, Wps = -(-Hp // s), -(-Wp // s)
        xp = jnp.pad(xp, ((0, 0), (0, Hps * s - Hp), (0, Wps * s - Wp), (0, 0)))
        op_x = xp.reshape(N, Hps, s, Wps, s, cin).transpose(0, 1, 3, 2, 4, 5)
        op_x = op_x.reshape(N, Hps, Wps, s * s * cin)
        x_spec = pl.BlockSpec((n_tile, Hps, Wps, s * s * cin),
                              lambda n: (n, 0, 0, 0))

    in_specs = [
        x_spec,
        pl.BlockSpec((9 * cin, cout), lambda n: (0, 0)),
        pl.BlockSpec((1, cout), lambda n: (0, 0)),
        pl.BlockSpec((9 * cout, cout), lambda n: (0, 0)),
        pl.BlockSpec((1, cout), lambda n: (0, 0)),
    ]
    operands = [op_x, wa, ba, wb, bb]
    if has_proj:
        in_specs += [pl.BlockSpec((cin, cout), lambda n: (0, 0)),
                     pl.BlockSpec((1, cout), lambda n: (0, 0))]
        operands += [wp, bp]

    scratch = []
    if s == 1:
        scratch.append(pltpu.VMEM((n_tile, Ho + 2, Wo + 2, cin), jnp.float32))
    scratch += [
        pltpu.VMEM((M, 9 * cin), jnp.bfloat16),                     # conv-a im2col
        pltpu.VMEM((n_tile, Ho + 2, Wo + 2, cout), jnp.float32),    # conv-a output, padded
        pltpu.VMEM((M, 9 * cout), jnp.bfloat16),                    # conv-b im2col
    ]

    out = pl.pallas_call(
        functools.partial(_resbasic_kernel, stride=s, Ho=Ho, Wo=Wo,
                          has_proj=has_proj),
        out_shape=jax.ShapeDtypeStruct((N, P, cout), jnp.float32),
        grid=(N // n_tile,),
        in_specs=in_specs,
        out_specs=pl.BlockSpec((n_tile, P, cout), lambda n: (n, 0, 0)),
        scratch_shapes=scratch,
        compiler_params=pltpu.CompilerParams(
            dimension_semantics=("parallel",),
            # 32 MiB scoped VMEM is safe on every generation (v7x has 64 MiB physical).
            vmem_limit_bytes=32 * 1024 * 1024),
    )(*operands)
    # TODO(synk): for large H*W a row-tiled grid with a halo exchange (manual DMA)
    # is needed to stay inside VMEM; whole-image tiles are fine at these sizes.
    return out.reshape(N, Ho, Wo, cout)


def resbasic_block_forward(x_nchw, params):
    """NCHW (PyTorch layout) wrapper.  For stacks of blocks prefer the NHWC
    entry point above to avoid per-block layout transposes through HBM."""
    y = resbasic_block_forward_nhwc(jnp.transpose(x_nchw, (0, 2, 3, 1)), params)
    return jnp.transpose(y, (0, 3, 1, 2))


# ----------------------------------------------------------------------------
# Parameter init (deterministic, synthetic; BN folded to scale/bias)
# ----------------------------------------------------------------------------
def _bn_fold(key, c, eps=1e-5):
    k1, k2, k3, k4 = jax.random.split(key, 4)
    gamma = 1.0 + 0.1 * jax.random.normal(k1, (c,), jnp.float32)
    beta = 0.1 * jax.random.normal(k2, (c,), jnp.float32)
    mean = 0.1 * jax.random.normal(k3, (c,), jnp.float32)
    var = 1.0 + 0.1 * jax.random.normal(k4, (c,), jnp.float32) ** 2
    scale = gamma / jnp.sqrt(var + eps)
    bias = beta - mean * scale
    return scale, bias
    # TODO(synk): training-mode BN (batch-stat computation + running-stat update)
    # is not reproduced; BN is folded as inference-time affine.


def init_block_params(key, w_in, w_out, stride):
    ks = jax.random.split(key, 6)
    wa = 0.1 * jax.random.normal(ks[0], (3, 3, w_in, w_out), jnp.float32)   # HWIO
    sa, ba = _bn_fold(ks[1], w_out)
    wb = 0.1 * jax.random.normal(ks[2], (3, 3, w_out, w_out), jnp.float32)
    sb, bb = _bn_fold(ks[3], w_out)
    p = {
        "stride": stride,
        # raw weights + BN affines for the pure-JAX reference
        "raw": {"wa": wa, "sa": sa, "ba": ba, "wb": wb, "sb": sb, "bb": bb},
        # BN scale folded into conv weights; bf16 for the MXU, biases stay f32.
        "wa": (wa * sa).reshape(9 * w_in, w_out).astype(jnp.bfloat16),
        "ba": ba.reshape(1, w_out),
        "wb": (wb * sb).reshape(9 * w_out, w_out).astype(jnp.bfloat16),
        "bb": bb.reshape(1, w_out),
    }
    if (w_in != w_out) or (stride != 1):
        wp = 0.1 * jax.random.normal(ks[4], (w_in, w_out), jnp.float32)
        sp, bp = _bn_fold(ks[5], w_out)
        p["raw"].update({"wp": wp, "sp": sp, "bp": bp})
        p["wp"] = (wp * sp).astype(jnp.bfloat16)
        p["bp"] = bp.reshape(1, w_out)
    return p


# ----------------------------------------------------------------------------
# Pure-JAX reference (validation; mirrors the kernel's bf16-in / f32-acc policy)
# ----------------------------------------------------------------------------
def resbasic_ref(x_nchw, params):
    s = params["stride"]
    r = params["raw"]
    q = lambda v: v.astype(jnp.bfloat16).astype(jnp.float32)
    hp = lax.Precision.HIGHEST
    x = jnp.transpose(x_nchw, (0, 2, 3, 1))
    a = lax.conv_general_dilated(q(x), q(r["wa"] * r["sa"]), (s, s), ((1, 1), (1, 1)),
                                 dimension_numbers=("NHWC", "HWIO", "NHWC"),
                                 precision=hp)
    a = jnp.maximum(a + r["ba"], 0.0)
    b = lax.conv_general_dilated(q(a), q(r["wb"] * r["sb"]), (1, 1), ((1, 1), (1, 1)),
                                 dimension_numbers=("NHWC", "HWIO", "NHWC"),
                                 precision=hp)
    b = b + r["bb"]
    if "wp" in r:
        res = jnp.einsum("nhwc,cd->nhwd", q(x)[:, ::s, ::s, :],
                         q(r["wp"] * r["sp"]), precision=hp) + r["bp"]
    else:
        res = q(x)
    out = jnp.maximum(b + res, 0.0)
    return jnp.transpose(out, (0, 3, 1, 2))


# ----------------------------------------------------------------------------
if __name__ == "__main__":
    key = jax.random.PRNGKey(0)
    kx, kp1, kp2 = jax.random.split(key, 3)

    N, H, W = 4, 16, 16
    w_in, w_out, stride = 16, 32, 2
    x = jax.random.normal(kx, (N, w_in, H, W), jnp.float32)          # NCHW like PyTorch

    # Block 1: ResBasicBlock(16, 32, stride=2) -> projection residual branch.
    p1 = init_block_params(kp1, w_in, w_out, stride)
    out1 = jax.block_until_ready(resbasic_block_forward(x, p1))
    ref1 = jax.block_until_ready(resbasic_ref(x, p1))
    assert out1.shape == (N, w_out, H // stride, W // stride), out1.shape
    if not jnp.allclose(out1, ref1, atol=1e-2, rtol=1e-2):
        raise AssertionError(
            f"proj block mismatch, max abs err={float(jnp.max(jnp.abs(out1 - ref1)))}")

    # Block 2: ResBasicBlock(32, 32, stride=1) -> identity residual path.
    p2 = init_block_params(kp2, w_out, w_out, 1)
    out2 = jax.block_until_ready(resbasic_block_forward(out1, p2))
    ref2 = jax.block_until_ready(resbasic_ref(out1, p2))
    assert out2.shape == (N, w_out, H // stride, W // stride), out2.shape
    if not jnp.allclose(out2, ref2, atol=1e-2, rtol=1e-2):
        raise AssertionError(
            f"identity block mismatch, max abs err={float(jnp.max(jnp.abs(out2 - ref2)))}")

    print("KERNEL_OK")
</pallas_src>

<mosaic_0001>
module attributes {stable_mosaic.version = 11 : i64} {
  func.func @_resbasic_kernel(%arg0: i32, %arg1: memref<2x9x9x64xbf16, #tpu.memory_space<vmem>>, %arg2: memref<144x32xbf16, #tpu.memory_space<vmem>>, %arg3: memref<1x32xf32, #tpu.memory_space<vmem>>, %arg4: memref<288x32xbf16, #tpu.memory_space<vmem>>, %arg5: memref<1x32xf32, #tpu.memory_space<vmem>>, %arg6: memref<16x32xbf16, #tpu.memory_space<vmem>>, %arg7: memref<1x32xf32, #tpu.memory_space<vmem>>, %arg8: memref<2x64x32xf32, #tpu.memory_space<vmem>>, %arg9: memref<128x144xbf16, #tpu.memory_space<vmem>>, %arg10: memref<2x10x10x32xf32, #tpu.memory_space<vmem>>, %arg11: memref<128x288xbf16, #tpu.memory_space<vmem>>) attributes {dimension_semantics = [#tpu.dimension_semantics<parallel>], iteration_bounds = array<i64: 2>, scalar_prefetch = 0 : i64, scratch_operands = 3 : i64, tpu.core_type = #tpu.core_type<tc>, window_params = [{transform_indices = @transform_0, window_bounds = array<i64: 2, 9, 9, 64>}, {pipeline_mode = #tpu.pipeline_mode<synchronous>, transform_indices = @transform_1, window_bounds = array<i64: 144, 32>}, {pipeline_mode = #tpu.pipeline_mode<synchronous>, transform_indices = @transform_2, window_bounds = array<i64: 1, 32>}, {pipeline_mode = #tpu.pipeline_mode<synchronous>, transform_indices = @transform_3, window_bounds = array<i64: 288, 32>}, {pipeline_mode = #tpu.pipeline_mode<synchronous>, transform_indices = @transform_4, window_bounds = array<i64: 1, 32>}, {pipeline_mode = #tpu.pipeline_mode<synchronous>, transform_indices = @transform_5, window_bounds = array<i64: 16, 32>}, {pipeline_mode = #tpu.pipeline_mode<synchronous>, transform_indices = @transform_6, window_bounds = array<i64: 1, 32>}, {transform_indices = @transform_7, window_bounds = array<i64: 2, 64, 32>}]} {
    %c0 = arith.constant 0 : index
    %c0_0 = arith.constant 0 : index
    %c0_1 = arith.constant 0 : index
    %c48 = arith.constant 48 : index
    %0 = vector.load %arg1[%c0, %c0_0, %c0_1, %c48] : memref<2x9x9x64xbf16, #tpu.memory_space<vmem>>, vector<2x8x8x16xbf16>
    %c0_2 = arith.constant 0 : index
    %c0_3 = arith.constant 0 : index
    %c0_4 = arith.constant 0 : index
    %c0_5 = arith.constant 0 : index
    %1 = vector.load %arg1[%c0_2, %c0_3, %c0_4, %c0_5] : memref<2x9x9x64xbf16, #tpu.memory_space<vmem>>, vector<2x8x8x16xbf16>
    %2 = vector.shape_cast %1 : vector<2x8x8x16xbf16> to vector<128x16xbf16>
    %c0_6 = arith.constant 0 : index
    %c0_7 = arith.constant 0 : index
    %3 = vector.load %arg9[%c0_6, %c0_7] : memref<128x144xbf16, #tpu.memory_space<vmem>>, vector<128x16xbf16>
    tpu.vector_store %arg9[%c0_6, %c0_7], %2 {strides = array<i32>} : memref<128x144xbf16, #tpu.memory_space<vmem>>, vector<128x16xbf16>,
    %c0_8 = arith.constant 0 : index
    %c0_9 = arith.constant 0 : index
    %c0_10 = arith.constant 0 : index
    %c16 = arith.constant 16 : index
    %4 = vector.load %arg1[%c0_8, %c0_9, %c0_10, %c16] : memref<2x9x9x64xbf16, #tpu.memory_space<vmem>>, vector<2x8x8x16xbf16>
    %5 = vector.shape_cast %4 : vector<2x8x8x16xbf16> to vector<128x16xbf16>
    %c0_11 = arith.constant 0 : index
    %c16_12 = arith.constant 16 : index
    %6 = vector.load %arg9[%c0_11, %c16_12] : memref<128x144xbf16, #tpu.memory_space<vmem>>, vector<128x16xbf16>
    tpu.vector_store %arg9[%c0_11, %c16_12], %5 {strides = array<i32>} : memref<128x144xbf16, #tpu.memory_space<vmem>>, vector<128x16xbf16>,
    %c0_13 = arith.constant 0 : index
    %c0_14 = arith.constant 0 : index
    %c1 = arith.constant 1 : index
    %c0_15 = arith.constant 0 : index
    %7 = vector.load %arg1[%c0_13, %c0_14, %c1, %c0_15] : memref<2x9x9x64xbf16, #tpu.memory_space<vmem>>, vector<2x8x8x16xbf16>
    %8 = vector.shape_cast %7 : vector<2x8x8x16xbf16> to vector<128x16xbf16>
    %c0_16 = arith.constant 0 : index
    %c32 = arith.constant 32 : index
    %9 = vector.load %arg9[%c0_16, %c32] : memref<128x144xbf16, #tpu.memory_space<vmem>>, vector<128x16xbf16>
    tpu.vector_store %arg9[%c0_16, %c32], %8 {strides = array<i32>} : memref<128x144xbf16, #tpu.memory_space<vmem>>, vector<128x16xbf16>,
    %c0_17 = arith.constant 0 : index
    %c0_18 = arith.constant 0 : index
    %c0_19 = arith.constant 0 : index
    %c32_20 = arith.constant 32 : index
    %10 = vector.load %arg1[%c0_17, %c0_18, %c0_19, %c32_20] : memref<2x9x9x64xbf16, #tpu.memory_space<vmem>>, vector<2x8x8x16xbf16>
    %11 = vector.shape_cast %10 : vector<2x8x8x16xbf16> to vector<128x16xbf16>
    %c0_21 = arith.constant 0 : index
    %c48_22 = arith.constant 48 : index
    %12 = vector.load %arg9[%c0_21, %c48_22] : memref<128x144xbf16, #tpu.memory_space<vmem>>, vector<128x16xbf16>
    tpu.vector_store %arg9[%c0_21, %c48_22], %11 {strides = array<i32>} : memref<128x144xbf16, #tpu.memory_space<vmem>>, vector<128x16xbf16>,
    %c0_23 = arith.constant 0 : index
    %c0_24 = arith.constant 0 : index
    %c0_25 = arith.constant 0 : index
    %c48_26 = arith.constant 48 : index
    %13 = vector.load %arg1[%c0_23, %c0_24, %c0_25, %c48_26] : memref<2x9x9x64xbf16, #tpu.memory_space<vmem>>, vector<2x8x8x16xbf16>
    %14 = vector.shape_cast %13 : vector<2x8x8x16xbf16> to vector<128x16xbf16>
    %c0_27 = arith.constant 0 : index
    %c64 = arith.constant 64 : index
    %15 = vector.load %arg9[%c0_27, %c64] : memref<128x144xbf16, #tpu.memory_space<vmem>>, vector<128x16xbf16>
    tpu.vector_store %arg9[%c0_27, %c64], %14 {strides = array<i32>} : memref<128x144xbf16, #tpu.memory_space<vmem>>, vector<128x16xbf16>,
    %c0_28 = arith.constant 0 : index
    %c0_29 = arith.constant 0 : index
    %c1_30 = arith.constant 1 : index
    %c32_31 = arith.constant 32 : index
    %16 = vector.load %arg1[%c0_28, %c0_29, %c1_30, %c32_31] : memref<2x9x9x64xbf16, #tpu.memory_space<vmem>>, vector<2x8x8x16xbf16>
    %17 = vector.shape_cast %16 : vector<2x8x8x16xbf16> to vector<128x16xbf16>
    %c0_32 = arith.constant 0 : index
    %c80 = arith.constant 80 : index
    %18 = vector.load %arg9[%c0_32, %c80] : memref<128x144xbf16, #tpu.memory_space<vmem>>, vector<128x16xbf16>
    tpu.vector_store %arg9[%c0_32, %c80], %17 {strides = array<i32>} : memref<128x144xbf16, #tpu.memory_space<vmem>>, vector<128x16xbf16>,
    %c0_33 = arith.constant 0 : index
    %c1_34 = arith.constant 1 : index
    %c0_35 = arith.constant 0 : index
    %c0_36 = arith.constant 0 : index
    %19 = vector.load %arg1[%c0_33, %c1_34, %c0_35, %c0_36] : memref<2x9x9x64xbf16, #tpu.memory_space<vmem>>, vector<2x8x8x16xbf16>
    %20 = vector.shape_cast %19 : vector<2x8x8x16xbf16> to vector<128x16xbf16>
    %c0_37 = arith.constant 0 : index
    %c96 = arith.constant 96 : index
    %21 = vector.load %arg9[%c0_37, %c96] : memref<128x144xbf16, #tpu.memory_space<vmem>>, vector<128x16xbf16>
    tpu.vector_store %arg9[%c0_37, %c96], %20 {strides = array<i32>} : memref<128x144xbf16, #tpu.memory_space<vmem>>, vector<128x16xbf16>,
    %c0_38 = arith.constant 0 : index
    %c1_39 = arith.constant 1 : index
    %c0_40 = arith.constant 0 : index
    %c16_41 = arith.constant 16 : index
    %22 = vector.load %arg1[%c0_38, %c1_39, %c0_40, %c16_41] : memref<2x9x9x64xbf16, #tpu.memory_space<vmem>>, vector<2x8x8x16xbf16>
    %23 = vector.shape_cast %22 : vector<2x8x8x16xbf16> to vector<128x16xbf16>
    %c0_42 = arith.constant 0 : index
    %c112 = arith.constant 112 : index
    %24 = vector.load %arg9[%c0_42, %c112] : memref<128x144xbf16, #tpu.memory_space<vmem>>, vector<128x16xbf16>
    tpu.vector_store %arg9[%c0_42, %c112], %23 {strides = array<i32>} : memref<128x144xbf16, #tpu.memory_space<vmem>>, vector<128x16xbf16>,
    %c0_43 = arith.constant 0 : index
    %c1_44 = arith.constant 1 : index
    %c1_45 = arith.constant 1 : index
    %c0_46 = arith.constant 0 : index
    %25 = vector.load %arg1[%c0_43, %c1_44, %c1_45, %c0_46] : memref<2x9x9x64xbf16, #tpu.memory_space<vmem>>, vector<2x8x8x16xbf16>
    %26 = vector.shape_cast %25 : vector<2x8x8x16xbf16> to vector<128x16xbf16>
    %c0_47 = arith.constant 0 : index
    %c128 = arith.constant 128 : index
    %27 = vector.load %arg9[%c0_47, %c128] : memref<128x144xbf16, #tpu.memory_space<vmem>>, vector<128x16xbf16>
    tpu.vector_store %arg9[%c0_47, %c128], %26 {strides = array<i32>} : memref<128x144xbf16, #tpu.memory_space<vmem>>, vector<128x16xbf16>,
    %c0_48 = arith.constant 0 : index
    %c0_49 = arith.constant 0 : index
    %28 = vector.load %arg9[%c0_48, %c0_49] : memref<128x144xbf16, #tpu.memory_space<vmem>>, vector<128x144xbf16>
    %c0_50 = arith.constant 0 : index
    %c0_51 = arith.constant 0 : index
    %29 = vector.load %arg2[%c0_50, %c0_51] : memref<144x32xbf16, #tpu.memory_space<vmem>>, vector<144x32xbf16>
    %cst = arith.constant dense<0.000000e+00> : vector<128x32xf32>
    %30 = tpu.matmul %28, %29, %cst {dimension_numbers = #tpu.dot_dimension_numbers<[1], [0], [0], [1], [0, 0, 1, 1], [], []>} : vector<128x144xbf16>, vector<144x32xbf16>, vector<128x32xf32> -> vector<128x32xf32>
    %c0_52 = arith.constant 0 : index
    %c0_53 = arith.constant 0 : index
    %31 = vector.load %arg3[%c0_52, %c0_53] : memref<1x32xf32, #tpu.memory_space<vmem>>, vector<1x32xf32>
    %32 = vector.broadcast %31 : vector<1x32xf32> to vector<128x32xf32>
    %33 = arith.addf %30, %32 : vector<128x32xf32>
    %cst_54 = arith.constant 0.000000e+00 : f32
    %34 = vector.broadcast %cst_54 : f32 to vector<128x32xf32>
    %35 = arith.maximumf %33, %34 : vector<128x32xf32>
    %cst_55 = arith.constant 0.000000e+00 : f32
    %36 = vector.broadcast %cst_55 : f32 to vector<2x1x10x32xf32>
    %c0_56 = arith.constant 0 : index
    %c0_57 = arith.constant 0 : index
    %c0_58 = arith.constant 0 : index
    %c0_59 = arith.constant 0 : index
    %37 = vector.load %arg10[%c0_56, %c0_57, %c0_58, %c0_59] : memref<2x10x10x32xf32, #tpu.memory_space<vmem>>, vector<2x1x10x32xf32>
    tpu.vector_store %arg10[%c0_56, %c0_57, %c0_58, %c0_59], %36 {strides = array<i32>} : memref<2x10x10x32xf32, #tpu.memory_space<vmem>>, vector<2x1x10x32xf32>,
    %c0_60 = arith.constant 0 : index
    %c9 = arith.constant 9 : index
    %c0_61 = arith.constant 0 : index
    %c0_62 = arith.constant 0 : index
    %38 = vector.load %arg10[%c0_60, %c9, %c0_61, %c0_62] : memref<2x10x10x32xf32, #tpu.memory_space<vmem>>, vector<2x1x10x32xf32>
    tpu.vector_store %arg10[%c0_60, %c9, %c0_61, %c0_62], %36 {strides = array<i32>} : memref<2x10x10x32xf32, #tpu.memory_space<vmem>>, vector<2x1x10x32xf32>,
    %cst_63 = arith.constant 0.000000e+00 : f32
    %39 = vector.broadcast %cst_63 : f32 to vector<2x10x1x32xf32>
    %c0_64 = arith.constant 0 : index
    %c0_65 = arith.constant 0 : index
    %c0_66 = arith.constant 0 : index
    %c0_67 = arith.constant 0 : index
    %40 = vector.load %arg10[%c0_64, %c0_65, %c0_66, %c0_67] : memref<2x10x10x32xf32, #tpu.memory_space<vmem>>, vector<2x10x1x32xf32>
    tpu.vector_store %arg10[%c0_64, %c0_65, %c0_66, %c0_67], %39 {strides = array<i32>} : memref<2x10x10x32xf32, #tpu.memory_space<vmem>>, vector<2x10x1x32xf32>,
    %c0_68 = arith.constant 0 : index
    %c0_69 = arith.constant 0 : index
    %c9_70 = arith.constant 9 : index
    %c0_71 = arith.constant 0 : index
    %41 = vector.load %arg10[%c0_68, %c0_69, %c9_70, %c0_71] : memref<2x10x10x32xf32, #tpu.memory_space<vmem>>, vector<2x10x1x32xf32>
    tpu.vector_store %arg10[%c0_68, %c0_69, %c9_70, %c0_71], %39 {strides = array<i32>} : memref<2x10x10x32xf32, #tpu.memory_space<vmem>>, vector<2x10x1x32xf32>,
    %42 = vector.shape_cast %35 : vector<128x32xf32> to vector<2x8x8x32xf32>
    %c0_72 = arith.constant 0 : index
    %c1_73 = arith.constant 1 : index
    %c1_74 = arith.constant 1 : index
    %c0_75 = arith.constant 0 : index
    %43 = vector.load %arg10[%c0_72, %c1_73, %c1_74, %c0_75] : memref<2x10x10x32xf32, #tpu.memory_space<vmem>>, vector<2x8x8x32xf32>
    tpu.vector_store %arg10[%c0_72, %c1_73, %c1_74, %c0_75], %42 {strides = array<i32>} : memref<2x10x10x32xf32, #tpu.memory_space<vmem>>, vector<2x8x8x32xf32>,
    %c0_76 = arith.constant 0 : index
    %c0_77 = arith.constant 0 : index
    %c0_78 = arith.constant 0 : index
    %c0_79 = arith.constant 0 : index
    %44 = vector.load %arg10[%c0_76, %c0_77, %c0_78, %c0_79] : memref<2x10x10x32xf32, #tpu.memory_space<vmem>>, vector<2x8x8x32xf32>
    %45 = vector.shape_cast %44 : vector<2x8x8x32xf32> to vector<128x32xf32>
    %46 = arith.truncf %45 : vector<128x32xf32> to vector<128x32xbf16>
    %c0_80 = arith.constant 0 : index
    %c0_81 = arith.constant 0 : index
    %47 = vector.load %arg11[%c0_80, %c0_81] : memref<128x288xbf16, #tpu.memory_space<vmem>>, vector<128x32xbf16>
    tpu.vector_store %arg11[%c0_80, %c0_81], %46 {strides = array<i32>} : memref<128x288xbf16, #tpu.memory_space<vmem>>, vector<128x32xbf16>,
    %c0_82 = arith.constant 0 : index
    %c0_83 = arith.constant 0 : index
    %c1_84 = arith.constant 1 : index
    %c0_85 = arith.constant 0 : index
    %48 = vector.load %arg10[%c0_82, %c0_83, %c1_84, %c0_85] : memref<2x10x10x32xf32, #tpu.memory_space<vmem>>, vector<2x8x8x32xf32>
    %49 = vector.shape_cast %48 : vector<2x8x8x32xf32> to vector<128x32xf32>
    %50 = arith.truncf %49 : vector<128x32xf32> to vector<128x32xbf16>
    %c0_86 = arith.constant 0 : index
    %c32_87 = arith.constant 32 : index
    %51 = vector.load %arg11[%c0_86, %c32_87] : memref<128x288xbf16, #tpu.memory_space<vmem>>, vector<128x32xbf16>
    tpu.vector_store %arg11[%c0_86, %c32_87], %50 {strides = array<i32>} : memref<128x288xbf16, #tpu.memory_space<vmem>>, vector<128x32xbf16>,
    %c0_88 = arith.constant 0 : index
    %c0_89 = arith.constant 0 : index
    %c2 = arith.constant 2 : index
    %c0_90 = arith.constant 0 : index
    %52 = vector.load %arg10[%c0_88, %c0_89, %c2, %c0_90] : memref<2x10x10x32xf32, #tpu.memory_space<vmem>>, vector<2x8x8x32xf32>
    %53 = vector.shape_cast %52 : vector<2x8x8x32xf32> to vector<128x32xf32>
    %54 = arith.truncf %53 : vector<128x32xf32> to vector<128x32xbf16>
    %c0_91 = arith.constant 0 : index
    %c64_92 = arith.constant 64 : index
    %55 = vector.load %arg11[%c0_91, %c64_92] : memref<128x288xbf16, #tpu.memory_space<vmem>>, vector<128x32xbf16>
    tpu.vector_store %arg11[%c0_91, %c64_92], %54 {strides = array<i32>} : memref<128x288xbf16, #tpu.memory_space<vmem>>, vector<128x32xbf16>,
    %c0_93 = arith.constant 0 : index
    %c1_94 = arith.constant 1 : index
    %c0_95 = arith.constant 0 : index
    %c0_96 = arith.constant 0 : index
    %56 = vector.load %arg10[%c0_93, %c1_94, %c0_95, %c0_96] : memref<2x10x10x32xf32, #tpu.memory_space<vmem>>, vector<2x8x8x32xf32>
    %57 = vector.shape_cast %56 : vector<2x8x8x32xf32> to vector<128x32xf32>
    %58 = arith.truncf %57 : vector<128x32xf32> to vector<128x32xbf16>
    %c0_97 = arith.constant 0 : index
    %c96_98 = arith.constant 96 : index
    %59 = vector.load %arg11[%c0_97, %c96_98] : memref<128x288xbf16, #tpu.memory_space<vmem>>, vector<128x32xbf16>
    tpu.vector_store %arg11[%c0_97, %c96_98], %58 {strides = array<i32>} : memref<128x288xbf16, #tpu.memory_space<vmem>>, vector<128x32xbf16>,
    %c0_99 = arith.constant 0 : index
    %c1_100 = arith.constant 1 : index
    %c1_101 = arith.constant 1 : index
    %c0_102 = arith.constant 0 : index
    %60 = vector.load %arg10[%c0_99, %c1_100, %c1_101, %c0_102] : memref<2x10x10x32xf32, #tpu.memory_space<vmem>>, vector<2x8x8x32xf32>
    %61 = vector.shape_cast %60 : vector<2x8x8x32xf32> to vector<128x32xf32>
    %62 = arith.truncf %61 : vector<128x32xf32> to vector<128x32xbf16>
    %c0_103 = arith.constant 0 : index
    %c128_104 = arith.constant 128 : index
    %63 = vector.load %arg11[%c0_103, %c128_104] : memref<128x288xbf16, #tpu.memory_space<vmem>>, vector<128x32xbf16>
    tpu.vector_store %arg11[%c0_103, %c128_104], %62 {strides = array<i32>} : memref<128x288xbf16, #tpu.memory_space<vmem>>, vector<128x32xbf16>,
    %c0_105 = arith.constant 0 : index
    %c1_106 = arith.constant 1 : index
    %c2_107 = arith.constant 2 : index
    %c0_108 = arith.constant 0 : index
    %64 = vector.load %arg10[%c0_105, %c1_106, %c2_107, %c0_108] : memref<2x10x10x32xf32, #tpu.memory_space<vmem>>, vector<2x8x8x32xf32>
    %65 = vector.shape_cast %64 : vector<2x8x8x32xf32> to vector<128x32xf32>
    %66 = arith.truncf %65 : vector<128x32xf32> to vector<128x32xbf16>
    %c0_109 = arith.constant 0 : index
    %c160 = arith.constant 160 : index
    %67 = vector.load %arg11[%c0_109, %c160] : memref<128x288xbf16, #tpu.memory_space<vmem>>, vector<128x32xbf16>
    tpu.vector_store %arg11[%c0_109, %c160], %66 {strides = array<i32>} : memref<128x288xbf16, #tpu.memory_space<vmem>>, vector<128x32xbf16>,
    %c0_110 = arith.constant 0 : index
    %c2_111 = arith.constant 2 : index
    %c0_112 = arith.constant 0 : index
    %c0_113 = arith.constant 0 : index
    %68 = vector.load %arg10[%c0_110, %c2_111, %c0_112, %c0_113] : memref<2x10x10x32xf32, #tpu.memory_space<vmem>>, vector<2x8x8x32xf32>
    %69 = vector.shape_cast %68 : vector<2x8x8x32xf32> to vector<128x32xf32>
    %70 = arith.truncf %69 : vector<128x32xf32> to vector<128x32xbf16>
    %c0_114 = arith.constant 0 : index
    %c192 = arith.constant 192 : index
    %71 = vector.load %arg11[%c0_114, %c192] : memref<128x288xbf16, #tpu.memory_space<vmem>>, vector<128x32xbf16>
    tpu.vector_store %arg11[%c0_114, %c192], %70 {strides = array<i32>} : memref<128x288xbf16, #tpu.memory_space<vmem>>, vector<128x32xbf16>,
    %c0_115 = arith.constant 0 : index
    %c2_116 = arith.constant 2 : index
    %c1_117 = arith.constant 1 : index
    %c0_118 = arith.constant 0 : index
    %72 = vector.load %arg10[%c0_115, %c2_116, %c1_117, %c0_118] : memref<2x10x10x32xf32, #tpu.memory_space<vmem>>, vector<2x8x8x32xf32>
    %73 = vector.shape_cast %72 : vector<2x8x8x32xf32> to vector<128x32xf32>
    %74 = arith.truncf %73 : vector<128x32xf32> to vector<128x32xbf16>
    %c0_119 = arith.constant 0 : index
    %c224 = arith.constant 224 : index
    %75 = vector.load %arg11[%c0_119, %c224] : memref<128x288xbf16, #tpu.memory_space<vmem>>, vector<128x32xbf16>
    tpu.vector_store %arg11[%c0_119, %c224], %74 {strides = array<i32>} : memref<128x288xbf16, #tpu.memory_space<vmem>>, vector<128x32xbf16>,
    %c0_120 = arith.constant 0 : index
    %c2_121 = arith.constant 2 : index
    %c2_122 = arith.constant 2 : index
    %c0_123 = arith.constant 0 : index
    %76 = vector.load %arg10[%c0_120, %c2_121, %c2_122, %c0_123] : memref<2x10x10x32xf32, #tpu.memory_space<vmem>>, vector<2x8x8x32xf32>
    %77 = vector.shape_cast %76 : vector<2x8x8x32xf32> to vector<128x32xf32>
    %78 = arith.truncf %77 : vector<128x32xf32> to vector<128x32xbf16>
    %c0_124 = arith.constant 0 : index
    %c256 = arith.constant 256 : index
    %79 = vector.load %arg11[%c0_124, %c256] : memref<128x288xbf16, #tpu.memory_space<vmem>>, vector<128x32xbf16>
    tpu.vector_store %arg11[%c0_124, %c256], %78 {strides = array<i32>} : memref<128x288xbf16, #tpu.memory_space<vmem>>, vector<128x32xbf16>,
    %c0_125 = arith.constant 0 : index
    %c0_126 = arith.constant 0 : index
    %80 = vector.load %arg11[%c0_125, %c0_126] : memref<128x288xbf16, #tpu.memory_space<vmem>>, vector<128x288xbf16>
    %c0_127 = arith.constant 0 : index
    %c0_128 = arith.constant 0 : index
    %81 = vector.load %arg4[%c0_127, %c0_128] : memref<288x32xbf16, #tpu.memory_space<vmem>>, vector<288x32xbf16>
    %cst_129 = arith.constant dense<0.000000e+00> : vector<128x32xf32>
    %82 = tpu.matmul %80, %81, %cst_129 {dimension_numbers = #tpu.dot_dimension_numbers<[1], [0], [0], [1], [0, 0, 1, 1], [], []>} : vector<128x288xbf16>, vector<288x32xbf16>, vector<128x32xf32> -> vector<128x32xf32>
    %c0_130 = arith.constant 0 : index
    %c0_131 = arith.constant 0 : index
    %83 = vector.load %arg5[%c0_130, %c0_131] : memref<1x32xf32, #tpu.memory_space<vmem>>, vector<1x32xf32>
    %84 = vector.broadcast %83 : vector<1x32xf32> to vector<128x32xf32>
    %85 = arith.addf %82, %84 : vector<128x32xf32>
    %86 = vector.shape_cast %0 : vector<2x8x8x16xbf16> to vector<128x16xbf16>
    %c0_132 = arith.constant 0 : index
    %c0_133 = arith.constant 0 : index
    %87 = vector.load %arg6[%c0_132, %c0_133] : memref<16x32xbf16, #tpu.memory_space<vmem>>, vector<16x32xbf16>
    %cst_134 = arith.constant dense<0.000000e+00> : vector<128x32xf32>
    %88 = tpu.matmul %86, %87, %cst_134 {dimension_numbers = #tpu.dot_dimension_numbers<[1], [0], [0], [1], [0, 0, 1, 1], [], []>} : vector<128x16xbf16>, vector<16x32xbf16>, vector<128x32xf32> -> vector<128x32xf32>
    %c0_135 = arith.constant 0 : index
    %c0_136 = arith.constant 0 : index
    %89 = vector.load %arg7[%c0_135, %c0_136] : memref<1x32xf32, #tpu.memory_space<vmem>>, vector<1x32xf32>
    %90 = vector.broadcast %89 : vector<1x32xf32> to vector<128x32xf32>
    %91 = arith.addf %88, %90 : vector<128x32xf32>
    %92 = arith.addf %85, %91 : vector<128x32xf32>
    %cst_137 = arith.constant 0.000000e+00 : f32
    %93 = vector.broadcast %cst_137 : f32 to vector<128x32xf32>
    %94 = arith.maximumf %92, %93 : vector<128x32xf32>
    %95 = vector.shape_cast %94 : vector<128x32xf32> to vector<2x64x32xf32>
    %c0_138 = arith.constant 0 : index
    %c0_139 = arith.constant 0 : index
    %c0_140 = arith.constant 0 : index
    %96 = vector.load %arg8[%c0_138, %c0_139, %c0_140] : memref<2x64x32xf32, #tpu.memory_space<vmem>>, vector<2x64x32xf32>
    tpu.vector_store %arg8[%c0_138, %c0_139, %c0_140], %95 {strides = array<i32>} : memref<2x64x32xf32, #tpu.memory_space<vmem>>, vector<2x64x32xf32>,
    return
  }
  func.func @transform_0(%arg0: i32) -> (i32, i32, i32, i32) {
    %c0_i32 = arith.constant 0 : i32
    %c0_i32_0 = arith.constant 0 : i32
    %c0_i32_1 = arith.constant 0 : i32
    %c0_i32_2 = arith.constant 0 : i32
    return %arg0, %c0_i32, %c0_i32_0, %c0_i32_1 : i32, i32, i32, i32
  }
  func.func @transform_1(%arg0: i32) -> (i32, i32) {
    %c0_i32 = arith.constant 0 : i32
    %c0_i32_0 = arith.constant 0 : i32
    %c0_i32_1 = arith.constant 0 : i32
    return %c0_i32, %c0_i32_0 : i32, i32
  }
  func.func @transform_2(%arg0: i32) -> (i32, i32) {
    %c0_i32 = arith.constant 0 : i32
    %c0_i32_0 = arith.constant 0 : i32
    %c0_i32_1 = arith.constant 0 : i32
    return %c0_i32, %c0_i32_0 : i32, i32
  }
  func.func @transform_3(%arg0: i32) -> (i32, i32) {
    %c0_i32 = arith.constant 0 : i32
    %c0_i32_0 = arith.constant 0 : i32
    %c0_i32_1 = arith.constant 0 : i32
    return %c0_i32, %c0_i32_0 : i32, i32
  }
  func.func @transform_4(%arg0: i32) -> (i32, i32) {
    %c0_i32 = arith.constant 0 : i32
    %c0_i32_0 = arith.constant 0 : i32
    %c0_i32_1 = arith.constant 0 : i32
    return %c0_i32, %c0_i32_0 : i32, i32
  }
  func.func @transform_5(%arg0: i32) -> (i32, i32) {
    %c0_i32 = arith.constant 0 : i32
    %c0_i32_0 = arith.constant 0 : i32
    %c0_i32_1 = arith.constant 0 : i32
    return %c0_i32, %c0_i32_0 : i32, i32
  }
  func.func @transform_6(%arg0: i32) -> (i32, i32) {
    %c0_i32 = arith.constant 0 : i32
    %c0_i32_0 = arith.constant 0 : i32
    %c0_i32_1 = arith.constant 0 : i32
    return %c0_i32, %c0_i32_0 : i32, i32
  }
  func.func @transform_7(%arg0: i32) -> (i32, i32, i32) {
    %c0_i32 = arith.constant 0 : i32
    %c0_i32_0 = arith.constant 0 : i32
    %c0_i32_1 = arith.constant 0 : i32
    return %arg0, %c0_i32, %c0_i32_0 : i32, i32, i32
  }
}

</mosaic_0001>

<llo_original>
// kernel: tpu_custom_call.1
$region0: #{tpu_custom_call.1}
  #allocation0 [shape = 'u32[]', space=smem, size = 0x4, offset = 0x4, fixed_abs, tag = 'smem constant byte address 0x4 - core index']
  #allocation1 [shape = 'u32[144,128]{1,0:T(1,128)}', space=vmem, size = 0x12000, scoped, tag = 'internal scratch']
  #allocation2 [shape = 'bf16[128,144]{1,0:T(16,128)(2,1)}', space=vmem, size = 0x10000, scoped, tag = 'scratch operand']
  #allocation3 [shape = 'f32[2,10,10,32]{3,2,1,0:T(8,128)}', space=vmem, size = 0x28000, scoped, tag = 'scratch operand']
  #allocation4 [shape = 'bf16[128,288]{1,0:T(16,128)(2,1)}', space=vmem, size = 0x18000, scoped, tag = 'scratch operand']
  %s0 = inlined_call_operand.vmem [shape: bf16[4,9,9,64], index: 0, kind: input, shape index: {}]
  %s1 = inlined_call_operand.vmem [shape: bf16[144,32], index: 1, kind: input, shape index: {}]
  %s2 = inlined_call_operand.vmem [shape: f32[1,32], index: 2, kind: input, shape index: {}]
  %s3 = inlined_call_operand.vmem [shape: bf16[288,32], index: 3, kind: input, shape index: {}]
  %s4 = inlined_call_operand.vmem [shape: f32[1,32], index: 4, kind: input, shape index: {}]
  %s5 = inlined_call_operand.vmem [shape: bf16[16,32], index: 5, kind: input, shape index: {}]
  %s6 = inlined_call_operand.vmem [shape: f32[1,32], index: 6, kind: input, shape index: {}]
  %s7 = inlined_call_operand.vmem [shape: f32[4,64,32], index: 7, kind: output, shape index: {}]
  %s8 = sld [smem:[#allocation0]]
  $region61: #{tpu_custom_call.1} parent=0
    _
  %s10 = ssub.s32 1, %s8
  %s11 = scalar_select 0, %s10, %s8
  loop: start=0, step=1, limit=4
  $region2: #{tpu_custom_call.1} parent=0 // loop_pre_header
    _
  $region3: #{tpu_custom_call.1} parent=0 // loop_header
    %s13 = sphi 0, %s17
    %p14 = scmp.ge.s32.totalorder %s13, 4
    %s23 = sphi 0, %s25
    %s26 = sphi 0, %s23
    %s27 = sphi 0, %s26
    %s43 = sphi 0, %s27
    %s47 = sphi 0, %s47
    %s49 = sphi 0, %s47
    %s50 = sphi 0, %s49
    %s64 = sphi 0, %s50
    %s68 = sphi 0, %s68
    %s70 = sphi 0, %s68
    %s71 = sphi 0, %s70
    %s85 = sphi 0, %s71
    %s89 = sphi 0, %s89
    %s91 = sphi 0, %s89
    %s92 = sphi 0, %s91
    %s106 = sphi 0, %s92
    %s110 = sphi 0, %s110
    %s112 = sphi 0, %s110
    %s113 = sphi 0, %s112
    %s127 = sphi 0, %s113
    %s131 = sphi 0, %s131
    %s133 = sphi 0, %s131
    %s134 = sphi 0, %s133
    %s148 = sphi 0, %s134
    %s152 = sphi 0, %s152
    %s154 = sphi 0, %s152
    %s155 = sphi 0, %s154
    %s169 = sphi 0, %s155
    %s175 = sphi 0, %s177
    %s178 = sphi 0, %s175
    %s179 = sphi 0, %s178
    %s195 = sphi 0, %s179
  $region4: #{tpu_custom_call.1} parent=0 // loop_header_branch
    %16 = sbr.rel (%p14) target = $region8
  $region5: #{tpu_custom_call.1} parent=0 // loop_body
    %s18 = ssub.s32 %s13, 1
    %s19 = ssub.s32 %s13, 2
    %s20 = sadd.s32 %s13, 1
    %s21 = ssub.s32 %s13, %s20
    %p22 = scmp.eq.s32.totalorder %s21, 0
    %s24 = sadd.s32 %s23, 1
    %s25 = scalar_select %p22, %s23, %s24
    %p28 = pneg %p22
    %p29 = scmp.eq.s32.totalorder %s13, 1
    %p30 = por %p28, %p29
    %p31 = scmp.ne.s32.totalorder %s23, %s26
    %p32 = scmp.eq.s32.totalorder %s13, 0
    %p33 = por %p31, %p32
    %p34 = scmp.ne.s32.totalorder %s23, %s26
    %p35 = scmp.eq.s32.totalorder %s18, 1
    %p36 = por %p34, %p35
    %p37 = scmp.ne.s32.totalorder %s26, %s27
    %p38 = scmp.eq.s32.totalorder %s18, 0
    %p39 = por %p37, %p38
    %p40 = scmp.ne.s32.totalorder %s26, %s27
    %p41 = scmp.eq.s32.totalorder %s19, 1
    %p42 = por %p40, %p41
    %p44 = scmp.ne.s32.totalorder %s27, %s43
    %p45 = scmp.eq.s32.totalorder %s19, 0
    %p46 = por %p44, %p45
    %s48 = sadd.s32 %s47, 1
    %p51 = scmp.eq.s32.totalorder %s13, 1
    %p52 = scmp.ne.s32.totalorder %s47, %s49
    %p53 = scmp.eq.s32.totalorder %s13, 0
    %p54 = por %p52, %p53
    %p55 = scmp.ne.s32.totalorder %s47, %s49
    %p56 = scmp.eq.s32.totalorder %s18, 1
    %p57 = por %p55, %p56
    %p58 = scmp.ne.s32.totalorder %s49, %s50
    %p59 = scmp.eq.s32.totalorder %s18, 0
    %p60 = por %p58, %p59
    %p61 = scmp.ne.s32.totalorder %s49, %s50
    %p62 = scmp.eq.s32.totalorder %s19, 1
    %p63 = por %p61, %p62
    %p65 = scmp.ne.s32.totalorder %s50, %s64
    %p66 = scmp.eq.s32.totalorder %s19, 0
    %p67 = por %p65, %p66
    %s69 = sadd.s32 %s68, 1
    %p72 = scmp.eq.s32.totalorder %s13, 1
    %p73 = scmp.ne.s32.totalorder %s68, %s70
    %p74 = scmp.eq.s32.totalorder %s13, 0
    %p75 = por %p73, %p74
    %p76 = scmp.ne.s32.totalorder %s68, %s70
    %p77 = scmp.eq.s32.totalorder %s18, 1
    %p78 = por %p76, %p77
    %p79 = scmp.ne.s32.totalorder %s70, %s71
    %p80 = scmp.eq.s32.totalorder %s18, 0
    %p81 = por %p79, %p80
    %p82 = scmp.ne.s32.totalorder %s70, %s71
    %p83 = scmp.eq.s32.totalorder %s19, 1
    %p84 = por %p82, %p83
    %p86 = scmp.ne.s32.totalorder %s71, %s85
    %p87 = scmp.eq.s32.totalorder %s19, 0
    %p88 = por %p86, %p87
    %s90 = sadd.s32 %s89, 1
    %p93 = scmp.eq.s32.totalorder %s13, 1
    %p94 = scmp.ne.s32.totalorder %s89, %s91
    %p95 = scmp.eq.s32.totalorder %s13, 0
    %p96 = por %p94, %p95
    %p97 = scmp.ne.s32.totalorder %s89, %s91
    %p98 = scmp.eq.s32.totalorder %s18, 1
    %p99 = por %p97, %p98
    %p100 = scmp.ne.s32.totalorder %s91, %s92
    %p101 = scmp.eq.s32.totalorder %s18, 0
    %p102 = por %p100, %p101
    %p103 = scmp.ne.s32.totalorder %s91, %s92
    %p104 = scmp.eq.s32.totalorder %s19, 1
    %p105 = por %p103, %p104
    %p107 = scmp.ne.s32.totalorder %s92, %s106
    %p108 = scmp.eq.s32.totalorder %s19, 0
    %p109 = por %p107, %p108
    %s111 = sadd.s32 %s110, 1
    %p114 = scmp.eq.s32.totalorder %s13, 1
    %p115 = scmp.ne.s32.totalorder %s110, %s112
    %p116 = scmp.eq.s32.totalorder %s13, 0
    %p117 = por %p115, %p116
    %p118 = scmp.ne.s32.totalorder %s110, %s112
    %p119 = scmp.eq.s32.totalorder %s18, 1
    %p120 = por %p118, %p119
    %p121 = scmp.ne.s32.totalorder %s112, %s113
    %p122 = scmp.eq.s32.totalorder %s18, 0
    %p123 = por %p121, %p122
    %p124 = scmp.ne.s32.totalorder %s112, %s113
    %p125 = scmp.eq.s32.totalorder %s19, 1
    %p126 = por %p124, %p125
    %p128 = scmp.ne.s32.totalorder %s113, %s127
    %p129 = scmp.eq.s32.totalorder %s19, 0
    %p130 = por %p128, %p129
    %s132 = sadd.s32 %s131, 1
    %p135 = scmp.eq.s32.totalorder %s13, 1
    %p136 = scmp.ne.s32.totalorder %s131, %s133
    %p137 = scmp.eq.s32.totalorder %s13, 0
    %p138 = por %p136, %p137
    %p139 = scmp.ne.s32.totalorder %s131, %s133
    %p140 = scmp.eq.s32.totalorder %s18, 1
    %p141 = por %p139, %p140
    %p142 = scmp.ne.s32.totalorder %s133, %s134
    %p143 = scmp.eq.s32.totalorder %s18, 0
    %p144 = por %p142, %p143
    %p145 = scmp.ne.s32.totalorder %s133, %s134
    %p146 = scmp.eq.s32.totalorder %s19, 1
    %p147 = por %p145, %p146
    %p149 = scmp.ne.s32.totalorder %s134, %s148
    %p150 = scmp.eq.s32.totalorder %s19, 0
    %p151 = por %p149, %p150
    %s153 = sadd.s32 %s152, 1
    %p156 = scmp.eq.s32.totalorder %s13, 1
    %p157 = scmp.ne.s32.totalorder %s152, %s154
    %p158 = scmp.eq.s32.totalorder %s13, 0
    %p159 = por %p157, %p158
    %p160 = scmp.ne.s32.totalorder %s152, %s154
    %p161 = scmp.eq.s32.totalorder %s18, 1
    %p162 = por %p160, %p161
    %p163 = scmp.ne.s32.totalorder %s154, %s155
    %p164 = scmp.eq.s32.totalorder %s18, 0
    %p165 = por %p163, %p164
    %p166 = scmp.ne.s32.totalorder %s154, %s155
    %p167 = scmp.eq.s32.totalorder %s19, 1
    %p168 = por %p166, %p167
    %p170 = scmp.ne.s32.totalorder %s155, %s169
    %p171 = scmp.eq.s32.totalorder %s19, 0
    %p172 = por %p170, %p171
    %s173 = ssub.s32 %s13, %s20
    %p174 = scmp.eq.s32.totalorder %s173, 0
    %s176 = sadd.s32 %s175, 1
    %s177 = scalar_select %p174, %s175, %s176
    %p180 = pneg %p174
    %p181 = scmp.eq.s32.totalorder %s13, 1
    %p182 = por %p180, %p181
    %p183 = scmp.ne.s32.totalorder %s175, %s178
    %p184 = scmp.eq.s32.totalorder %s13, 0
    %p185 = por %p183, %p184
    %p186 = scmp.ne.s32.totalorder %s175, %s178
    %p187 = scmp.eq.s32.totalorder %s18, 1
    %p188 = por %p186, %p187
    %p189 = scmp.ne.s32.totalorder %s178, %s179
    %p190 = scmp.eq.s32.totalorder %s18, 0
    %p191 = por %p189, %p190
    %p192 = scmp.ne.s32.totalorder %s178, %s179
    %p193 = scmp.eq.s32.totalorder %s19, 1
    %p194 = por %p192, %p193
    %p196 = scmp.ne.s32.totalorder %s179, %s195
    %p197 = scmp.eq.s32.totalorder %s19, 0
    %p198 = por %p196, %p197
    %p199 = scmp.le.s32.totalorder 1, %s13
    %p200 = scmp.lt.s32.totalorder %s13, 3
    %p201 = pnand %p199, %p200
    %p202 = pneg %p201
    // Predicated region
    $region9: #{tpu_custom_call.1} parent=5 // pred_check
      _
    $region10: #{tpu_custom_call.1} parent=5 // pred_check_branch
      %204 = sbr.rel (%p201) target = $region12
    $region11: #{tpu_custom_call.1} parent=5 // pred_region
      %s205 = ssub.s32 %s13, 1
      // Predicated region
      $region13: #{tpu_custom_call.1} parent=11 // pred_check
        %p206 = pneg %p60
      $region14: #{tpu_custom_call.1} parent=11 // pred_check_branch
        %208 = sbr.rel (%p206) target = $region16
      $region15: #{tpu_custom_call.1} parent=11 // pred_region
        _
      $region16: #{tpu_custom_call.1} parent=11 // pred_fallthru
        _
      // Predicated region
      $region17: #{tpu_custom_call.1} parent=11 // pred_check
        %p209 = pneg %p81
      $region18: #{tpu_custom_call.1} parent=11 // pred_check_branch
        %211 = sbr.rel (%p209) target = $region20
      $region19: #{tpu_custom_call.1} parent=11 // pred_region
        _
      $region20: #{tpu_custom_call.1} parent=11 // pred_fallthru
        _
      // Predicated region
      $region21: #{tpu_custom_call.1} parent=11 // pred_check
        %p212 = pneg %p102
      $region22: #{tpu_custom_call.1} parent=11 // pred_check_branch
        %214 = sbr.rel (%p212) target = $region24
      $region23: #{tpu_custom_call.1} parent=11 // pred_region
        _
      $region24: #{tpu_custom_call.1} parent=11 // pred_fallthru
        _
      // Predicated region
      $region25: #{tpu_custom_call.1} parent=11 // pred_check
        %p215 = pneg %p123
      $region26: #{tpu_custom_call.1} parent=11 // pred_check_branch
        %217 = sbr.rel (%p215) target = $region28
      $region27: #{tpu_custom_call.1} parent=11 // pred_region
        _
      $region28: #{tpu_custom_call.1} parent=11 // pred_fallthru
        _
      // Predicated region
      $region29: #{tpu_custom_call.1} parent=11 // pred_check
        %p218 = pneg %p144
      $region30: #{tpu_custom_call.1} parent=11 // pred_check_branch
        %220 = sbr.rel (%p218) target = $region32
      $region31: #{tpu_custom_call.1} parent=11 // pred_region
        _
      $region32: #{tpu_custom_call.1} parent=11 // pred_fallthru
        _
      // Predicated region
      $region33: #{tpu_custom_call.1} parent=11 // pred_check
        %p221 = pneg %p165
      $region34: #{tpu_custom_call.1} parent=11 // pred_check_branch
        %223 = sbr.rel (%p221) target = $region36
      $region35: #{tpu_custom_call.1} parent=11 // pred_region
        _
      $region36: #{tpu_custom_call.1} parent=11 // pred_fallthru
        _
    $region12: #{tpu_custom_call.1} parent=5 // pred_fallthru
      _
    %p224 = scmp.lt.s32.totalorder %s13, 2
    // Predicated region
    $region37: #{tpu_custom_call.1} parent=5 // pred_check
      %p225 = pneg %p224
    $region38: #{tpu_custom_call.1} parent=5 // pred_check_branch
      %227 = sbr.rel (%p225) target = $region40
    $region39: #{tpu_custom_call.1} parent=5 // pred_region
      // Predicated region
      $region41: #{tpu_custom_call.1} parent=39 // pred_check
        %p228 = pneg %p33
      $region42: #{tpu_custom_call.1} parent=39 // pred_check_branch
        %230 = sbr.rel (%p228) target = $region44
      $region43: #{tpu_custom_call.1} parent=39 // pred_region
        %s231 = smul.u32 2, %s13
        %p232 = scmp.lt.s32.totalorder %s231, 3
        %s233 = scalar_select %p232, %s231, 3
        %s234 = smul.addr %s233, 18
        %s235 = smul.addr %s234, 4
        %s236 = scalar_lea.vmem %s0, %s235
        %s237 = smul.u32 2, %s13
      $region44: #{tpu_custom_call.1} parent=39 // pred_fallthru
        _
    $region40: #{tpu_custom_call.1} parent=5 // pred_fallthru
      _
    %p238 = scmp.le.s32.totalorder 1, %s13
    %p239 = scmp.lt.s32.totalorder %s13, 3
    %p240 = pnand %p238, %p239
    %p241 = pneg %p240
    // Predicated region
    $region45: #{tpu_custom_call.1} parent=5 // pred_check
      _
    $region46: #{tpu_custom_call.1} parent=5 // pred_check_branch
      %243 = sbr.rel (%p240) target = $region48
    $region47: #{tpu_custom_call.1} parent=5 // pred_region
      %s244 = ssub.s32 %s13, 1
      %s245 = smul.u32 2, %s18
      %p246 = scmp.lt.s32.totalorder %s245, 3
      %s247 = scalar_select %p246, %s245, 3
      %s248 = smul.addr %s247, 18
      %s249 = smul.addr %s248, 4
      %s250 = scalar_lea.vmem %s0, %s249
      %p251 = pneg %p39
      %p252 = pneg %p36
      %p253 = pneg %p60
      %p254 = pneg %p57
      %p255 = pneg %p81
      %p256 = pneg %p78
      %p257 = pneg %p102
      %p258 = pneg %p99
      %p259 = pneg %p123
      %p260 = pneg %p120
      %p261 = pneg %p144
      %p262 = pneg %p141
      %p263 = pneg %p165
      %p264 = pneg %p162
      %p265 = pneg %p191
      %p266 = pneg %p188
      %s267 = smul.u32 2, %s18
      %p268 = scmp.lt.s32.totalorder %s267, 3
      %s269 = scalar_select %p268, %s267, 3
      %s270 = smul.addr %s269, 8
      %s271 = smul.addr %s270, 8
      %s272 = scalar_lea.vmem %s7, %s271
      %s273 = smul.u32 2, %s18
      %p274 = scmp.lt.s32.totalorder %s273, 3
      %s275 = scalar_select %p274, %s273, 3
      %s276 = smul.addr %s275, 18
      %s277 = smul.addr %s276, 4
      %s278 = scalar_lea.vmem %s0, %s277
      %s279 = smul.u32 2, %s18
      %s280 = smul.u32 2, %s18
      %p281 = scmp.lt.s32.totalorder %s280, 3
      %s282 = scalar_select %p281, %s280, 3
      %s283 = smul.addr %s282, 8
      %s284 = smul.addr %s283, 8
      %s285 = scalar_lea.vmem %s7, %s284
      %s286 = smul.u32 2, %s18
      %v288 = vld [vmem:[%s278] sm:$0xf]
      %v289 = vld [vmem:[%s278 + $0x8] sm:$0xf]
      %v290 = vld [vmem:[%s278 + $0x10] sm:$0xf]
      %v291 = vld [vmem:[%s278 + $0x18] sm:$0xf]
      %v292 = vld [vmem:[%s278 + $0x20] sm:$0xf]
      %v293 = vld [vmem:[%s278 + $0x28] sm:$0xf]
      %v294 = vld [vmem:[%s278 + $0x30] sm:$0xf]
      %v295 = vld [vmem:[%s278 + $0x38] sm:$0xf]
      %v296 = vld [vmem:[%s278 + $0x48] sm:$0xf]
      %v297 = vld [vmem:[%s278 + $0x50] sm:$0xf]
      %v298 = vld [vmem:[%s278 + $0x58] sm:$0xf]
      %v299 = vld [vmem:[%s278 + $0x60] sm:$0xf]
      %v300 = vld [vmem:[%s278 + $0x68] sm:$0xf]
      %v301 = vld [vmem:[%s278 + $0x70] sm:$0xf]
      %v302 = vld [vmem:[%s278 + $0x78] sm:$0xf]
      %v303 = vld [vmem:[%s278 + $0x80] sm:$0xf]
      %v320 = vunpack.c.l.b16 %v288
      %v321 = vunpack.c.l.b16 %v289
      %v322 = vunpack.c.l.b16 %v290
      %v323 = vunpack.c.l.b16 %v291
      %v324 = vunpack.c.l.b16 %v292
      %v325 = vunpack.c.l.b16 %v293
      %v326 = vunpack.c.l.b16 %v294
      %v327 = vunpack.c.l.b16 %v295
      %v328 = vunpack.c.l.b16 %v296
      %v329 = vunpack.c.l.b16 %v297
      %v330 = vunpack.c.l.b16 %v298
      %v331 = vunpack.c.l.b16 %v299
      %v332 = vunpack.c.l.b16 %v300
      %v333 = vunpack.c.l.b16 %v301
      %v334 = vunpack.c.l.b16 %v302
      %v335 = vunpack.c.l.b16 %v303
      %v336 = vpack.c.b16 %v321, %v320
      %v337 = vpack.c.b16 %v323, %v322
      %v338 = vpack.c.b16 %v325, %v324
      %v339 = vpack.c.b16 %v327, %v326
      %v340 = vpack.c.b16 %v329, %v328
      %v341 = vpack.c.b16 %v331, %v330
      %v342 = vpack.c.b16 %v333, %v332
      %v343 = vpack.c.b16 %v335, %v334
      %vm352 = vcmask 130048
      %353 = vst.msk [vmem:[#allocation2] sm:$0xff] %vm352, %v336
      %354 = vst.msk [vmem:[#allocation2 + $0x10] sm:$0xff] %vm352, %v337
      %355 = vst.msk [vmem:[#allocation2 + $0x20] sm:$0xff] %vm352, %v338
      %356 = vst.msk [vmem:[#allocation2 + $0x30] sm:$0xff] %vm352, %v339
      %357 = vst.msk [vmem:[#allocation2 + $0x40] sm:$0xff] %vm352, %v340
      %358 = vst.msk [vmem:[#allocation2 + $0x50] sm:$0xff] %vm352, %v341
      %359 = vst.msk [vmem:[#allocation2 + $0x60] sm:$0xff] %vm352, %v342
      %360 = vst.msk [vmem:[#allocation2 + $0x70] sm:$0xff] %vm352, %v343
      %v361 = vld [vmem:[%s278] sm:$0xf]
      %v362 = vld [vmem:[%s278 + $0x8] sm:$0xf]
      %v363 = vld [vmem:[%s278 + $0x10] sm:$0xf]
      %v364 = vld [vmem:[%s278 + $0x18] sm:$0xf]
      %v365 = vld [vmem:[%s278 + $0x20] sm:$0xf]
      %v366 = vld [vmem:[%s278 + $0x28] sm:$0xf]
      %v367 = vld [vmem:[%s278 + $0x30] sm:$0xf]
      %v368 = vld [vmem:[%s278 + $0x38] sm:$0xf]
      %v369 = vld [vmem:[%s278 + $0x48] sm:$0xf]
      %v370 = vld [vmem:[%s278 + $0x50] sm:$0xf]
      %v371 = vld [vmem:[%s278 + $0x58] sm:$0xf]
      %v372 = vld [vmem:[%s278 + $0x60] sm:$0xf]
      %v373 = vld [vmem:[%s278 + $0x68] sm:$0xf]
      %v374 = vld [vmem:[%s278 + $0x70] sm:$0xf]
      %v375 = vld [vmem:[%s278 + $0x78] sm:$0xf]
      %v376 = vld [vmem:[%s278 + $0x80] sm:$0xf]
      %v393 = vunpack.c.l.b16 %v361
      %v394 = vunpack.c.l.b16 %v362
      %v395 = vunpack.c.l.b16 %v363
      %v396 = vunpack.c.l.b16 %v364
      %v397 = vunpack.c.l.b16 %v365
      %v398 = vunpack.c.l.b16 %v366
      %v399 = vunpack.c.l.b16 %v367
      %v400 = vunpack.c.l.b16 %v368
      %v401 = vunpack.c.l.b16 %v369
      %v402 = vunpack.c.l.b16 %v370
      %v403 = vunpack.c.l.b16 %v371
      %v404 = vunpack.c.l.b16 %v372
      %v405 = vunpack.c.l.b16 %v373
      %v406 = vunpack.c.l.b16 %v374
      %v407 = vunpack.c.l.b16 %v375
      %v408 = vunpack.c.l.b16 %v376
      %v409 = vpack.c.b16 %v394, %v393
      %v410 = vpack.c.b16 %v396, %v395
      %v411 = vpack.c.b16 %v398, %v397
      %v412 = vpack.c.b16 %v400, %v399
      %v413 = vpack.c.b16 %v402, %v401
      %v414 = vpack.c.b16 %v404, %v403
      %v415 = vpack.c.b16 %v406, %v405
      %v416 = vpack.c.b16 %v408, %v407
      %vm425 = vcmask 261248
      %426 = vst.msk [vmem:[#allocation2] sm:$0xff] %vm425, %v409
      %427 = vst.msk [vmem:[#allocation2 + $0x10] sm:$0xff] %vm425, %v410
      %428 = vst.msk [vmem:[#allocation2 + $0x20] sm:$0xff] %vm425, %v411
      %429 = vst.msk [vmem:[#allocation2 + $0x30] sm:$0xff] %vm425, %v412
      %430 = vst.msk [vmem:[#allocation2 + $0x40] sm:$0xff] %vm425, %v413
      %431 = vst.msk [vmem:[#allocation2 + $0x50] sm:$0xff] %vm425, %v414
      %432 = vst.msk [vmem:[#allocation2 + $0x60] sm:$0xff] %vm425, %v415
      %433 = vst.msk [vmem:[#allocation2 + $0x70] sm:$0xff] %vm425, %v416
      %v434 = vld [vmem:[%s278] sm:$0xf]
      %v435 = vld [vmem:[%s278 + $0x4] sm:$0x1]
      %v436 = vld [vmem:[%s278 + $0x8] sm:$0xf]
      %v437 = vld [vmem:[%s278 + $0xc] sm:$0x1]
      %v438 = vld [vmem:[%s278 + $0x10] sm:$0xf]
      %v439 = vld [vmem:[%s278 + $0x14] sm:$0x1]
      %v440 = vld [vmem:[%s278 + $0x18] sm:$0xf]
      %v441 = vld [vmem:[%s278 + $0x1c] sm:$0x1]
      %v442 = vld [vmem:[%s278 + $0x20] sm:$0xf]
      %v443 = vld [vmem:[%s278 + $0x24] sm:$0x1]
      %v444 = vld [vmem:[%s278 + $0x28] sm:$0xf]
      %v445 = vld [vmem:[%s278 + $0x2c] sm:$0x1]
      %v446 = vld [vmem:[%s278 + $0x30] sm:$0xf]
      %v447 = vld [vmem:[%s278 + $0x34] sm:$0x1]
      %v448 = vld [vmem:[%s278 + $0x38] sm:$0xf]
      %v449 = vld [vmem:[%s278 + $0x3c] sm:$0x1]
      %v450 = vld [vmem:[%s278 + $0x48] sm:$0xf]
      %v451 = vld [vmem:[%s278 + $0x4c] sm:$0x1]
      %v452 = vld [vmem:[%s278 + $0x50] sm:$0xf]
      %v453 = vld [vmem:[%s278 + $0x54] sm:$0x1]
      %v454 = vld [vmem:[%s278 + $0x58] sm:$0xf]
      %v455 = vld [vmem:[%s278 + $0x5c] sm:$0x1]
      %v456 = vld [vmem:[%s278 + $0x60] sm:$0xf]
      %v457 = vld [vmem:[%s278 + $0x64] sm:$0x1]
      %v458 = vld [vmem:[%s278 + $0x68] sm:$0xf]
      %v459 = vld [vmem:[%s278 + $0x6c] sm:$0x1]
      %v460 = vld [vmem:[%s278 + $0x70] sm:$0xf]
      %v461 = vld [vmem:[%s278 + $0x74] sm:$0x1]
      %v462 = vld [vmem:[%s278 + $0x78] sm:$0xf]
      %v463 = vld [vmem:[%s278 + $0x7c] sm:$0x1]
      %v464 = vld [vmem:[%s278 + $0x80] sm:$0xf]
      %v465 = vld [vmem:[%s278 + $0x84] sm:$0x1]
      %vm466 = vsmask.f32 3328
      %vm467 = vsmask.f32 7440
      %vm468 = vmor %vm466, %vm467
      %v470 = vshrl.u32 %v434, 16
      %v472 = vrot.slane %v470, 4
      %v473 = vshll.u32 %v434, 16
      %v475 = vrot.slane %v473, 5
      %v476 = vor.u32 %v472, %v475
      %v477 = vrot.slane %v476, 4
      %v479 = vshll.u32 %v435, 16
      %v481 = vrot.slane %v479, 5
      %v482 = vsel %vm468, %v477, %v481
      %v484 = vshrl.u32 %v436, 16
      %v486 = vrot.slane %v484, 4
      %v487 = vshll.u32 %v436, 16
      %v489 = vrot.slane %v487, 5
      %v490 = vor.u32 %v486, %v489
      %v491 = vrot.slane %v490, 4
      %v493 = vshll.u32 %v437, 16
      %v495 = vrot.slane %v493, 5
      %v496 = vsel %vm468, %v491, %v495
      %v498 = vshrl.u32 %v438, 16
      %v500 = vrot.slane %v498, 4
      %v501 = vshll.u32 %v438, 16
      %v503 = vrot.slane %v501, 5
      %v504 = vor.u32 %v500, %v503
      %v505 = vrot.slane %v504, 4
      %v507 = vshll.u32 %v439, 16
      %v509 = vrot.slane %v507, 5
      %v510 = vsel %vm468, %v505, %v509
      %v512 = vshrl.u32 %v440, 16
      %v514 = vrot.slane %v512, 4
      %v515 = vshll.u32 %v440, 16
      %v517 = vrot.slane %v515, 5
      %v518 = vor.u32 %v514, %v517
      %v519 = vrot.slane %v518, 4
      %v521 = vshll.u32 %v441, 16
      %v523 = vrot.slane %v521, 5
      %v524 = vsel %vm468, %v519, %v523
      %v526 = vshrl.u32 %v442, 16
      %v528 = vrot.slane %v526, 4
      %v529 = vshll.u32 %v442, 16
      %v531 = vrot.slane %v529, 5
      %v532 = vor.u32 %v528, %v531
      %v533 = vrot.slane %v532, 4
      %v535 = vshll.u32 %v443, 16
      %v537 = vrot.slane %v535, 5
      %v538 = vsel %vm468, %v533, %v537
      %v540 = vshrl.u32 %v444, 16
      %v542 = vrot.slane %v540, 4
      %v543 = vshll.u32 %v444, 16
      %v545 = vrot.slane %v543, 5
      %v546 = vor.u32 %v542, %v545
      %v547 = vrot.slane %v546, 4
      %v549 = vshll.u32 %v445, 16
      %v551 = vrot.slane %v549, 5
      %v552 = vsel %vm468, %v547, %v551
      %v554 = vshrl.u32 %v446, 16
      %v556 = vrot.slane %v554, 4
      %v557 = vshll.u32 %v446, 16
      %v559 = vrot.slane %v557, 5
      %v560 = vor.u32 %v556, %v559
      %v561 = vrot.slane %v560, 4
      %v563 = vshll.u32 %v447, 16
      %v565 = vrot.slane %v563, 5
      %v566 = vsel %vm468, %v561, %v565
      %v568 = vshrl.u32 %v448, 16
      %v570 = vrot.slane %v568, 4
      %v571 = vshll.u32 %v448, 16
      %v573 = vrot.slane %v571, 5
      %v574 = vor.u32 %v570, %v573
      %v575 = vrot.slane %v574, 4
      %v577 = vshll.u32 %v449, 16
      %v579 = vrot.slane %v577, 5
      %v580 = vsel %vm468, %v575, %v579
      %v582 = vshrl.u32 %v450, 16
      %v584 = vrot.slane %v582, 4
      %v585 = vshll.u32 %v450, 16
      %v587 = vrot.slane %v585, 5
      %v588 = vor.u32 %v584, %v587
      %v589 = vrot.slane %v588, 4
      %v591 = vshll.u32 %v451, 16
      %v593 = vrot.slane %v591, 5
      %v594 = vsel %vm468, %v589, %v593
      %v596 = vshrl.u32 %v452, 16
      %v598 = vrot.slane %v596, 4
      %v599 = vshll.u32 %v452, 16
      %v601 = vrot.slane %v599, 5
      %v602 = vor.u32 %v598, %v601
      %v603 = vrot.slane %v602, 4
      %v605 = vshll.u32 %v453, 16
      %v607 = vrot.slane %v605, 5
      %v608 = vsel %vm468, %v603, %v607
      %v610 = vshrl.u32 %v454, 16
      %v612 = vrot.slane %v610, 4
      %v613 = vshll.u32 %v454, 16
      %v615 = vrot.slane %v613, 5
      %v616 = vor.u32 %v612, %v615
      %v617 = vrot.slane %v616, 4
      %v619 = vshll.u32 %v455, 16
      %v621 = vrot.slane %v619, 5
      %v622 = vsel %vm468, %v617, %v621
      %v624 = vshrl.u32 %v456, 16
      %v626 = vrot.slane %v624, 4
      %v627 = vshll.u32 %v456, 16
      %v629 = vrot.slane %v627, 5
      %v630 = vor.u32 %v626, %v629
      %v631 = vrot.slane %v630, 4
      %v633 = vshll.u32 %v457, 16
      %v635 = vrot.slane %v633, 5
      %v636 = vsel %vm468, %v631, %v635
      %v638 = vshrl.u32 %v458, 16
      %v640 = vrot.slane %v638, 4
      %v641 = vshll.u32 %v458, 16
      %v643 = vrot.slane %v641, 5
      %v644 = vor.u32 %v640, %v643
      %v645 = vrot.slane %v644, 4
      %v647 = vshll.u32 %v459, 16
      %v649 = vrot.slane %v647, 5
      %v650 = vsel %vm468, %v645, %v649
      %v652 = vshrl.u32 %v460, 16
      %v654 = vrot.slane %v652, 4
      %v655 = vshll.u32 %v460, 16
      %v657 = vrot.slane %v655, 5
      %v658 = vor.u32 %v654, %v657
      %v659 = vrot.slane %v658, 4
      %v661 = vshll.u32 %v461, 16
      %v663 = vrot.slane %v661, 5
      %v664 = vsel %vm468, %v659, %v663
      %v666 = vshrl.u32 %v462, 16
      %v668 = vrot.slane %v666, 4
      %v669 = vshll.u32 %v462, 16
      %v671 = vrot.slane %v669, 5
      %v672 = vor.u32 %v668, %v671
      %v673 = vrot.slane %v672, 4
      %v675 = vshll.u32 %v463, 16
      %v677 = vrot.slane %v675, 5
      %v678 = vsel %vm468, %v673, %v677
      %v680 = vshrl.u32 %v464, 16
      %v682 = vrot.slane %v680, 4
      %v683 = vshll.u32 %v464, 16
      %v685 = vrot.slane %v683, 5
      %v686 = vor.u32 %v682, %v685
      %v687 = vrot.slane %v686, 4
      %v689 = vshll.u32 %v465, 16
      %v691 = vrot.slane %v689, 5
      %v692 = vsel %vm468, %v687, %v691
      %v693 = vunpack.c.l.b16 %v482
      %v694 = vunpack.c.l.b16 %v496
      %v695 = vunpack.c.l.b16 %v510
      %v696 = vunpack.c.l.b16 %v524
      %v697 = vunpack.c.l.b16 %v538
      %v698 = vunpack.c.l.b16 %v552
      %v699 = vunpack.c.l.b16 %v566
      %v700 = vunpack.c.l.b16 %v580
      %v701 = vunpack.c.l.b16 %v594
      %v702 = vunpack.c.l.b16 %v608
      %v703 = vunpack.c.l.b16 %v622
      %v704 = vunpack.c.l.b16 %v636
      %v705 = vunpack.c.l.b16 %v650
      %v706 = vunpack.c.l.b16 %v664
      %v707 = vunpack.c.l.b16 %v678
      %v708 = vunpack.c.l.b16 %v692
      %v709 = vpack.c.b16 %v694, %v693
      %v710 = vpack.c.b16 %v696, %v695
      %v711 = vpack.c.b16 %v698, %v697
      %v712 = vpack.c.b16 %v700, %v699
      %v713 = vpack.c.b16 %v702, %v701
      %v714 = vpack.c.b16 %v704, %v703
      %v715 = vpack.c.b16 %v706, %v705
      %v716 = vpack.c.b16 %v708, %v707
      %717 = vrot.lane.b32.xlu0 %v709, 32
      %v718 = vpop.permute.xlu0 %717
      %719 = vrot.lane.b32.xlu0 %v710, 32
      %v720 = vpop.permute.xlu0 %719
      %721 = vrot.lane.b32.xlu0 %v711, 32
      %v722 = vpop.permute.xlu0 %721
      %723 = vrot.lane.b32.xlu0 %v712, 32
      %v724 = vpop.permute.xlu0 %723
      %725 = vrot.lane.b32.xlu0 %v713, 32
      %v726 = vpop.permute.xlu0 %725
      %727 = vrot.lane.b32.xlu0 %v714, 32
      %v728 = vpop.permute.xlu0 %727
      %729 = vrot.lane.b32.xlu0 %v715, 32
      %v730 = vpop.permute.xlu0 %729
      %731 = vrot.lane.b32.xlu0 %v716, 32
      %v732 = vpop.permute.xlu0 %731
      %vm741 = vcmask 392448
      %742 = vst.msk [vmem:[#allocation2] sm:$0xff] %vm741, %v718
      %743 = vst.msk [vmem:[#allocation2 + $0x10] sm:$0xff] %vm741, %v720
      %744 = vst.msk [vmem:[#allocation2 + $0x20] sm:$0xff] %vm741, %v722
      %745 = vst.msk [vmem:[#allocation2 + $0x30] sm:$0xff] %vm741, %v724
      %746 = vst.msk [vmem:[#allocation2 + $0x40] sm:$0xff] %vm741, %v726
      %747 = vst.msk [vmem:[#allocation2 + $0x50] sm:$0xff] %vm741, %v728
      %748 = vst.msk [vmem:[#allocation2 + $0x60] sm:$0xff] %vm741, %v730
      %749 = vst.msk [vmem:[#allocation2 + $0x70] sm:$0xff] %vm741, %v732
      %v750 = vld [vmem:[%s278] sm:$0xf]
      %v751 = vld [vmem:[%s278 + $0x8] sm:$0xf]
      %v752 = vld [vmem:[%s278 + $0x10] sm:$0xf]
      %v753 = vld [vmem:[%s278 + $0x18] sm:$0xf]
      %v754 = vld [vmem:[%s278 + $0x20] sm:$0xf]
      %v755 = vld [vmem:[%s278 + $0x28] sm:$0xf]
      %v756 = vld [vmem:[%s278 + $0x30] sm:$0xf]
      %v757 = vld [vmem:[%s278 + $0x38] sm:$0xf]
      %v758 = vld [vmem:[%s278 + $0x48] sm:$0xf]
      %v759 = vld [vmem:[%s278 + $0x50] sm:$0xf]
      %v760 = vld [vmem:[%s278 + $0x58] sm:$0xf]
      %v761 = vld [vmem:[%s278 + $0x60] sm:$0xf]
      %v762 = vld [vmem:[%s278 + $0x68] sm:$0xf]
      %v763 = vld [vmem:[%s278 + $0x70] sm:$0xf]
      %v764 = vld [vmem:[%s278 + $0x78] sm:$0xf]
      %v765 = vld [vmem:[%s278 + $0x80] sm:$0xf]
      %v782 = vunpack.c.l.b16 %v750
      %v783 = vunpack.c.l.b16 %v751
      %v784 = vunpack.c.l.b16 %v752
      %v785 = vunpack.c.l.b16 %v753
      %v786 = vunpack.c.l.b16 %v754
      %v787 = vunpack.c.l.b16 %v755
      %v788 = vunpack.c.l.b16 %v756
      %v789 = vunpack.c.l.b16 %v757
      %v790 = vunpack.c.l.b16 %v758
      %v791 = vunpack.c.l.b16 %v759
      %v792 = vunpack.c.l.b16 %v760
      %v793 = vunpack.c.l.b16 %v761
      %v794 = vunpack.c.l.b16 %v762
      %v795 = vunpack.c.l.b16 %v763
      %v796 = vunpack.c.l.b16 %v764
      %v797 = vunpack.c.l.b16 %v765
      %v798 = vpack.c.b16 %v783, %v782
      %v799 = vpack.c.b16 %v785, %v784
      %v800 = vpack.c.b16 %v787, %v786
      %v801 = vpack.c.b16 %v789, %v788
      %v802 = vpack.c.b16 %v791, %v790
      %v803 = vpack.c.b16 %v793, %v792
      %v804 = vpack.c.b16 %v795, %v794
      %v805 = vpack.c.b16 %v797, %v796
      %806 = vrot.lane.b32.xlu0 %v798, 16
      %v807 = vpop.permute.xlu0 %806
      %808 = vrot.lane.b32.xlu0 %v799, 16
      %v809 = vpop.permute.xlu0 %808
      %810 = vrot.lane.b32.xlu0 %v800, 16
      %v811 = vpop.permute.xlu0 %810
      %812 = vrot.lane.b32.xlu0 %v801, 16
      %v813 = vpop.permute.xlu0 %812
      %814 = vrot.lane.b32.xlu0 %v802, 16
      %v815 = vpop.permute.xlu0 %814
      %816 = vrot.lane.b32.xlu0 %v803, 16
      %v817 = vpop.permute.xlu0 %816
      %818 = vrot.lane.b32.xlu0 %v804, 16
      %v819 = vpop.permute.xlu0 %818
      %820 = vrot.lane.b32.xlu0 %v805, 16
      %v821 = vpop.permute.xlu0 %820
      %vm830 = vcmask 523648
      %831 = vst.msk [vmem:[#allocation2] sm:$0xff] %vm830, %v807
      %832 = vst.msk [vmem:[#allocation2 + $0x10] sm:$0xff] %vm830, %v809
      %833 = vst.msk [vmem:[#allocation2 + $0x20] sm:$0xff] %vm830, %v811
      %834 = vst.msk [vmem:[#allocation2 + $0x30] sm:$0xff] %vm830, %v813
      %835 = vst.msk [vmem:[#allocation2 + $0x40] sm:$0xff] %vm830, %v815
      %836 = vst.msk [vmem:[#allocation2 + $0x50] sm:$0xff] %vm830, %v817
      %837 = vst.msk [vmem:[#allocation2 + $0x60] sm:$0xff] %vm830, %v819
      %838 = vst.msk [vmem:[#allocation2 + $0x70] sm:$0xff] %vm830, %v821
      %v839 = vld [vmem:[%s278] sm:$0xf]
      %v840 = vld [vmem:[%s278 + $0x8] sm:$0xf]
      %v841 = vld [vmem:[%s278 + $0x10] sm:$0xf]
      %v842 = vld [vmem:[%s278 + $0x18] sm:$0xf]
      %v843 = vld [vmem:[%s278 + $0x20] sm:$0xf]
      %v844 = vld [vmem:[%s278 + $0x28] sm:$0xf]
      %v845 = vld [vmem:[%s278 + $0x30] sm:$0xf]
      %v846 = vld [vmem:[%s278 + $0x38] sm:$0xf]
      %v847 = vld [vmem:[%s278 + $0x48] sm:$0xf]
      %v848 = vld [vmem:[%s278 + $0x50] sm:$0xf]
      %v849 = vld [vmem:[%s278 + $0x58] sm:$0xf]
      %v850 = vld [vmem:[%s278 + $0x60] sm:$0xf]
      %v851 = vld [vmem:[%s278 + $0x68] sm:$0xf]
      %v852 = vld [vmem:[%s278 + $0x70] sm:$0xf]
      %v853 = vld [vmem:[%s278 + $0x78] sm:$0xf]
      %v854 = vld [vmem:[%s278 + $0x80] sm:$0xf]
      %v871 = vunpack.c.l.b16 %v839
      %v872 = vunpack.c.l.b16 %v840
      %v873 = vunpack.c.l.b16 %v841
      %v874 = vunpack.c.l.b16 %v842
      %v875 = vunpack.c.l.b16 %v843
      %v876 = vunpack.c.l.b16 %v844
      %v877 = vunpack.c.l.b16 %v845
      %v878 = vunpack.c.l.b16 %v846
      %v879 = vunpack.c.l.b16 %v847
      %v880 = vunpack.c.l.b16 %v848
      %v881 = vunpack.c.l.b16 %v849
      %v882 = vunpack.c.l.b16 %v850
      %v883 = vunpack.c.l.b16 %v851
      %v884 = vunpack.c.l.b16 %v852
      %v885 = vunpack.c.l.b16 %v853
      %v886 = vunpack.c.l.b16 %v854
      %v887 = vpack.c.b16 %v872, %v871
      %v888 = vpack.c.b16 %v874, %v873
      %v889 = vpack.c.b16 %v876, %v875
      %v890 = vpack.c.b16 %v878, %v877
      %v891 = vpack.c.b16 %v880, %v879
      %v892 = vpack.c.b16 %v882, %v881
      %v893 = vpack.c.b16 %v884, %v883
      %v894 = vpack.c.b16 %v886, %v885
      %895 = vrot.lane.b32.xlu0 %v887, 16
      %v896 = vpop.permute.xlu0 %895
      %897 = vrot.lane.b32.xlu0 %v888, 16
      %v898 = vpop.permute.xlu0 %897
      %899 = vrot.lane.b32.xlu0 %v889, 16
      %v900 = vpop.permute.xlu0 %899
      %901 = vrot.lane.b32.xlu0 %v890, 16
      %v902 = vpop.permute.xlu0 %901
      %903 = vrot.lane.b32.xlu0 %v891, 16
      %v904 = vpop.permute.xlu0 %903
      %905 = vrot.lane.b32.xlu0 %v892, 16
      %v906 = vpop.permute.xlu0 %905
      %907 = vrot.lane.b32.xlu0 %v893, 16
      %v908 = vpop.permute.xlu0 %907
      %909 = vrot.lane.b32.xlu0 %v894, 16
      %v910 = vpop.permute.xlu0 %909
      %vm919 = vcmask 654848
      %920 = vst.msk [vmem:[#allocation2] sm:$0xff] %vm919, %v896
      %921 = vst.msk [vmem:[#allocation2 + $0x10] sm:$0xff] %vm919, %v898
      %922 = vst.msk [vmem:[#allocation2 + $0x20] sm:$0xff] %vm919, %v900
      %923 = vst.msk [vmem:[#allocation2 + $0x30] sm:$0xff] %vm919, %v902
      %924 = vst.msk [vmem:[#allocation2 + $0x40] sm:$0xff] %vm919, %v904
      %925 = vst.msk [vmem:[#allocation2 + $0x50] sm:$0xff] %vm919, %v906
      %926 = vst.msk [vmem:[#allocation2 + $0x60] sm:$0xff] %vm919, %v908
      %927 = vst.msk [vmem:[#allocation2 + $0x70] sm:$0xff] %vm919, %v910
      %v928 = vld [vmem:[%s278] sm:$0xf]
      %v929 = vld [vmem:[%s278 + $0x4] sm:$0x1]
      %v930 = vld [vmem:[%s278 + $0x8] sm:$0xf]
      %v931 = vld [vmem:[%s278 + $0xc] sm:$0x1]
      %v932 = vld [vmem:[%s278 + $0x10] sm:$0xf]
      %v933 = vld [vmem:[%s278 + $0x14] sm:$0x1]
      %v934 = vld [vmem:[%s278 + $0x18] sm:$0xf]
      %v935 = vld [vmem:[%s278 + $0x1c] sm:$0x1]
      %v936 = vld [vmem:[%s278 + $0x20] sm:$0xf]
      %v937 = vld [vmem:[%s278 + $0x24] sm:$0x1]
      %v938 = vld [vmem:[%s278 + $0x28] sm:$0xf]
      %v939 = vld [vmem:[%s278 + $0x2c] sm:$0x1]
      %v940 = vld [vmem:[%s278 + $0x30] sm:$0xf]
      %v941 = vld [vmem:[%s278 + $0x34] sm:$0x1]
      %v942 = vld [vmem:[%s278 + $0x38] sm:$0xf]
      %v943 = vld [vmem:[%s278 + $0x3c] sm:$0x1]
      %v944 = vld [vmem:[%s278 + $0x48] sm:$0xf]
      %v945 = vld [vmem:[%s278 + $0x4c] sm:$0x1]
      %v946 = vld [vmem:[%s278 + $0x50] sm:$0xf]
      %v947 = vld [vmem:[%s278 + $0x54] sm:$0x1]
      %v948 = vld [vmem:[%s278 + $0x58] sm:$0xf]
      %v949 = vld [vmem:[%s278 + $0x5c] sm:$0x1]
      %v950 = vld [vmem:[%s278 + $0x60] sm:$0xf]
      %v951 = vld [vmem:[%s278 + $0x64] sm:$0x1]
      %v952 = vld [vmem:[%s278 + $0x68] sm:$0xf]
      %v953 = vld [vmem:[%s278 + $0x6c] sm:$0x1]
      %v954 = vld [vmem:[%s278 + $0x70] sm:$0xf]
      %v955 = vld [vmem:[%s278 + $0x74] sm:$0x1]
      %v956 = vld [vmem:[%s278 + $0x78] sm:$0xf]
      %v957 = vld [vmem:[%s278 + $0x7c] sm:$0x1]
      %v958 = vld [vmem:[%s278 + $0x80] sm:$0xf]
      %v959 = vld [vmem:[%s278 + $0x84] sm:$0x1]
      %v961 = vshrl.u32 %v928, 16
      %v963 = vrot.slane %v961, 4
      %v964 = vshll.u32 %v928, 16
      %v966 = vrot.slane %v964, 5
      %v967 = vor.u32 %v963, %v966
      %v968 = vrot.slane %v967, 4
      %v970 = vshll.u32 %v929, 16
      %v972 = vrot.slane %v970, 5
      %v973 = vsel %vm468, %v968, %v972
      %v975 = vshrl.u32 %v930, 16
      %v977 = vrot.slane %v975, 4
      %v978 = vshll.u32 %v930, 16
      %v980 = vrot.slane %v978, 5
      %v981 = vor.u32 %v977, %v980
      %v982 = vrot.slane %v981, 4
      %v984 = vshll.u32 %v931, 16
      %v986 = vrot.slane %v984, 5
      %v987 = vsel %vm468, %v982, %v986
      %v989 = vshrl.u32 %v932, 16
      %v991 = vrot.slane %v989, 4
      %v992 = vshll.u32 %v932, 16
      %v994 = vrot.slane %v992, 5
      %v995 = vor.u32 %v991, %v994
      %v996 = vrot.slane %v995, 4
      %v998 = vshll.u32 %v933, 16
      %v1000 = vrot.slane %v998, 5
      %v1001 = vsel %vm468, %v996, %v1000
      %v1003 = vshrl.u32 %v934, 16
      %v1005 = vrot.slane %v1003, 4
      %v1006 = vshll.u32 %v934, 16
      %v1008 = vrot.slane %v1006, 5
      %v1009 = vor.u32 %v1005, %v1008
      %v1010 = vrot.slane %v1009, 4
      %v1012 = vshll.u32 %v935, 16
      %v1014 = vrot.slane %v1012, 5
      %v1015 = vsel %vm468, %v1010, %v1014
      %v1017 = vshrl.u32 %v936, 16
      %v1019 = vrot.slane %v1017, 4
      %v1020 = vshll.u32 %v936, 16
      %v1022 = vrot.slane %v1020, 5
      %v1023 = vor.u32 %v1019, %v1022
      %v1024 = vrot.slane %v1023, 4
      %v1026 = vshll.u32 %v937, 16
      %v1028 = vrot.slane %v1026, 5
      %v1029 = vsel %vm468, %v1024, %v1028
      %v1031 = vshrl.u32 %v938, 16
      %v1033 = vrot.slane %v1031, 4
      %v1034 = vshll.u32 %v938, 16
      %v1036 = vrot.slane %v1034, 5
      %v1037 = vor.u32 %v1033, %v1036
      %v1038 = vrot.slane %v1037, 4
      %v1040 = vshll.u32 %v939, 16
      %v1042 = vrot.slane %v1040, 5
      %v1043 = vsel %vm468, %v1038, %v1042
      %v1045 = vshrl.u32 %v940, 16
      %v1047 = vrot.slane %v1045, 4
      %v1048 = vshll.u32 %v940, 16
      %v1050 = vrot.slane %v1048, 5
      %v1051 = vor.u32 %v1047, %v1050
      %v1052 = vrot.slane %v1051, 4
      %v1054 = vshll.u32 %v941, 16
      %v1056 = vrot.slane %v1054, 5
      %v1057 = vsel %vm468, %v1052, %v1056
      %v1059 = vshrl.u32 %v942, 16
      %v1061 = vrot.slane %v1059, 4
      %v1062 = vshll.u32 %v942, 16
      %v1064 = vrot.slane %v1062, 5
      %v1065 = vor.u32 %v1061, %v1064
      %v1066 = vrot.slane %v1065, 4
      %v1068 = vshll.u32 %v943, 16
      %v1070 = vrot.slane %v1068, 5
      %v1071 = vsel %vm468, %v1066, %v1070
      %v1073 = vshrl.u32 %v944, 16
      %v1075 = vrot.slane %v1073, 4
      %v1076 = vshll.u32 %v944, 16
      %v1078 = vrot.slane %v1076, 5
      %v1079 = vor.u32 %v1075, %v1078
      %v1080 = vrot.slane %v1079, 4
      %v1082 = vshll.u32 %v945, 16
      %v1084 = vrot.slane %v1082, 5
      %v1085 = vsel %vm468, %v1080, %v1084
      %v1087 = vshrl.u32 %v946, 16
      %v1089 = vrot.slane %v1087, 4
      %v1090 = vshll.u32 %v946, 16
      %v1092 = vrot.slane %v1090, 5
      %v1093 = vor.u32 %v1089, %v1092
      %v1094 = vrot.slane %v1093, 4
      %v1096 = vshll.u32 %v947, 16
      %v1098 = vrot.slane %v1096, 5
      %v1099 = vsel %vm468, %v1094, %v1098
      %v1101 = vshrl.u32 %v948, 16
      %v1103 = vrot.slane %v1101, 4
      %v1104 = vshll.u32 %v948, 16
      %v1106 = vrot.slane %v1104, 5
      %v1107 = vor.u32 %v1103, %v1106
      %v1108 = vrot.slane %v1107, 4
      %v1110 = vshll.u32 %v949, 16
      %v1112 = vrot.slane %v1110, 5
      %v1113 = vsel %vm468, %v1108, %v1112
      %v1115 = vshrl.u32 %v950, 16
      %v1117 = vrot.slane %v1115, 4
      %v1118 = vshll.u32 %v950, 16
      %v1120 = vrot.slane %v1118, 5
      %v1121 = vor.u32 %v1117, %v1120
      %v1122 = vrot.slane %v1121, 4
      %v1124 = vshll.u32 %v951, 16
      %v1126 = vrot.slane %v1124, 5
      %v1127 = vsel %vm468, %v1122, %v1126
      %v1129 = vshrl.u32 %v952, 16
      %v1131 = vrot.slane %v1129, 4
      %v1132 = vshll.u32 %v952, 16
      %v1134 = vrot.slane %v1132, 5
      %v1135 = vor.u32 %v1131, %v1134
      %v1136 = vrot.slane %v1135, 4
      %v1138 = vshll.u32 %v953, 16
      %v1140 = vrot.slane %v1138, 5
      %v1141 = vsel %vm468, %v1136, %v1140
      %v1143 = vshrl.u32 %v954, 16
      %v1145 = vrot.slane %v1143, 4
      %v1146 = vshll.u32 %v954, 16
      %v1148 = vrot.slane %v1146, 5
      %v1149 = vor.u32 %v1145, %v1148
      %v1150 = vrot.slane %v1149, 4
      %v1152 = vshll.u32 %v955, 16
      %v1154 = vrot.slane %v1152, 5
      %v1155 = vsel %vm468, %v1150, %v1154
      %v1157 = vshrl.u32 %v956, 16
      %v1159 = vrot.slane %v1157, 4
      %v1160 = vshll.u32 %v956, 16
      %v1162 = vrot.slane %v1160, 5
      %v1163 = vor.u32 %v1159, %v1162
      %v1164 = vrot.slane %v1163, 4
      %v1166 = vshll.u32 %v957, 16
      %v1168 = vrot.slane %v1166, 5
      %v1169 = vsel %vm468, %v1164, %v1168
      %v1171 = vshrl.u32 %v958, 16
      %v1173 = vrot.slane %v1171, 4
      %v1174 = vshll.u32 %v958, 16
      %v1176 = vrot.slane %v1174, 5
      %v1177 = vor.u32 %v1173, %v1176
      %v1178 = vrot.slane %v1177, 4
      %v1180 = vshll.u32 %v959, 16
      %v1182 = vrot.slane %v1180, 5
      %v1183 = vsel %vm468, %v1178, %v1182
      %v1184 = vunpack.c.l.b16 %v973
      %v1185 = vunpack.c.l.b16 %v987
      %v1186 = vunpack.c.l.b16 %v1001
      %v1187 = vunpack.c.l.b16 %v1015
      %v1188 = vunpack.c.l.b16 %v1029
      %v1189 = vunpack.c.l.b16 %v1043
      %v1190 = vunpack.c.l.b16 %v1057
      %v1191 = vunpack.c.l.b16 %v1071
      %v1192 = vunpack.c.l.b16 %v1085
      %v1193 = vunpack.c.l.b16 %v1099
      %v1194 = vunpack.c.l.b16 %v1113
      %v1195 = vunpack.c.l.b16 %v1127
      %v1196 = vunpack.c.l.b16 %v1141
      %v1197 = vunpack.c.l.b16 %v1155
      %v1198 = vunpack.c.l.b16 %v1169
      %v1199 = vunpack.c.l.b16 %v1183
      %v1200 = vpack.c.b16 %v1185, %v1184
      %v1201 = vpack.c.b16 %v1187, %v1186
      %v1202 = vpack.c.b16 %v1189, %v1188
      %v1203 = vpack.c.b16 %v1191, %v1190
      %v1204 = vpack.c.b16 %v1193, %v1192
      %v1205 = vpack.c.b16 %v1195, %v1194
      %v1206 = vpack.c.b16 %v1197, %v1196
      %v1207 = vpack.c.b16 %v1199, %v1198
      %1208 = vrot.lane.b32.xlu0 %v1200, 48
      %v1209 = vpop.permute.xlu0 %1208
      %1210 = vrot.lane.b32.xlu0 %v1201, 48
      %v1211 = vpop.permute.xlu0 %1210
      %1212 = vrot.lane.b32.xlu0 %v1202, 48
      %v1213 = vpop.permute.xlu0 %1212
      %1214 = vrot.lane.b32.xlu0 %v1203, 48
      %v1215 = vpop.permute.xlu0 %1214
      %1216 = vrot.lane.b32.xlu0 %v1204, 48
      %v1217 = vpop.permute.xlu0 %1216
      %1218 = vrot.lane.b32.xlu0 %v1205, 48
      %v1219 = vpop.permute.xlu0 %1218
      %1220 = vrot.lane.b32.xlu0 %v1206, 48
      %v1221 = vpop.permute.xlu0 %1220
      %1222 = vrot.lane.b32.xlu0 %v1207, 48
      %v1223 = vpop.permute.xlu0 %1222
      %vm1232 = vcmask 786048
      %1233 = vst.msk [vmem:[#allocation2] sm:$0xff] %vm1232, %v1209
      %1234 = vst.msk [vmem:[#allocation2 + $0x10] sm:$0xff] %vm1232, %v1211
      %1235 = vst.msk [vmem:[#allocation2 + $0x20] sm:$0xff] %vm1232, %v1213
      %1236 = vst.msk [vmem:[#allocation2 + $0x30] sm:$0xff] %vm1232, %v1215
      %1237 = vst.msk [vmem:[#allocation2 + $0x40] sm:$0xff] %vm1232, %v1217
      %1238 = vst.msk [vmem:[#allocation2 + $0x50] sm:$0xff] %vm1232, %v1219
      %1239 = vst.msk [vmem:[#allocation2 + $0x60] sm:$0xff] %vm1232, %v1221
      %1240 = vst.msk [vmem:[#allocation2 + $0x70] sm:$0xff] %vm1232, %v1223
      %s1241 = scalar_lea.vmem %s278, 8
      %v1242 = vld [vmem:[%s1241] sm:$0xf]
      %v1243 = vld [vmem:[%s1241 + $0x8] sm:$0xf]
      %v1244 = vld [vmem:[%s1241 + $0x10] sm:$0xf]
      %v1245 = vld [vmem:[%s1241 + $0x18] sm:$0xf]
      %v1246 = vld [vmem:[%s1241 + $0x20] sm:$0xf]
      %v1247 = vld [vmem:[%s1241 + $0x28] sm:$0xf]
      %v1248 = vld [vmem:[%s1241 + $0x30] sm:$0xf]
      %v1249 = vld [vmem:[%s1241 + $0x38] sm:$0xf]
      %v1250 = vld [vmem:[%s1241 + $0x48] sm:$0xf]
      %v1251 = vld [vmem:[%s1241 + $0x50] sm:$0xf]
      %v1252 = vld [vmem:[%s1241 + $0x58] sm:$0xf]
      %v1253 = vld [vmem:[%s1241 + $0x60] sm:$0xf]
      %v1254 = vld [vmem:[%s1241 + $0x68] sm:$0xf]
      %v1255 = vld [vmem:[%s1241 + $0x70] sm:$0xf]
      %v1256 = vld [vmem:[%s1241 + $0x78] sm:$0xf]
      %v1257 = vld [vmem:[%s1241 + $0x80] sm:$0xf]
      %v1274 = vunpack.c.l.b16 %v1242
      %v1275 = vunpack.c.l.b16 %v1243
      %v1276 = vunpack.c.l.b16 %v1244
      %v1277 = vunpack.c.l.b16 %v1245
      %v1278 = vunpack.c.l.b16 %v1246
      %v1279 = vunpack.c.l.b16 %v1247
      %v1280 = vunpack.c.l.b16 %v1248
      %v1281 = vunpack.c.l.b16 %v1249
      %v1282 = vunpack.c.l.b16 %v1250
      %v1283 = vunpack.c.l.b16 %v1251
      %v1284 = vunpack.c.l.b16 %v1252
      %v1285 = vunpack.c.l.b16 %v1253
      %v1286 = vunpack.c.l.b16 %v1254
      %v1287 = vunpack.c.l.b16 %v1255
      %v1288 = vunpack.c.l.b16 %v1256
      %v1289 = vunpack.c.l.b16 %v1257
      %v1290 = vpack.c.b16 %v1275, %v1274
      %v1291 = vpack.c.b16 %v1277, %v1276
      %v1292 = vpack.c.b16 %v1279, %v1278
      %v1293 = vpack.c.b16 %v1281, %v1280
      %v1294 = vpack.c.b16 %v1283, %v1282
      %v1295 = vpack.c.b16 %v1285, %v1284
      %v1296 = vpack.c.b16 %v1287, %v1286
      %v1297 = vpack.c.b16 %v1289, %v1288
      %1298 = vrot.lane.b32.xlu0 %v1290, 96
      %v1299 = vpop.permute.xlu0 %1298
      %1300 = vrot.lane.b32.xlu0 %v1291, 96
      %v1301 = vpop.permute.xlu0 %1300
      %1302 = vrot.lane.b32.xlu0 %v1292, 96
      %v1303 = vpop.permute.xlu0 %1302
      %1304 = vrot.lane.b32.xlu0 %v1293, 96
      %v1305 = vpop.permute.xlu0 %1304
      %1306 = vrot.lane.b32.xlu0 %v1294, 96
      %v1307 = vpop.permute.xlu0 %1306
      %1308 = vrot.lane.b32.xlu0 %v1295, 96
      %v1309 = vpop.permute.xlu0 %1308
      %1310 = vrot.lane.b32.xlu0 %v1296, 96
      %v1311 = vpop.permute.xlu0 %1310
      %1312 = vrot.lane.b32.xlu0 %v1297, 96
      %v1313 = vpop.permute.xlu0 %1312
      %vm1322 = vcmask 917248
      %1323 = vst.msk [vmem:[#allocation2] sm:$0xff] %vm1322, %v1299
      %1324 = vst.msk [vmem:[#allocation2 + $0x10] sm:$0xff] %vm1322, %v1301
      %1325 = vst.msk [vmem:[#allocation2 + $0x20] sm:$0xff] %vm1322, %v1303
      %1326 = vst.msk [vmem:[#allocation2 + $0x30] sm:$0xff] %vm1322, %v1305
      %1327 = vst.msk [vmem:[#allocation2 + $0x40] sm:$0xff] %vm1322, %v1307
      %1328 = vst.msk [vmem:[#allocation2 + $0x50] sm:$0xff] %vm1322, %v1309
      %1329 = vst.msk [vmem:[#allocation2 + $0x60] sm:$0xff] %vm1322, %v1311
      %1330 = vst.msk [vmem:[#allocation2 + $0x70] sm:$0xff] %vm1322, %v1313
      %v1331 = vld [vmem:[%s1241] sm:$0xf]
      %v1332 = vld [vmem:[%s1241 + $0x8] sm:$0xf]
      %v1333 = vld [vmem:[%s1241 + $0x10] sm:$0xf]
      %v1334 = vld [vmem:[%s1241 + $0x18] sm:$0xf]
      %v1335 = vld [vmem:[%s1241 + $0x20] sm:$0xf]
      %v1336 = vld [vmem:[%s1241 + $0x28] sm:$0xf]
      %v1337 = vld [vmem:[%s1241 + $0x30] sm:$0xf]
      %v1338 = vld [vmem:[%s1241 + $0x38] sm:$0xf]
      %v1339 = vld [vmem:[%s1241 + $0x48] sm:$0xf]
      %v1340 = vld [vmem:[%s1241 + $0x50] sm:$0xf]
      %v1341 = vld [vmem:[%s1241 + $0x58] sm:$0xf]
      %v1342 = vld [vmem:[%s1241 + $0x60] sm:$0xf]
      %v1343 = vld [vmem:[%s1241 + $0x68] sm:$0xf]
      %v1344 = vld [vmem:[%s1241 + $0x70] sm:$0xf]
      %v1345 = vld [vmem:[%s1241 + $0x78] sm:$0xf]
      %v1346 = vld [vmem:[%s1241 + $0x80] sm:$0xf]
      %v1363 = vunpack.c.l.b16 %v1331
      %v1364 = vunpack.c.l.b16 %v1332
      %v1365 = vunpack.c.l.b16 %v1333
      %v1366 = vunpack.c.l.b16 %v1334
      %v1367 = vunpack.c.l.b16 %v1335
      %v1368 = vunpack.c.l.b16 %v1336
      %v1369 = vunpack.c.l.b16 %v1337
      %v1370 = vunpack.c.l.b16 %v1338
      %v1371 = vunpack.c.l.b16 %v1339
      %v1372 = vunpack.c.l.b16 %v1340
      %v1373 = vunpack.c.l.b16 %v1341
      %v1374 = vunpack.c.l.b16 %v1342
      %v1375 = vunpack.c.l.b16 %v1343
      %v1376 = vunpack.c.l.b16 %v1344
      %v1377 = vunpack.c.l.b16 %v1345
      %v1378 = vunpack.c.l.b16 %v1346
      %v1379 = vpack.c.b16 %v1364, %v1363
      %v1380 = vpack.c.b16 %v1366, %v1365
      %v1381 = vpack.c.b16 %v1368, %v1367
      %v1382 = vpack.c.b16 %v1370, %v1369
      %v1383 = vpack.c.b16 %v1372, %v1371
      %v1384 = vpack.c.b16 %v1374, %v1373
      %v1385 = vpack.c.b16 %v1376, %v1375
      %v1386 = vpack.c.b16 %v1378, %v1377
      %1387 = vrot.lane.b32.xlu0 %v1379, 96
      %v1388 = vpop.permute.xlu0 %1387
      %1389 = vrot.lane.b32.xlu0 %v1380, 96
      %v1390 = vpop.permute.xlu0 %1389
      %1391 = vrot.lane.b32.xlu0 %v1381, 96
      %v1392 = vpop.permute.xlu0 %1391
      %1393 = vrot.lane.b32.xlu0 %v1382, 96
      %v1394 = vpop.permute.xlu0 %1393
      %1395 = vrot.lane.b32.xlu0 %v1383, 96
      %v1396 = vpop.permute.xlu0 %1395
      %1397 = vrot.lane.b32.xlu0 %v1384, 96
      %v1398 = vpop.permute.xlu0 %1397
      %1399 = vrot.lane.b32.xlu0 %v1385, 96
      %v1400 = vpop.permute.xlu0 %1399
      %1401 = vrot.lane.b32.xlu0 %v1386, 96
      %v1402 = vpop.permute.xlu0 %1401
      %vm1411 = vcmask 1048448
      %1412 = vst.msk [vmem:[#allocation2] sm:$0xff] %vm1411, %v1388
      %1413 = vst.msk [vmem:[#allocation2 + $0x10] sm:$0xff] %vm1411, %v1390
      %1414 = vst.msk [vmem:[#allocation2 + $0x20] sm:$0xff] %vm1411, %v1392
      %1415 = vst.msk [vmem:[#allocation2 + $0x30] sm:$0xff] %vm1411, %v1394
      %1416 = vst.msk [vmem:[#allocation2 + $0x40] sm:$0xff] %vm1411, %v1396
      %1417 = vst.msk [vmem:[#allocation2 + $0x50] sm:$0xff] %vm1411, %v1398
      %1418 = vst.msk [vmem:[#allocation2 + $0x60] sm:$0xff] %vm1411, %v1400
      %1419 = vst.msk [vmem:[#allocation2 + $0x70] sm:$0xff] %vm1411, %v1402
      %v1420 = vld [vmem:[%s1241] sm:$0xf]
      %v1421 = vld [vmem:[%s1241 + $0x4] sm:$0x1]
      %v1422 = vld [vmem:[%s1241 + $0x8] sm:$0xf]
      %v1423 = vld [vmem:[%s1241 + $0xc] sm:$0x1]
      %v1424 = vld [vmem:[%s1241 + $0x10] sm:$0xf]
      %v1425 = vld [vmem:[%s1241 + $0x14] sm:$0x1]
      %v1426 = vld [vmem:[%s1241 + $0x18] sm:$0xf]
      %v1427 = vld [vmem:[%s1241 + $0x1c] sm:$0x1]
      %v1428 = vld [vmem:[%s1241 + $0x20] sm:$0xf]
      %v1429 = vld [vmem:[%s1241 + $0x24] sm:$0x1]
      %v1430 = vld [vmem:[%s1241 + $0x28] sm:$0xf]
      %v1431 = vld [vmem:[%s1241 + $0x2c] sm:$0x1]
      %v1432 = vld [vmem:[%s1241 + $0x30] sm:$0xf]
      %v1433 = vld [vmem:[%s1241 + $0x34] sm:$0x1]
      %v1434 = vld [vmem:[%s1241 + $0x38] sm:$0xf]
      %v1435 = vld [vmem:[%s1241 + $0x3c] sm:$0x1]
      %v1436 = vld [vmem:[%s1241 + $0x48] sm:$0xf]
      %v1437 = vld [vmem:[%s1241 + $0x4c] sm:$0x1]
      %v1438 = vld [vmem:[%s1241 + $0x50] sm:$0xf]
      %v1439 = vld [vmem:[%s1241 + $0x54] sm:$0x1]
      %v1440 = vld [vmem:[%s1241 + $0x58] sm:$0xf]
      %v1441 = vld [vmem:[%s1241 + $0x5c] sm:$0x1]
      %v1442 = vld [vmem:[%s1241 + $0x60] sm:$0xf]
      %v1443 = vld [vmem:[%s1241 + $0x64] sm:$0x1]
      %v1444 = vld [vmem:[%s1241 + $0x68] sm:$0xf]
      %v1445 = vld [vmem:[%s1241 + $0x6c] sm:$0x1]
      %v1446 = vld [vmem:[%s1241 + $0x70] sm:$0xf]
      %v1447 = vld [vmem:[%s1241 + $0x74] sm:$0x1]
      %v1448 = vld [vmem:[%s1241 + $0x78] sm:$0xf]
      %v1449 = vld [vmem:[%s1241 + $0x7c] sm:$0x1]
      %v1450 = vld [vmem:[%s1241 + $0x80] sm:$0xf]
      %v1451 = vld [vmem:[%s1241 + $0x84] sm:$0x1]
      %v1453 = vshrl.u32 %v1420, 16
      %v1455 = vrot.slane %v1453, 4
      %v1456 = vshll.u32 %v1420, 16
      %v1458 = vrot.slane %v1456, 5
      %v1459 = vor.u32 %v1455, %v1458
      %v1460 = vrot.slane %v1459, 4
      %v1462 = vshll.u32 %v1421, 16
      %v1464 = vrot.slane %v1462, 5
      %v1465 = vsel %vm468, %v1460, %v1464
      %v1467 = vshrl.u32 %v1422, 16
      %v1469 = vrot.slane %v1467, 4
      %v1470 = vshll.u32 %v1422, 16
      %v1472 = vrot.slane %v1470, 5
      %v1473 = vor.u32 %v1469, %v1472
      %v1474 = vrot.slane %v1473, 4
      %v1476 = vshll.u32 %v1423, 16
      %v1478 = vrot.slane %v1476, 5
      %v1479 = vsel %vm468, %v1474, %v1478
      %v1481 = vshrl.u32 %v1424, 16
      %v1483 = vrot.slane %v1481, 4
      %v1484 = vshll.u32 %v1424, 16
      %v1486 = vrot.slane %v1484, 5
      %v1487 = vor.u32 %v1483, %v1486
      %v1488 = vrot.slane %v1487, 4
      %v1490 = vshll.u32 %v1425, 16
      %v1492 = vrot.slane %v1490, 5
      %v1493 = vsel %vm468, %v1488, %v1492
      %v1495 = vshrl.u32 %v1426, 16
      %v1497 = vrot.slane %v1495, 4
      %v1498 = vshll.u32 %v1426, 16
      %v1500 = vrot.slane %v1498, 5
      %v1501 = vor.u32 %v1497, %v1500
      %v1502 = vrot.slane %v1501, 4
      %v1504 = vshll.u32 %v1427, 16
      %v1506 = vrot.slane %v1504, 5
      %v1507 = vsel %vm468, %v1502, %v1506
      %v1509 = vshrl.u32 %v1428, 16
      %v1511 = vrot.slane %v1509, 4
      %v1512 = vshll.u32 %v1428, 16
      %v1514 = vrot.slane %v1512, 5
      %v1515 = vor.u32 %v1511, %v1514
      %v1516 = vrot.slane %v1515, 4
      %v1518 = vshll.u32 %v1429, 16
      %v1520 = vrot.slane %v1518, 5
      %v1521 = vsel %vm468, %v1516, %v1520
      %v1523 = vshrl.u32 %v1430, 16
      %v1525 = vrot.slane %v1523, 4
      %v1526 = vshll.u32 %v1430, 16
      %v1528 = vrot.slane %v1526, 5
      %v1529 = vor.u32 %v1525, %v1528
      %v1530 = vrot.slane %v1529, 4
      %v1532 = vshll.u32 %v1431, 16
      %v1534 = vrot.slane %v1532, 5
      %v1535 = vsel %vm468, %v1530, %v1534
      %v1537 = vshrl.u32 %v1432, 16
      %v1539 = vrot.slane %v1537, 4
      %v1540 = vshll.u32 %v1432, 16
      %v1542 = vrot.slane %v1540, 5
      %v1543 = vor.u32 %v1539, %v1542
      %v1544 = vrot.slane %v1543, 4
      %v1546 = vshll.u32 %v1433, 16
      %v1548 = vrot.slane %v1546, 5
      %v1549 = vsel %vm468, %v1544, %v1548
      %v1551 = vshrl.u32 %v1434, 16
      %v1553 = vrot.slane %v1551, 4
      %v1554 = vshll.u32 %v1434, 16
      %v1556 = vrot.slane %v1554, 5
      %v1557 = vor.u32 %v1553, %v1556
      %v1558 = vrot.slane %v1557, 4
      %v1560 = vshll.u32 %v1435, 16
      %v1562 = vrot.slane %v1560, 5
      %v1563 = vsel %vm468, %v1558, %v1562
      %v1565 = vshrl.u32 %v1436, 16
      %v1567 = vrot.slane %v1565, 4
      %v1568 = vshll.u32 %v1436, 16
      %v1570 = vrot.slane %v1568, 5
      %v1571 = vor.u32 %v1567, %v1570
      %v1572 = vrot.slane %v1571, 4
      %v1574 = vshll.u32 %v1437, 16
      %v1576 = vrot.slane %v1574, 5
      %v1577 = vsel %vm468, %v1572, %v1576
      %v1579 = vshrl.u32 %v1438, 16
      %v1581 = vrot.slane %v1579, 4
      %v1582 = vshll.u32 %v1438, 16
      %v1584 = vrot.slane %v1582, 5
      %v1585 = vor.u32 %v1581, %v1584
      %v1586 = vrot.slane %v1585, 4
      %v1588 = vshll.u32 %v1439, 16
      %v1590 = vrot.slane %v1588, 5
      %v1591 = vsel %vm468, %v1586, %v1590
      %v1593 = vshrl.u32 %v1440, 16
      %v1595 = vrot.slane %v1593, 4
      %v1596 = vshll.u32 %v1440, 16
      %v1598 = vrot.slane %v1596, 5
      %v1599 = vor.u32 %v1595, %v1598
      %v1600 = vrot.slane %v1599, 4
      %v1602 = vshll.u32 %v1441, 16
      %v1604 = vrot.slane %v1602, 5
      %v1605 = vsel %vm468, %v1600, %v1604
      %v1607 = vshrl.u32 %v1442, 16
      %v1609 = vrot.slane %v1607, 4
      %v1610 = vshll.u32 %v1442, 16
      %v1612 = vrot.slane %v1610, 5
      %v1613 = vor.u32 %v1609, %v1612
      %v1614 = vrot.slane %v1613, 4
      %v1616 = vshll.u32 %v1443, 16
      %v1618 = vrot.slane %v1616, 5
      %v1619 = vsel %vm468, %v1614, %v1618
      %v1621 = vshrl.u32 %v1444, 16
      %v1623 = vrot.slane %v1621, 4
      %v1624 = vshll.u32 %v1444, 16
      %v1626 = vrot.slane %v1624, 5
      %v1627 = vor.u32 %v1623, %v1626
      %v1628 = vrot.slane %v1627, 4
      %v1630 = vshll.u32 %v1445, 16
      %v1632 = vrot.slane %v1630, 5
      %v1633 = vsel %vm468, %v1628, %v1632
      %v1635 = vshrl.u32 %v1446, 16
      %v1637 = vrot.slane %v1635, 4
      %v1638 = vshll.u32 %v1446, 16
      %v1640 = vrot.slane %v1638, 5
      %v1641 = vor.u32 %v1637, %v1640
      %v1642 = vrot.slane %v1641, 4
      %v1644 = vshll.u32 %v1447, 16
      %v1646 = vrot.slane %v1644, 5
      %v1647 = vsel %vm468, %v1642, %v1646
      %v1649 = vshrl.u32 %v1448, 16
      %v1651 = vrot.slane %v1649, 4
      %v1652 = vshll.u32 %v1448, 16
      %v1654 = vrot.slane %v1652, 5
      %v1655 = vor.u32 %v1651, %v1654
      %v1656 = vrot.slane %v1655, 4
      %v1658 = vshll.u32 %v1449, 16
      %v1660 = vrot.slane %v1658, 5
      %v1661 = vsel %vm468, %v1656, %v1660
      %v1663 = vshrl.u32 %v1450, 16
      %v1665 = vrot.slane %v1663, 4
      %v1666 = vshll.u32 %v1450, 16
      %v1668 = vrot.slane %v1666, 5
      %v1669 = vor.u32 %v1665, %v1668
      %v1670 = vrot.slane %v1669, 4
      %v1672 = vshll.u32 %v1451, 16
      %v1674 = vrot.slane %v1672, 5
      %v1675 = vsel %vm468, %v1670, %v1674
      %v1676 = vunpack.c.l.b16 %v1465
      %v1677 = vunpack.c.l.b16 %v1479
      %v1678 = vunpack.c.l.b16 %v1493
      %v1679 = vunpack.c.l.b16 %v1507
      %v1680 = vunpack.c.l.b16 %v1521
      %v1681 = vunpack.c.l.b16 %v1535
      %v1682 = vunpack.c.l.b16 %v1549
      %v1683 = vunpack.c.l.b16 %v1563
      %v1684 = vunpack.c.l.b16 %v1577
      %v1685 = vunpack.c.l.b16 %v1591
      %v1686 = vunpack.c.l.b16 %v1605
      %v1687 = vunpack.c.l.b16 %v1619
      %v1688 = vunpack.c.l.b16 %v1633
      %v1689 = vunpack.c.l.b16 %v1647
      %v1690 = vunpack.c.l.b16 %v1661
      %v1691 = vunpack.c.l.b16 %v1675
      %v1692 = vpack.c.b16 %v1677, %v1676
      %v1693 = vpack.c.b16 %v1679, %v1678
      %v1694 = vpack.c.b16 %v1681, %v1680
      %v1695 = vpack.c.b16 %v1683, %v1682
      %v1696 = vpack.c.b16 %v1685, %v1684
      %v1697 = vpack.c.b16 %v1687, %v1686
      %v1698 = vpack.c.b16 %v1689, %v1688
      %v1699 = vpack.c.b16 %v1691, %v1690
      %1708 = vst.msk [vmem:[#allocation2 + $0x8] sm:$0xff] %vm352, %v1692
      %1709 = vst.msk [vmem:[#allocation2 + $0x18] sm:$0xff] %vm352, %v1693
      %1710 = vst.msk [vmem:[#allocation2 + $0x28] sm:$0xff] %vm352, %v1694
      %1711 = vst.msk [vmem:[#allocation2 + $0x38] sm:$0xff] %vm352, %v1695
      %1712 = vst.msk [vmem:[#allocation2 + $0x48] sm:$0xff] %vm352, %v1696
      %1713 = vst.msk [vmem:[#allocation2 + $0x58] sm:$0xff] %vm352, %v1697
      %1714 = vst.msk [vmem:[#allocation2 + $0x68] sm:$0xff] %vm352, %v1698
      %1715 = vst.msk [vmem:[#allocation2 + $0x78] sm:$0xff] %vm352, %v1699
      %v1716 = vld [vmem:[#allocation2] sm:$0xff]
      %v1717 = vld [vmem:[#allocation2 + $0x8] sm:$0xff]
      %v1718 = vld [vmem:[#allocation2 + $0x10] sm:$0xff]
      %v1719 = vld [vmem:[#allocation2 + $0x18] sm:$0xff]
      %v1720 = vld [vmem:[#allocation2 + $0x20] sm:$0xff]
      %v1721 = vld [vmem:[#allocation2 + $0x28] sm:$0xff]
      %v1722 = vld [vmem:[#allocation2 + $0x30] sm:$0xff]
      %v1723 = vld [vmem:[#allocation2 + $0x38] sm:$0xff]
      %v1724 = vld [vmem:[#allocation2 + $0x40] sm:$0xff]
      %v1725 = vld [vmem:[#allocation2 + $0x48] sm:$0xff]
      %v1726 = vld [vmem:[#allocation2 + $0x50] sm:$0xff]
      %v1727 = vld [vmem:[#allocation2 + $0x58] sm:$0xff]
      %v1728 = vld [vmem:[#allocation2 + $0x60] sm:$0xff]
      %v1729 = vld [vmem:[#allocation2 + $0x68] sm:$0xff]
      %v1730 = vld [vmem:[#allocation2 + $0x70] sm:$0xff]
      %v1731 = vld [vmem:[#allocation2 + $0x78] sm:$0xff]
      %v1732 = vld [vmem:[%s1] sm:$0xf]
      %v1733 = vld [vmem:[%s1 + $0x4] sm:$0xf]
      %v1734 = vld [vmem:[%s1 + $0x8] sm:$0xf]
      %v1735 = vld [vmem:[%s1 + $0xc] sm:$0xf]
      %v1736 = vld [vmem:[%s1 + $0x10] sm:$0xf]
      %v1737 = vld [vmem:[%s1 + $0x14] sm:$0xf]
      %v1738 = vld [vmem:[%s1 + $0x18] sm:$0xf]
      %v1739 = vld [vmem:[%s1 + $0x1c] sm:$0xf]
      %v1740 = vld [vmem:[%s1 + $0x20] sm:$0xf]
      %v1741 = vld [vmem:[%s1 + $0x24] sm:$0xf]
      %v1742 = vld [vmem:[%s1 + $0x28] sm:$0xf]
      %v1743 = vld [vmem:[%s1 + $0x2c] sm:$0xf]
      %v1744 = vld [vmem:[%s1 + $0x30] sm:$0xf]
      %v1745 = vld [vmem:[%s1 + $0x34] sm:$0xf]
      %v1746 = vld [vmem:[%s1 + $0x38] sm:$0xf]
      %v1747 = vld [vmem:[%s1 + $0x3c] sm:$0xf]
      %v1748 = vld [vmem:[%s1 + $0x40] sm:$0xf]
      %v1749 = vld [vmem:[%s1 + $0x44] sm:$0xf]
      %v1750 = vld [vmem:[%s2] sm:$0x1]
      %v1752 = vlaneseq
      %v1753 = vshrl.u32 %v1752, 7
      %v1754 = vsub.s32 0, %v1753
      %v1755 = vrot.slane %v1750, %v1754
      %v1775 = vunpack.c.l.b16 %v1732
      %v1776 = vunpack.c.l.b16 %v1733
      %v1777 = vunpack.c.l.b16 %v1734
      %v1778 = vunpack.c.l.b16 %v1735
      %v1779 = vunpack.c.l.b16 %v1736
      %v1780 = vunpack.c.l.b16 %v1737
      %v1781 = vunpack.c.l.b16 %v1738
      %v1782 = vunpack.c.l.b16 %v1739
      %v1783 = vunpack.c.l.b16 %v1740
      %v1784 = vunpack.c.l.b16 %v1741
      %v1785 = vunpack.c.l.b16 %v1742
      %v1786 = vunpack.c.l.b16 %v1743
      %v1787 = vunpack.c.l.b16 %v1744
      %v1788 = vunpack.c.l.b16 %v1745
      %v1789 = vunpack.c.l.b16 %v1746
      %v1790 = vunpack.c.l.b16 %v1747
      %v1791 = vunpack.c.l.b16 %v1748
      %v1792 = vunpack.c.l.b16 %v1749
      %v1793 = vpack.c.b16 %v1776, %v1775
      %v1794 = vpack.c.b16 %v1778, %v1777
      %v1795 = vpack.c.b16 %v1780, %v1779
      %v1796 = vpack.c.b16 %v1782, %v1781
      %v1797 = vpack.c.b16 %v1784, %v1783
      %v1798 = vpack.c.b16 %v1786, %v1785
      %v1799 = vpack.c.b16 %v1788, %v1787
      %v1800 = vpack.c.b16 %v1790, %v1789
      %v1801 = vpack.c.b16 %v1792, %v1791
      %v1812 = vsel %vm352, %v1717, 0
      %v1815 = vsel %vm352, %v1719, 0
      %v1818 = vsel %vm352, %v1721, 0
      %v1821 = vsel %vm352, %v1723, 0
      %v1824 = vsel %vm352, %v1725, 0
      %v1827 = vsel %vm352, %v1727, 0
      %v1830 = vsel %vm352, %v1729, 0
      %v1833 = vsel %vm352, %v1731, 0
      %1835 = vmatprep.subr.bf16.mxu0 0
      %1836 = vmatpush1.bf16.msra.mxu0 %v1793
      %1837 = vmatprep.subr.bf16.mxu0 0
      %1838 = vmatpush1.bf16.msra.mxu0 %v1794
      %1839 = vmatprep.subr.bf16.mxu0 0
      %1840 = vmatpush1.bf16.msra.mxu0 %v1795
      %1841 = vmatprep.subr.bf16.mxu0 0
      %1842 = vmatpush1.bf16.msra.mxu0 %v1796
      %1843 = vmatprep.subr.bf16.mxu0 0
      %1844 = vmatpush1.bf16.msra.mxu0 %v1797
      %1845 = vmatprep.subr.bf16.mxu0 0
      %1846 = vmatpush1.bf16.msra.mxu0 %v1798
      %1847 = vmatprep.subr.bf16.mxu0 0
      %1848 = vmatpush1.bf16.msra.mxu0 %v1799
      %1849 = vmatprep.subr.bf16.mxu0 0
      %1850 = vmatpush1.bf16.msra.mxu0 %v1800
      %1851 = vmatprep.subr.bf16.mxu0 0
      %1852 = vmatpush1.bf16.msra.mxu0 %v1801
      %1853 = vmatprep.subr.bf16.mxu0 0
      %1854 = vmatpush1.bf16.msra.mxu0 0
      %1855 = vmatprep.subr.bf16.mxu0 0
      %1856 = vmatpush1.bf16.msra.mxu0 0
      %1857 = vmatprep.subr.bf16.mxu0 0
      %1858 = vmatpush1.bf16.msra.mxu0 0
      %1859 = vmatprep.subr.bf16.mxu0 0
      %1860 = vmatpush1.bf16.msra.mxu0 0
      %1861 = vmatprep.subr.bf16.mxu0 0
      %1862 = vmatpush1.bf16.msra.mxu0 0
      %1863 = vmatprep.subr.bf16.mxu0 0
      %1864 = vmatpush1.bf16.msra.mxu0 0
      %1865 = vmatprep.subr.bf16.mxu0 0
      %1866 = vmatpush1.bf16.msra.mxu0 0
      %1867 = vmatprep.mubr.bf16.mxu0 %v1812
      %1868 = vmatmul.mubr.bf16.gmra.mrb[0].mxu0 %v1716
      %v1869 = vpop.f32.mrb[0].mxu0
      %v1870 = vadd.f32 %v1755, %v1869
      %v1871 = vpop.f32.mrb[0].mxu0
      %v1872 = vpop.f32.mrb[0].mxu0
      %v1873 = vadd.f32 %v1755, %v1872
      %v1874 = vpop.f32.mrb[0].mxu0
      %1875 = vmatprep.mubr.bf16.mxu0 %v1815
      %1876 = vmatmul.mubr.bf16.gmra.mrb[0].mxu0 %v1718
      %v1877 = vpop.f32.mrb[0].mxu0
      %v1878 = vadd.f32 %v1755, %v1877
      %v1879 = vpop.f32.mrb[0].mxu0
      %v1880 = vpop.f32.mrb[0].mxu0
      %v1881 = vadd.f32 %v1755, %v1880
      %v1882 = vpop.f32.mrb[0].mxu0
      %1883 = vmatprep.mubr.bf16.mxu0 %v1818
      %1884 = vmatmul.mubr.bf16.gmra.mrb[0].mxu0 %v1720
      %v1885 = vpop.f32.mrb[0].mxu0
      %v1886 = vadd.f32 %v1755, %v1885
      %v1887 = vpop.f32.mrb[0].mxu0
      %v1888 = vpop.f32.mrb[0].mxu0
      %v1889 = vadd.f32 %v1755, %v1888
      %v1890 = vpop.f32.mrb[0].mxu0
      %1891 = vmatprep.mubr.bf16.mxu0 %v1821
      %1892 = vmatmul.mubr.bf16.gmra.mrb[0].mxu0 %v1722
      %v1893 = vpop.f32.mrb[0].mxu0
      %v1894 = vadd.f32 %v1755, %v1893
      %v1895 = vpop.f32.mrb[0].mxu0
      %v1896 = vpop.f32.mrb[0].mxu0
      %v1897 = vadd.f32 %v1755, %v1896
      %v1898 = vpop.f32.mrb[0].mxu0
      %1899 = vmatprep.mubr.bf16.mxu0 %v1824
      %1900 = vmatmul.mubr.bf16.gmra.mrb[0].mxu0 %v1724
      %v1901 = vpop.f32.mrb[0].mxu0
      %v1902 = vadd.f32 %v1755, %v1901
      %v1903 = vpop.f32.mrb[0].mxu0
      %v1904 = vpop.f32.mrb[0].mxu0
      %v1905 = vadd.f32 %v1755, %v1904
      %v1906 = vpop.f32.mrb[0].mxu0
      %1907 = vmatprep.mubr.bf16.mxu0 %v1827
      %1908 = vmatmul.mubr.bf16.gmra.mrb[0].mxu0 %v1726
      %v1909 = vpop.f32.mrb[0].mxu0
      %v1910 = vadd.f32 %v1755, %v1909
      %v1911 = vpop.f32.mrb[0].mxu0
      %v1912 = vpop.f32.mrb[0].mxu0
      %v1913 = vadd.f32 %v1755, %v1912
      %v1914 = vpop.f32.mrb[0].mxu0
      %1915 = vmatprep.mubr.bf16.mxu0 %v1830
      %1916 = vmatmul.mubr.bf16.gmra.mrb[0].mxu0 %v1728
      %v1917 = vpop.f32.mrb[0].mxu0
      %v1918 = vadd.f32 %v1755, %v1917
      %v1919 = vpop.f32.mrb[0].mxu0
      %v1920 = vpop.f32.mrb[0].mxu0
      %v1921 = vadd.f32 %v1755, %v1920
      %v1922 = vpop.f32.mrb[0].mxu0
      %1923 = vmatprep.mubr.bf16.mxu0 %v1833
      %1924 = vmatmul.mubr.bf16.gmra.mrb[0].mxu0 %v1730
      %v1925 = vpop.f32.mrb[0].mxu0
      %v1926 = vadd.f32 %v1755, %v1925
      %v1927 = vpop.f32.mrb[0].mxu0
      %v1928 = vpop.f32.mrb[0].mxu0
      %v1929 = vadd.f32 %v1755, %v1928
      %v1930 = vpop.f32.mrb[0].mxu0
      %1931 = vdwg.mxu0
      %v1932 = vmax.f32 %v1870, 0.0
      %v1933 = vmax.f32 %v1873, 0.0
      %v1934 = vmax.f32 %v1878, 0.0
      %v1935 = vmax.f32 %v1881, 0.0
      %v1936 = vmax.f32 %v1886, 0.0
      %v1937 = vmax.f32 %v1889, 0.0
      %v1938 = vmax.f32 %v1894, 0.0
      %v1939 = vmax.f32 %v1897, 0.0
      %v1940 = vmax.f32 %v1902, 0.0
      %v1941 = vmax.f32 %v1905, 0.0
      %v1942 = vmax.f32 %v1910, 0.0
      %v1943 = vmax.f32 %v1913, 0.0
      %v1944 = vmax.f32 %v1918, 0.0
      %v1945 = vmax.f32 %v1921, 0.0
      %v1946 = vmax.f32 %v1926, 0.0
      %v1947 = vmax.f32 %v1929, 0.0
      %vm1948 = vcmask 261120
      %1949 = vst.msk [vmem:[#allocation3] sm:$0xff] %vm1948, 0.0
      %vm1950 = vcmask 254976
      %1951 = vst.msk [vmem:[#allocation3 + $0x8] sm:$0x3] %vm1950, 0.0
      %1952 = vst.msk [vmem:[#allocation3 + $0xa0] sm:$0xff] %vm1948, 0.0
      %1953 = vst.msk [vmem:[#allocation3 + $0xa8] sm:$0x3] %vm1950, 0.0
      %s1954 = scalar_lea.vmem [#allocation3], 144
      %1955 = vst.msk [vmem:[%s1954] sm:$0xff] %vm1948, 0.0
      %1956 = vst.msk [vmem:[%s1954 + $0x8] sm:$0x3] %vm1950, 0.0
      %1957 = vst.msk [vmem:[%s1954 + $0xa0] sm:$0xff] %vm1948, 0.0
      %1958 = vst.msk [vmem:[%s1954 + $0xa8] sm:$0x3] %vm1950, 0.0
      %vm1959 = vcmask 253952
      %1960 = vst.msk [vmem:[#allocation3] sm:$0x1] %vm1959, 0.0
      %1961 = vst.msk [vmem:[#allocation3 + $0x10] sm:$0x1] %vm1959, 0.0
      %1962 = vst.msk [vmem:[#allocation3 + $0x20] sm:$0x1] %vm1959, 0.0
      %1963 = vst.msk [vmem:[#allocation3 + $0x30] sm:$0x1] %vm1959, 0.0
      %1964 = vst.msk [vmem:[#allocation3 + $0x40] sm:$0x1] %vm1959, 0.0
      %1965 = vst.msk [vmem:[#allocation3 + $0x50] sm:$0x1] %vm1959, 0.0
      %1966 = vst.msk [vmem:[#allocation3 + $0x60] sm:$0x1] %vm1959, 0.0
      %1967 = vst.msk [vmem:[#allocation3 + $0x70] sm:$0x1] %vm1959, 0.0
      %1968 = vst.msk [vmem:[#allocation3 + $0x80] sm:$0x1] %vm1959, 0.0
      %1969 = vst.msk [vmem:[#allocation3 + $0x90] sm:$0x1] %vm1959, 0.0
      %1970 = vst.msk [vmem:[#allocation3 + $0xa0] sm:$0x1] %vm1959, 0.0
      %1971 = vst.msk [vmem:[#allocation3 + $0xb0] sm:$0x1] %vm1959, 0.0
      %1972 = vst.msk [vmem:[#allocation3 + $0xc0] sm:$0x1] %vm1959, 0.0
      %1973 = vst.msk [vmem:[#allocation3 + $0xd0] sm:$0x1] %vm1959, 0.0
      %1974 = vst.msk [vmem:[#allocation3 + $0xe0] sm:$0x1] %vm1959, 0.0
      %1975 = vst.msk [vmem:[#allocation3 + $0xf0] sm:$0x1] %vm1959, 0.0
      %1976 = vst.msk [vmem:[#allocation3 + $0x100] sm:$0x1] %vm1959, 0.0
      %1977 = vst.msk [vmem:[#allocation3 + $0x110] sm:$0x1] %vm1959, 0.0
      %1978 = vst.msk [vmem:[#allocation3 + $0x120] sm:$0x1] %vm1959, 0.0
      %1979 = vst.msk [vmem:[#allocation3 + $0x130] sm:$0x1] %vm1959, 0.0
      %1980 = vst.msk [vmem:[#allocation3 + $0x9] sm:$0x1] %vm1959, 0.0
      %1981 = vst.msk [vmem:[#allocation3 + $0x19] sm:$0x1] %vm1959, 0.0
      %1982 = vst.msk [vmem:[#allocation3 + $0x29] sm:$0x1] %vm1959, 0.0
      %1983 = vst.msk [vmem:[#allocation3 + $0x39] sm:$0x1] %vm1959, 0.0
      %1984 = vst.msk [vmem:[#allocation3 + $0x49] sm:$0x1] %vm1959, 0.0
      %1985 = vst.msk [vmem:[#allocation3 + $0x59] sm:$0x1] %vm1959, 0.0
      %1986 = vst.msk [vmem:[#allocation3 + $0x69] sm:$0x1] %vm1959, 0.0
      %1987 = vst.msk [vmem:[#allocation3 + $0x79] sm:$0x1] %vm1959, 0.0
      %1988 = vst.msk [vmem:[#allocation3 + $0x89] sm:$0x1] %vm1959, 0.0
      %1989 = vst.msk [vmem:[#allocation3 + $0x99] sm:$0x1] %vm1959, 0.0
      %1990 = vst.msk [vmem:[#allocation3 + $0xa9] sm:$0x1] %vm1959, 0.0
      %1991 = vst.msk [vmem:[#allocation3 + $0xb9] sm:$0x1] %vm1959, 0.0
      %1992 = vst.msk [vmem:[#allocation3 + $0xc9] sm:$0x1] %vm1959, 0.0
      %1993 = vst.msk [vmem:[#allocation3 + $0xd9] sm:$0x1] %vm1959, 0.0
      %1994 = vst.msk [vmem:[#allocation3 + $0xe9] sm:$0x1] %vm1959, 0.0
      %1995 = vst.msk [vmem:[#allocation3 + $0xf9] sm:$0x1] %vm1959, 0.0
      %1996 = vst.msk [vmem:[#allocation3 + $0x109] sm:$0x1] %vm1959, 0.0
      %1997 = vst.msk [vmem:[#allocation3 + $0x119] sm:$0x1] %vm1959, 0.0
      %1998 = vst.msk [vmem:[#allocation3 + $0x129] sm:$0x1] %vm1959, 0.0
      %1999 = vst.msk [vmem:[#allocation3 + $0x139] sm:$0x1] %vm1959, 0.0
      %s2000 = scalar_lea.vmem [#allocation3], 16
      %2001 = vst.msk [vmem:[%s2000 + $0x1] sm:$0xff] %vm1948, %v1932
      %2002 = vst.msk [vmem:[%s2000 + $0x11] sm:$0xff] %vm1948, %v1933
      %2003 = vst.msk [vmem:[%s2000 + $0x21] sm:$0xff] %vm1948, %v1934
      %2004 = vst.msk [vmem:[%s2000 + $0x31] sm:$0xff] %vm1948, %v1935
      %2005 = vst.msk [vmem:[%s2000 + $0x41] sm:$0xff] %vm1948, %v1936
      %2006 = vst.msk [vmem:[%s2000 + $0x51] sm:$0xff] %vm1948, %v1937
      %2007 = vst.msk [vmem:[%s2000 + $0x61] sm:$0xff] %vm1948, %v1938
      %2008 = vst.msk [vmem:[%s2000 + $0x71] sm:$0xff] %vm1948, %v1939
      %2009 = vst.msk [vmem:[%s2000 + $0xa1] sm:$0xff] %vm1948, %v1940
      %2010 = vst.msk [vmem:[%s2000 + $0xb1] sm:$0xff] %vm1948, %v1941
      %2011 = vst.msk [vmem:[%s2000 + $0xc1] sm:$0xff] %vm1948, %v1942
      %2012 = vst.msk [vmem:[%s2000 + $0xd1] sm:$0xff] %vm1948, %v1943
      %2013 = vst.msk [vmem:[%s2000 + $0xe1] sm:$0xff] %vm1948, %v1944
      %2014 = vst.msk [vmem:[%s2000 + $0xf1] sm:$0xff] %vm1948, %v1945
      %2015 = vst.msk [vmem:[%s2000 + $0x101] sm:$0xff] %vm1948, %v1946
      %2016 = vst.msk [vmem:[%s2000 + $0x111] sm:$0xff] %vm1948, %v1947
      %v2017 = vld [vmem:[#allocation3] sm:$0xff]
      %v2018 = vld [vmem:[#allocation3 + $0x10] sm:$0xff]
      %v2019 = vld [vmem:[#allocation3 + $0x20] sm:$0xff]
      %v2020 = vld [vmem:[#allocation3 + $0x30] sm:$0xff]
      %v2021 = vld [vmem:[#allocation3 + $0x40] sm:$0xff]
      %v2022 = vld [vmem:[#allocation3 + $0x50] sm:$0xff]
      %v2023 = vld [vmem:[#allocation3 + $0x60] sm:$0xff]
      %v2024 = vld [vmem:[#allocation3 + $0x70] sm:$0xff]
      %v2025 = vld [vmem:[#allocation3 + $0xa0] sm:$0xff]
      %v2026 = vld [vmem:[#allocation3 + $0xb0] sm:$0xff]
      %v2027 = vld [vmem:[#allocation3 + $0xc0] sm:$0xff]
      %v2028 = vld [vmem:[#allocation3 + $0xd0] sm:$0xff]
      %v2029 = vld [vmem:[#allocation3 + $0xe0] sm:$0xff]
      %v2030 = vld [vmem:[#allocation3 + $0xf0] sm:$0xff]
      %v2031 = vld [vmem:[#allocation3 + $0x100] sm:$0xff]
      %v2032 = vld [vmem:[#allocation3 + $0x110] sm:$0xff]
      %v2033 = vpack.c.bf16 %v2018, %v2017
      %v2034 = vpack.c.bf16 %v2020, %v2019
      %v2035 = vpack.c.bf16 %v2022, %v2021
      %v2036 = vpack.c.bf16 %v2024, %v2023
      %v2037 = vpack.c.bf16 %v2026, %v2025
      %v2038 = vpack.c.bf16 %v2028, %v2027
      %v2039 = vpack.c.bf16 %v2030, %v2029
      %v2040 = vpack.c.bf16 %v2032, %v2031
      %2041 = vst.msk [vmem:[#allocation4] sm:$0xff] %vm1948, %v2033
      %2042 = vst.msk [vmem:[#allocation4 + $0x18] sm:$0xff] %vm1948, %v2034
      %2043 = vst.msk [vmem:[#allocation4 + $0x30] sm:$0xff] %vm1948, %v2035
      %2044 = vst.msk [vmem:[#allocation4 + $0x48] sm:$0xff] %vm1948, %v2036
      %2045 = vst.msk [vmem:[#allocation4 + $0x60] sm:$0xff] %vm1948, %v2037
      %2046 = vst.msk [vmem:[#allocation4 + $0x78] sm:$0xff] %vm1948, %v2038
      %2047 = vst.msk [vmem:[#allocation4 + $0x90] sm:$0xff] %vm1948, %v2039
      %2048 = vst.msk [vmem:[#allocation4 + $0xa8] sm:$0xff] %vm1948, %v2040
      %v2049 = vld [vmem:[#allocation3 + $0x1] sm:$0xff]
      %v2050 = vld [vmem:[#allocation3 + $0x11] sm:$0xff]
      %v2051 = vld [vmem:[#allocation3 + $0x21] sm:$0xff]
      %v2052 = vld [vmem:[#allocation3 + $0x31] sm:$0xff]
      %v2053 = vld [vmem:[#allocation3 + $0x41] sm:$0xff]
      %v2054 = vld [vmem:[#allocation3 + $0x51] sm:$0xff]
      %v2055 = vld [vmem:[#allocation3 + $0x61] sm:$0xff]
      %v2056 = vld [vmem:[#allocation3 + $0x71] sm:$0xff]
      %v2057 = vld [vmem:[#allocation3 + $0xa1] sm:$0xff]
      %v2058 = vld [vmem:[#allocation3 + $0xb1] sm:$0xff]
      %v2059 = vld [vmem:[#allocation3 + $0xc1] sm:$0xff]
      %v2060 = vld [vmem:[#allocation3 + $0xd1] sm:$0xff]
      %v2061 = vld [vmem:[#allocation3 + $0xe1] sm:$0xff]
      %v2062 = vld [vmem:[#allocation3 + $0xf1] sm:$0xff]
      %v2063 = vld [vmem:[#allocation3 + $0x101] sm:$0xff]
      %v2064 = vld [vmem:[#allocation3 + $0x111] sm:$0xff]
      %v2065 = vpack.c.bf16 %v2050, %v2049
      %v2066 = vpack.c.bf16 %v2052, %v2051
      %v2067 = vpack.c.bf16 %v2054, %v2053
      %v2068 = vpack.c.bf16 %v2056, %v2055
      %v2069 = vpack.c.bf16 %v2058, %v2057
      %v2070 = vpack.c.bf16 %v2060, %v2059
      %v2071 = vpack.c.bf16 %v2062, %v2061
      %v2072 = vpack.c.bf16 %v2064, %v2063
      %2081 = vrot.lane.b32.xlu0 %v2065, 32
      %v2082 = vpop.permute.xlu0 %2081
      %2083 = vrot.lane.b32.xlu0 %v2066, 32
      %v2084 = vpop.permute.xlu0 %2083
      %2085 = vrot.lane.b32.xlu0 %v2067, 32
      %v2086 = vpop.permute.xlu0 %2085
      %2087 = vrot.lane.b32.xlu0 %v2068, 32
      %v2088 = vpop.permute.xlu0 %2087
      %2089 = vrot.lane.b32.xlu0 %v2069, 32
      %v2090 = vpop.permute.xlu0 %2089
      %2091 = vrot.lane.b32.xlu0 %v2070, 32
      %v2092 = vpop.permute.xlu0 %2091
      %2093 = vrot.lane.b32.xlu0 %v2071, 32
      %v2094 = vpop.permute.xlu0 %2093
      %2095 = vrot.lane.b32.xlu0 %v2072, 32
      %v2096 = vpop.permute.xlu0 %2095
      %vm2105 = vcmask 523520
      %2106 = vst.msk [vmem:[#allocation4] sm:$0xff] %vm2105, %v2082
      %2107 = vst.msk [vmem:[#allocation4 + $0x18] sm:$0xff] %vm2105, %v2084
      %2108 = vst.msk [vmem:[#allocation4 + $0x30] sm:$0xff] %vm2105, %v2086
      %2109 = vst.msk [vmem:[#allocation4 + $0x48] sm:$0xff] %vm2105, %v2088
      %2110 = vst.msk [vmem:[#allocation4 + $0x60] sm:$0xff] %vm2105, %v2090
      %2111 = vst.msk [vmem:[#allocation4 + $0x78] sm:$0xff] %vm2105, %v2092
      %2112 = vst.msk [vmem:[#allocation4 + $0x90] sm:$0xff] %vm2105, %v2094
      %2113 = vst.msk [vmem:[#allocation4 + $0xa8] sm:$0xff] %vm2105, %v2096
      %v2114 = vld [vmem:[#allocation3 + $0x2] sm:$0xff]
      %v2115 = vld [vmem:[#allocation3 + $0x12] sm:$0xff]
      %v2116 = vld [vmem:[#allocation3 + $0x22] sm:$0xff]
      %v2117 = vld [vmem:[#allocation3 + $0x32] sm:$0xff]
      %v2118 = vld [vmem:[#allocation3 + $0x42] sm:$0xff]
      %v2119 = vld [vmem:[#allocation3 + $0x52] sm:$0xff]
      %v2120 = vld [vmem:[#allocation3 + $0x62] sm:$0xff]
      %v2121 = vld [vmem:[#allocation3 + $0x72] sm:$0xff]
      %v2122 = vld [vmem:[#allocation3 + $0xa2] sm:$0xff]
      %v2123 = vld [vmem:[#allocation3 + $0xb2] sm:$0xff]
      %v2124 = vld [vmem:[#allocation3 + $0xc2] sm:$0xff]
      %v2125 = vld [vmem:[#allocation3 + $0xd2] sm:$0xff]
      %v2126 = vld [vmem:[#allocation3 + $0xe2] sm:$0xff]
      %v2127 = vld [vmem:[#allocation3 + $0xf2] sm:$0xff]
      %v2128 = vld [vmem:[#allocation3 + $0x102] sm:$0xff]
      %v2129 = vld [vmem:[#allocation3 + $0x112] sm:$0xff]
      %v2130 = vpack.c.bf16 %v2115, %v2114
      %v2131 = vpack.c.bf16 %v2117, %v2116
      %v2132 = vpack.c.bf16 %v2119, %v2118
      %v2133 = vpack.c.bf16 %v2121, %v2120
      %v2134 = vpack.c.bf16 %v2123, %v2122
      %v2135 = vpack.c.bf16 %v2125, %v2124
      %v2136 = vpack.c.bf16 %v2127, %v2126
      %v2137 = vpack.c.bf16 %v2129, %v2128
      %2146 = vrot.lane.b32.xlu0 %v2130, 64
      %v2147 = vpop.permute.xlu0 %2146
      %2148 = vrot.lane.b32.xlu0 %v2131, 64
      %v2149 = vpop.permute.xlu0 %2148
      %2150 = vrot.lane.b32.xlu0 %v2132, 64
      %v2151 = vpop.permute.xlu0 %2150
      %2152 = vrot.lane.b32.xlu0 %v2133, 64
      %v2153 = vpop.permute.xlu0 %2152
      %2154 = vrot.lane.b32.xlu0 %v2134, 64
      %v2155 = vpop.permute.xlu0 %2154
      %2156 = vrot.lane.b32.xlu0 %v2135, 64
      %v2157 = vpop.permute.xlu0 %2156
      %2158 = vrot.lane.b32.xlu0 %v2136, 64
      %v2159 = vpop.permute.xlu0 %2158
      %2160 = vrot.lane.b32.xlu0 %v2137, 64
      %v2161 = vpop.permute.xlu0 %2160
      %vm2170 = vcmask 785920
      %2171 = vst.msk [vmem:[#allocation4] sm:$0xff] %vm2170, %v2147
      %2172 = vst.msk [vmem:[#allocation4 + $0x18] sm:$0xff] %vm2170, %v2149
      %2173 = vst.msk [vmem:[#allocation4 + $0x30] sm:$0xff] %vm2170, %v2151
      %2174 = vst.msk [vmem:[#allocation4 + $0x48] sm:$0xff] %vm2170, %v2153
      %2175 = vst.msk [vmem:[#allocation4 + $0x60] sm:$0xff] %vm2170, %v2155
      %2176 = vst.msk [vmem:[#allocation4 + $0x78] sm:$0xff] %vm2170, %v2157
      %2177 = vst.msk [vmem:[#allocation4 + $0x90] sm:$0xff] %vm2170, %v2159
      %2178 = vst.msk [vmem:[#allocation4 + $0xa8] sm:$0xff] %vm2170, %v2161
      %v2179 = vld [vmem:[%s2000] sm:$0xff]
      %v2180 = vld [vmem:[%s2000 + $0x10] sm:$0xff]
      %v2181 = vld [vmem:[%s2000 + $0x20] sm:$0xff]
      %v2182 = vld [vmem:[%s2000 + $0x30] sm:$0xff]
      %v2183 = vld [vmem:[%s2000 + $0x40] sm:$0xff]
      %v2184 = vld [vmem:[%s2000 + $0x50] sm:$0xff]
      %v2185 = vld [vmem:[%s2000 + $0x60] sm:$0xff]
      %v2186 = vld [vmem:[%s2000 + $0x70] sm:$0xff]
      %v2187 = vld [vmem:[%s2000 + $0xa0] sm:$0xff]
      %v2188 = vld [vmem:[%s2000 + $0xb0] sm:$0xff]
      %v2189 = vld [vmem:[%s2000 + $0xc0] sm:$0xff]
      %v2190 = vld [vmem:[%s2000 + $0xd0] sm:$0xff]
      %v2191 = vld [vmem:[%s2000 + $0xe0] sm:$0xff]
      %v2192 = vld [vmem:[%s2000 + $0xf0] sm:$0xff]
      %v2193 = vld [vmem:[%s2000 + $0x100] sm:$0xff]
      %v2194 = vld [vmem:[%s2000 + $0x110] sm:$0xff]
      %v2195 = vpack.c.bf16 %v2180, %v2179
      %v2196 = vpack.c.bf16 %v2182, %v2181
      %v2197 = vpack.c.bf16 %v2184, %v2183
      %v2198 = vpack.c.bf16 %v2186, %v2185
      %v2199 = vpack.c.bf16 %v2188, %v2187
      %v2200 = vpack.c.bf16 %v2190, %v2189
      %v2201 = vpack.c.bf16 %v2192, %v2191
      %v2202 = vpack.c.bf16 %v2194, %v2193
      %2211 = vrot.lane.b32.xlu0 %v2195, 96
      %v2212 = vpop.permute.xlu0 %2211
      %2213 = vrot.lane.b32.xlu0 %v2196, 96
      %v2214 = vpop.permute.xlu0 %2213
      %2215 = vrot.lane.b32.xlu0 %v2197, 96
      %v2216 = vpop.permute.xlu0 %2215
      %2217 = vrot.lane.b32.xlu0 %v2198, 96
      %v2218 = vpop.permute.xlu0 %2217
      %2219 = vrot.lane.b32.xlu0 %v2199, 96
      %v2220 = vpop.permute.xlu0 %2219
      %2221 = vrot.lane.b32.xlu0 %v2200, 96
      %v2222 = vpop.permute.xlu0 %2221
      %2223 = vrot.lane.b32.xlu0 %v2201, 96
      %v2224 = vpop.permute.xlu0 %2223
      %2225 = vrot.lane.b32.xlu0 %v2202, 96
      %v2226 = vpop.permute.xlu0 %2225
      %vm2235 = vcmask 1048320
      %2236 = vst.msk [vmem:[#allocation4] sm:$0xff] %vm2235, %v2212
      %2237 = vst.msk [vmem:[#allocation4 + $0x18] sm:$0xff] %vm2235, %v2214
      %2238 = vst.msk [vmem:[#allocation4 + $0x30] sm:$0xff] %vm2235, %v2216
      %2239 = vst.msk [vmem:[#allocation4 + $0x48] sm:$0xff] %vm2235, %v2218
      %2240 = vst.msk [vmem:[#allocation4 + $0x60] sm:$0xff] %vm2235, %v2220
      %2241 = vst.msk [vmem:[#allocation4 + $0x78] sm:$0xff] %vm2235, %v2222
      %2242 = vst.msk [vmem:[#allocation4 + $0x90] sm:$0xff] %vm2235, %v2224
      %2243 = vst.msk [vmem:[#allocation4 + $0xa8] sm:$0xff] %vm2235, %v2226
      %v2244 = vld [vmem:[%s2000 + $0x1] sm:$0xff]
      %v2245 = vld [vmem:[%s2000 + $0x11] sm:$0xff]
      %v2246 = vld [vmem:[%s2000 + $0x21] sm:$0xff]
      %v2247 = vld [vmem:[%s2000 + $0x31] sm:$0xff]
      %v2248 = vld [vmem:[%s2000 + $0x41] sm:$0xff]
      %v2249 = vld [vmem:[%s2000 + $0x51] sm:$0xff]
      %v2250 = vld [vmem:[%s2000 + $0x61] sm:$0xff]
      %v2251 = vld [vmem:[%s2000 + $0x71] sm:$0xff]
      %v2252 = vld [vmem:[%s2000 + $0xa1] sm:$0xff]
      %v2253 = vld [vmem:[%s2000 + $0xb1] sm:$0xff]
      %v2254 = vld [vmem:[%s2000 + $0xc1] sm:$0xff]
      %v2255 = vld [vmem:[%s2000 + $0xd1] sm:$0xff]
      %v2256 = vld [vmem:[%s2000 + $0xe1] sm:$0xff]
      %v2257 = vld [vmem:[%s2000 + $0xf1] sm:$0xff]
      %v2258 = vld [vmem:[%s2000 + $0x101] sm:$0xff]
      %v2259 = vld [vmem:[%s2000 + $0x111] sm:$0xff]
      %v2260 = vpack.c.bf16 %v2245, %v2244
      %v2261 = vpack.c.bf16 %v2247, %v2246
      %v2262 = vpack.c.bf16 %v2249, %v2248
      %v2263 = vpack.c.bf16 %v2251, %v2250
      %v2264 = vpack.c.bf16 %v2253, %v2252
      %v2265 = vpack.c.bf16 %v2255, %v2254
      %v2266 = vpack.c.bf16 %v2257, %v2256
      %v2267 = vpack.c.bf16 %v2259, %v2258
      %2268 = vst.msk [vmem:[#allocation4 + $0x8] sm:$0xff] %vm1948, %v2260
      %2269 = vst.msk [vmem:[#allocation4 + $0x20] sm:$0xff] %vm1948, %v2261
      %2270 = vst.msk [vmem:[#allocation4 + $0x38] sm:$0xff] %vm1948, %v2262
      %2271 = vst.msk [vmem:[#allocation4 + $0x50] sm:$0xff] %vm1948, %v2263
      %2272 = vst.msk [vmem:[#allocation4 + $0x68] sm:$0xff] %vm1948, %v2264
      %2273 = vst.msk [vmem:[#allocation4 + $0x80] sm:$0xff] %vm1948, %v2265
      %2274 = vst.msk [vmem:[#allocation4 + $0x98] sm:$0xff] %vm1948, %v2266
      %2275 = vst.msk [vmem:[#allocation4 + $0xb0] sm:$0xff] %vm1948, %v2267
      %v2276 = vld [vmem:[%s2000 + $0x2] sm:$0xff]
      %v2277 = vld [vmem:[%s2000 + $0x12] sm:$0xff]
      %v2278 = vld [vmem:[%s2000 + $0x22] sm:$0xff]
      %v2279 = vld [vmem:[%s2000 + $0x32] sm:$0xff]
      %v2280 = vld [vmem:[%s2000 + $0x42] sm:$0xff]
      %v2281 = vld [vmem:[%s2000 + $0x52] sm:$0xff]
      %v2282 = vld [vmem:[%s2000 + $0x62] sm:$0xff]
      %v2283 = vld [vmem:[%s2000 + $0x72] sm:$0xff]
      %v2284 = vld [vmem:[%s2000 + $0xa2] sm:$0xff]
      %v2285 = vld [vmem:[%s2000 + $0xb2] sm:$0xff]
      %v2286 = vld [vmem:[%s2000 + $0xc2] sm:$0xff]
      %v2287 = vld [vmem:[%s2000 + $0xd2] sm:$0xff]
      %v2288 = vld [vmem:[%s2000 + $0xe2] sm:$0xff]
      %v2289 = vld [vmem:[%s2000 + $0xf2] sm:$0xff]
      %v2290 = vld [vmem:[%s2000 + $0x102] sm:$0xff]
      %v2291 = vld [vmem:[%s2000 + $0x112] sm:$0xff]
      %v2292 = vpack.c.bf16 %v2277, %v2276
      %v2293 = vpack.c.bf16 %v2279, %v2278
      %v2294 = vpack.c.bf16 %v2281, %v2280
      %v2295 = vpack.c.bf16 %v2283, %v2282
      %v2296 = vpack.c.bf16 %v2285, %v2284
      %v2297 = vpack.c.bf16 %v2287, %v2286
      %v2298 = vpack.c.bf16 %v2289, %v2288
      %v2299 = vpack.c.bf16 %v2291, %v2290
      %2308 = vrot.lane.b32.xlu0 %v2292, 32
      %v2309 = vpop.permute.xlu0 %2308
      %2310 = vrot.lane.b32.xlu0 %v2293, 32
      %v2311 = vpop.permute.xlu0 %2310
      %2312 = vrot.lane.b32.xlu0 %v2294, 32
      %v2313 = vpop.permute.xlu0 %2312
      %2314 = vrot.lane.b32.xlu0 %v2295, 32
      %v2315 = vpop.permute.xlu0 %2314
      %2316 = vrot.lane.b32.xlu0 %v2296, 32
      %v2317 = vpop.permute.xlu0 %2316
      %2318 = vrot.lane.b32.xlu0 %v2297, 32
      %v2319 = vpop.permute.xlu0 %2318
      %2320 = vrot.lane.b32.xlu0 %v2298, 32
      %v2321 = vpop.permute.xlu0 %2320
      %2322 = vrot.lane.b32.xlu0 %v2299, 32
      %v2323 = vpop.permute.xlu0 %2322
      %2332 = vst.msk [vmem:[#allocation4 + $0x8] sm:$0xff] %vm2105, %v2309
      %2333 = vst.msk [vmem:[#allocation4 + $0x20] sm:$0xff] %vm2105, %v2311
      %2334 = vst.msk [vmem:[#allocation4 + $0x38] sm:$0xff] %vm2105, %v2313
      %2335 = vst.msk [vmem:[#allocation4 + $0x50] sm:$0xff] %vm2105, %v2315
      %2336 = vst.msk [vmem:[#allocation4 + $0x68] sm:$0xff] %vm2105, %v2317
      %2337 = vst.msk [vmem:[#allocation4 + $0x80] sm:$0xff] %vm2105, %v2319
      %2338 = vst.msk [vmem:[#allocation4 + $0x98] sm:$0xff] %vm2105, %v2321
      %2339 = vst.msk [vmem:[#allocation4 + $0xb0] sm:$0xff] %vm2105, %v2323
      %s2340 = scalar_lea.vmem [#allocation3], 32
      %v2341 = vld [vmem:[%s2340] sm:$0xff]
      %v2342 = vld [vmem:[%s2340 + $0x10] sm:$0xff]
      %v2343 = vld [vmem:[%s2340 + $0x20] sm:$0xff]
      %v2344 = vld [vmem:[%s2340 + $0x30] sm:$0xff]
      %v2345 = vld [vmem:[%s2340 + $0x40] sm:$0xff]
      %v2346 = vld [vmem:[%s2340 + $0x50] sm:$0xff]
      %v2347 = vld [vmem:[%s2340 + $0x60] sm:$0xff]
      %v2348 = vld [vmem:[%s2340 + $0x70] sm:$0xff]
      %v2349 = vld [vmem:[%s2340 + $0xa0] sm:$0xff]
      %v2350 = vld [vmem:[%s2340 + $0xb0] sm:$0xff]
      %v2351 = vld [vmem:[%s2340 + $0xc0] sm:$0xff]
      %v2352 = vld [vmem:[%s2340 + $0xd0] sm:$0xff]
      %v2353 = vld [vmem:[%s2340 + $0xe0] sm:$0xff]
      %v2354 = vld [vmem:[%s2340 + $0xf0] sm:$0xff]
      %v2355 = vld [vmem:[%s2340 + $0x100] sm:$0xff]
      %v2356 = vld [vmem:[%s2340 + $0x110] sm:$0xff]
      %v2357 = vpack.c.bf16 %v2342, %v2341
      %v2358 = vpack.c.bf16 %v2344, %v2343
      %v2359 = vpack.c.bf16 %v2346, %v2345
      %v2360 = vpack.c.bf16 %v2348, %v2347
      %v2361 = vpack.c.bf16 %v2350, %v2349
      %v2362 = vpack.c.bf16 %v2352, %v2351
      %v2363 = vpack.c.bf16 %v2354, %v2353
      %v2364 = vpack.c.bf16 %v2356, %v2355
      %2373 = vrot.lane.b32.xlu0 %v2357, 64
      %v2374 = vpop.permute.xlu0 %2373
      %2375 = vrot.lane.b32.xlu0 %v2358, 64
      %v2376 = vpop.permute.xlu0 %2375
      %2377 = vrot.lane.b32.xlu0 %v2359, 64
      %v2378 = vpop.permute.xlu0 %2377
      %2379 = vrot.lane.b32.xlu0 %v2360, 64
      %v2380 = vpop.permute.xlu0 %2379
      %2381 = vrot.lane.b32.xlu0 %v2361, 64
      %v2382 = vpop.permute.xlu0 %2381
      %2383 = vrot.lane.b32.xlu0 %v2362, 64
      %v2384 = vpop.permute.xlu0 %2383
      %2385 = vrot.lane.b32.xlu0 %v2363, 64
      %v2386 = vpop.permute.xlu0 %2385
      %2387 = vrot.lane.b32.xlu0 %v2364, 64
      %v2388 = vpop.permute.xlu0 %2387
      %2397 = vst.msk [vmem:[#allocation4 + $0x8] sm:$0xff] %vm2170, %v2374
      %2398 = vst.msk [vmem:[#allocation4 + $0x20] sm:$0xff] %vm2170, %v2376
      %2399 = vst.msk [vmem:[#allocation4 + $0x38] sm:$0xff] %vm2170, %v2378
      %2400 = vst.msk [vmem:[#allocation4 + $0x50] sm:$0xff] %vm2170, %v2380
      %2401 = vst.msk [vmem:[#allocation4 + $0x68] sm:$0xff] %vm2170, %v2382
      %2402 = vst.msk [vmem:[#allocation4 + $0x80] sm:$0xff] %vm2170, %v2384
      %2403 = vst.msk [vmem:[#allocation4 + $0x98] sm:$0xff] %vm2170, %v2386
      %2404 = vst.msk [vmem:[#allocation4 + $0xb0] sm:$0xff] %vm2170, %v2388
      %v2405 = vld [vmem:[%s2340 + $0x1] sm:$0xff]
      %v2406 = vld [vmem:[%s2340 + $0x11] sm:$0xff]
      %v2407 = vld [vmem:[%s2340 + $0x21] sm:$0xff]
      %v2408 = vld [vmem:[%s2340 + $0x31] sm:$0xff]
      %v2409 = vld [vmem:[%s2340 + $0x41] sm:$0xff]
      %v2410 = vld [vmem:[%s2340 + $0x51] sm:$0xff]
      %v2411 = vld [vmem:[%s2340 + $0x61] sm:$0xff]
      %v2412 = vld [vmem:[%s2340 + $0x71] sm:$0xff]
      %v2413 = vld [vmem:[%s2340 + $0xa1] sm:$0xff]
      %v2414 = vld [vmem:[%s2340 + $0xb1] sm:$0xff]
      %v2415 = vld [vmem:[%s2340 + $0xc1] sm:$0xff]
      %v2416 = vld [vmem:[%s2340 + $0xd1] sm:$0xff]
      %v2417 = vld [vmem:[%s2340 + $0xe1] sm:$0xff]
      %v2418 = vld [vmem:[%s2340 + $0xf1] sm:$0xff]
      %v2419 = vld [vmem:[%s2340 + $0x101] sm:$0xff]
      %v2420 = vld [vmem:[%s2340 + $0x111] sm:$0xff]
      %v2421 = vpack.c.bf16 %v2406, %v2405
      %v2422 = vpack.c.bf16 %v2408, %v2407
      %v2423 = vpack.c.bf16 %v2410, %v2409
      %v2424 = vpack.c.bf16 %v2412, %v2411
      %v2425 = vpack.c.bf16 %v2414, %v2413
      %v2426 = vpack.c.bf16 %v2416, %v2415
      %v2427 = vpack.c.bf16 %v2418, %v2417
      %v2428 = vpack.c.bf16 %v2420, %v2419
      %2437 = vrot.lane.b32.xlu0 %v2421, 96
      %v2438 = vpop.permute.xlu0 %2437
      %2439 = vrot.lane.b32.xlu0 %v2422, 96
      %v2440 = vpop.permute.xlu0 %2439
      %2441 = vrot.lane.b32.xlu0 %v2423, 96
      %v2442 = vpop.permute.xlu0 %2441
      %2443 = vrot.lane.b32.xlu0 %v2424, 96
      %v2444 = vpop.permute.xlu0 %2443
      %2445 = vrot.lane.b32.xlu0 %v2425, 96
      %v2446 = vpop.permute.xlu0 %2445
      %2447 = vrot.lane.b32.xlu0 %v2426, 96
      %v2448 = vpop.permute.xlu0 %2447
      %2449 = vrot.lane.b32.xlu0 %v2427, 96
      %v2450 = vpop.permute.xlu0 %2449
      %2451 = vrot.lane.b32.xlu0 %v2428, 96
      %v2452 = vpop.permute.xlu0 %2451
      %2461 = vst.msk [vmem:[#allocation4 + $0x8] sm:$0xff] %vm2235, %v2438
      %2462 = vst.msk [vmem:[#allocation4 + $0x20] sm:$0xff] %vm2235, %v2440
      %2463 = vst.msk [vmem:[#allocation4 + $0x38] sm:$0xff] %vm2235, %v2442
      %2464 = vst.msk [vmem:[#allocation4 + $0x50] sm:$0xff] %vm2235, %v2444
      %2465 = vst.msk [vmem:[#allocation4 + $0x68] sm:$0xff] %vm2235, %v2446
      %2466 = vst.msk [vmem:[#allocation4 + $0x80] sm:$0xff] %vm2235, %v2448
      %2467 = vst.msk [vmem:[#allocation4 + $0x98] sm:$0xff] %vm2235, %v2450
      %2468 = vst.msk [vmem:[#allocation4 + $0xb0] sm:$0xff] %vm2235, %v2452
      %v2469 = vld [vmem:[%s2340 + $0x2] sm:$0xff]
      %v2470 = vld [vmem:[%s2340 + $0x12] sm:$0xff]
      %v2471 = vld [vmem:[%s2340 + $0x22] sm:$0xff]
      %v2472 = vld [vmem:[%s2340 + $0x32] sm:$0xff]
      %v2473 = vld [vmem:[%s2340 + $0x42] sm:$0xff]
      %v2474 = vld [vmem:[%s2340 + $0x52] sm:$0xff]
      %v2475 = vld [vmem:[%s2340 + $0x62] sm:$0xff]
      %v2476 = vld [vmem:[%s2340 + $0x72] sm:$0xff]
      %v2477 = vld [vmem:[%s2340 + $0xa2] sm:$0xff]
      %v2478 = vld [vmem:[%s2340 + $0xb2] sm:$0xff]
      %v2479 = vld [vmem:[%s2340 + $0xc2] sm:$0xff]
      %v2480 = vld [vmem:[%s2340 + $0xd2] sm:$0xff]
      %v2481 = vld [vmem:[%s2340 + $0xe2] sm:$0xff]
      %v2482 = vld [vmem:[%s2340 + $0xf2] sm:$0xff]
      %v2483 = vld [vmem:[%s2340 + $0x102] sm:$0xff]
      %v2484 = vld [vmem:[%s2340 + $0x112] sm:$0xff]
      %v2485 = vpack.c.bf16 %v2470, %v2469
      %v2486 = vpack.c.bf16 %v2472, %v2471
      %v2487 = vpack.c.bf16 %v2474, %v2473
      %v2488 = vpack.c.bf16 %v2476, %v2475
      %v2489 = vpack.c.bf16 %v2478, %v2477
      %v2490 = vpack.c.bf16 %v2480, %v2479
      %v2491 = vpack.c.bf16 %v2482, %v2481
      %v2492 = vpack.c.bf16 %v2484, %v2483
      %2493 = vst.msk [vmem:[#allocation4 + $0x10] sm:$0xff] %vm1948, %v2485
      %2494 = vst.msk [vmem:[#allocation4 + $0x28] sm:$0xff] %vm1948, %v2486
      %2495 = vst.msk [vmem:[#allocation4 + $0x40] sm:$0xff] %vm1948, %v2487
      %2496 = vst.msk [vmem:[#allocation4 + $0x58] sm:$0xff] %vm1948, %v2488
      %2497 = vst.msk [vmem:[#allocation4 + $0x70] sm:$0xff] %vm1948, %v2489
      %2498 = vst.msk [vmem:[#allocation4 + $0x88] sm:$0xff] %vm1948, %v2490
      %2499 = vst.msk [vmem:[#allocation4 + $0xa0] sm:$0xff] %vm1948, %v2491
      %2500 = vst.msk [vmem:[#allocation4 + $0xb8] sm:$0xff] %vm1948, %v2492
      %v2501 = vld [vmem:[#allocation4] sm:$0xff]
      %v2502 = vld [vmem:[#allocation4 + $0x8] sm:$0xff]
      %v2503 = vld [vmem:[#allocation4 + $0x10] sm:$0xff]
      %v2504 = vld [vmem:[#allocation4 + $0x18] sm:$0xff]
      %v2505 = vld [vmem:[#allocation4 + $0x20] sm:$0xff]
      %v2506 = vld [vmem:[#allocation4 + $0x28] sm:$0xff]
      %v2507 = vld [vmem:[#allocation4 + $0x30] sm:$0xff]
      %v2508 = vld [vmem:[#allocation4 + $0x38] sm:$0xff]
      %v2509 = vld [vmem:[#allocation4 + $0x40] sm:$0xff]
      %v2510 = vld [vmem:[#allocation4 + $0x48] sm:$0xff]
      %v2511 = vld [vmem:[#allocation4 + $0x50] sm:$0xff]
      %v2512 = vld [vmem:[#allocation4 + $0x58] sm:$0xff]
      %v2513 = vld [vmem:[#allocation4 + $0x60] sm:$0xff]
      %v2514 = vld [vmem:[#allocation4 + $0x68] sm:$0xff]
      %v2515 = vld [vmem:[#allocation4 + $0x70] sm:$0xff]
      %v2516 = vld [vmem:[#allocation4 + $0x78] sm:$0xff]
      %v2517 = vld [vmem:[#allocation4 + $0x80] sm:$0xff]
      %v2518 = vld [vmem:[#allocation4 + $0x88] sm:$0xff]
      %v2519 = vld [vmem:[#allocation4 + $0x90] sm:$0xff]
      %v2520 = vld [vmem:[#allocation4 + $0x98] sm:$0xff]
      %v2521 = vld [vmem:[#allocation4 + $0xa0] sm:$0xff]
      %v2522 = vld [vmem:[#allocation4 + $0xa8] sm:$0xff]
      %v2523 = vld [vmem:[#allocation4 + $0xb0] sm:$0xff]
      %v2524 = vld [vmem:[#allocation4 + $0xb8] sm:$0xff]
      %v2525 = vld [vmem:[%s3] sm:$0xf]
      %v2526 = vld [vmem:[%s3 + $0x4] sm:$0xf]
      %v2527 = vld [vmem:[%s3 + $0x8] sm:$0xf]
      %v2528 = vld [vmem:[%s3 + $0xc] sm:$0xf]
      %v2529 = vld [vmem:[%s3 + $0x10] sm:$0xf]
      %v2530 = vld [vmem:[%s3 + $0x14] sm:$0xf]
      %v2531 = vld [vmem:[%s3 + $0x18] sm:$0xf]
      %v2532 = vld [vmem:[%s3 + $0x1c] sm:$0xf]
      %v2533 = vld [vmem:[%s3 + $0x20] sm:$0xf]
      %v2534 = vld [vmem:[%s3 + $0x24] sm:$0xf]
      %v2535 = vld [vmem:[%s3 + $0x28] sm:$0xf]
      %v2536 = vld [vmem:[%s3 + $0x2c] sm:$0xf]
      %v2537 = vld [vmem:[%s3 + $0x30] sm:$0xf]
      %v2538 = vld [vmem:[%s3 + $0x34] sm:$0xf]
      %v2539 = vld [vmem:[%s3 + $0x38] sm:$0xf]
      %v2540 = vld [vmem:[%s3 + $0x3c] sm:$0xf]
      %v2541 = vld [vmem:[%s3 + $0x40] sm:$0xf]
      %v2542 = vld [vmem:[%s3 + $0x44] sm:$0xf]
      %v2543 = vld [vmem:[%s3 + $0x48] sm:$0xf]
      %v2544 = vld [vmem:[%s3 + $0x4c] sm:$0xf]
      %v2545 = vld [vmem:[%s3 + $0x50] sm:$0xf]
      %v2546 = vld [vmem:[%s3 + $0x54] sm:$0xf]
      %v2547 = vld [vmem:[%s3 + $0x58] sm:$0xf]
      %v2548 = vld [vmem:[%s3 + $0x5c] sm:$0xf]
      %v2549 = vld [vmem:[%s3 + $0x60] sm:$0xf]
      %v2550 = vld [vmem:[%s3 + $0x64] sm:$0xf]
      %v2551 = vld [vmem:[%s3 + $0x68] sm:$0xf]
      %v2552 = vld [vmem:[%s3 + $0x6c] sm:$0xf]
      %v2553 = vld [vmem:[%s3 + $0x70] sm:$0xf]
      %v2554 = vld [vmem:[%s3 + $0x74] sm:$0xf]
      %v2555 = vld [vmem:[%s3 + $0x78] sm:$0xf]
      %v2556 = vld [vmem:[%s3 + $0x7c] sm:$0xf]
      %v2557 = vld [vmem:[%s3 + $0x80] sm:$0xf]
      %v2558 = vld [vmem:[%s3 + $0x84] sm:$0xf]
      %v2559 = vld [vmem:[%s3 + $0x88] sm:$0xf]
      %v2560 = vld [vmem:[%s3 + $0x8c] sm:$0xf]
      %v2561 = vld [vmem:[%s4] sm:$0x1]
      %v2563 = vlaneseq
      %v2564 = vshrl.u32 %v2563, 7
      %v2565 = vsub.s32 0, %v2564
      %v2566 = vrot.slane %v2561, %v2565
      %v2604 = vunpack.c.l.b16 %v2525
      %v2605 = vunpack.c.l.b16 %v2526
      %v2606 = vunpack.c.l.b16 %v2527
      %v2607 = vunpack.c.l.b16 %v2528
      %v2608 = vunpack.c.l.b16 %v2529
      %v2609 = vunpack.c.l.b16 %v2530
      %v2610 = vunpack.c.l.b16 %v2531
      %v2611 = vunpack.c.l.b16 %v2532
      %v2612 = vunpack.c.l.b16 %v2533
      %v2613 = vunpack.c.l.b16 %v2534
      %v2614 = vunpack.c.l.b16 %v2535
      %v2615 = vunpack.c.l.b16 %v2536
      %v2616 = vunpack.c.l.b16 %v2537
      %v2617 = vunpack.c.l.b16 %v2538
      %v2618 = vunpack.c.l.b16 %v2539
      %v2619 = vunpack.c.l.b16 %v2540
      %v2620 = vunpack.c.l.b16 %v2541
      %v2621 = vunpack.c.l.b16 %v2542
      %v2622 = vunpack.c.l.b16 %v2543
      %v2623 = vunpack.c.l.b16 %v2544
      %v2624 = vunpack.c.l.b16 %v2545
      %v2625 = vunpack.c.l.b16 %v2546
      %v2626 = vunpack.c.l.b16 %v2547
      %v2627 = vunpack.c.l.b16 %v2548
      %v2628 = vunpack.c.l.b16 %v2549
      %v2629 = vunpack.c.l.b16 %v2550
      %v2630 = vunpack.c.l.b16 %v2551
      %v2631 = vunpack.c.l.b16 %v2552
      %v2632 = vunpack.c.l.b16 %v2553
      %v2633 = vunpack.c.l.b16 %v2554
      %v2634 = vunpack.c.l.b16 %v2555
      %v2635 = vunpack.c.l.b16 %v2556
      %v2636 = vunpack.c.l.b16 %v2557
      %v2637 = vunpack.c.l.b16 %v2558
      %v2638 = vunpack.c.l.b16 %v2559
      %v2639 = vunpack.c.l.b16 %v2560
      %v2640 = vpack.c.b16 %v2605, %v2604
      %v2641 = vpack.c.b16 %v2607, %v2606
      %v2642 = vpack.c.b16 %v2609, %v2608
      %v2643 = vpack.c.b16 %v2611, %v2610
      %v2644 = vpack.c.b16 %v2613, %v2612
      %v2645 = vpack.c.b16 %v2615, %v2614
      %v2646 = vpack.c.b16 %v2617, %v2616
      %v2647 = vpack.c.b16 %v2619, %v2618
      %v2648 = vpack.c.b16 %v2621, %v2620
      %v2649 = vpack.c.b16 %v2623, %v2622
      %v2650 = vpack.c.b16 %v2625, %v2624
      %v2651 = vpack.c.b16 %v2627, %v2626
      %v2652 = vpack.c.b16 %v2629, %v2628
      %v2653 = vpack.c.b16 %v2631, %v2630
      %v2654 = vpack.c.b16 %v2633, %v2632
      %v2655 = vpack.c.b16 %v2635, %v2634
      %v2656 = vpack.c.b16 %v2637, %v2636
      %v2657 = vpack.c.b16 %v2639, %v2638
      %v2677 = vsel %vm1948, %v2503, 0
      %v2680 = vsel %vm1948, %v2506, 0
      %v2683 = vsel %vm1948, %v2509, 0
      %v2686 = vsel %vm1948, %v2512, 0
      %v2689 = vsel %vm1948, %v2515, 0
      %v2692 = vsel %vm1948, %v2518, 0
      %v2695 = vsel %vm1948, %v2521, 0
      %v2698 = vsel %vm1948, %v2524, 0
      %2700 = vmatprep.subr.bf16.mxu0 0
      %2701 = vmatpush1.bf16.msra.mxu0 %v2640
      %2702 = vmatprep.subr.bf16.mxu0 0
      %2703 = vmatpush1.bf16.msra.mxu0 %v2641
      %2704 = vmatprep.subr.bf16.mxu0 0
      %2705 = vmatpush1.bf16.msra.mxu0 %v2642
      %2706 = vmatprep.subr.bf16.mxu0 0
      %2707 = vmatpush1.bf16.msra.mxu0 %v2643
      %2708 = vmatprep.subr.bf16.mxu0 0
      %2709 = vmatpush1.bf16.msra.mxu0 %v2644
      %2710 = vmatprep.subr.bf16.mxu0 0
      %2711 = vmatpush1.bf16.msra.mxu0 %v2645
      %2712 = vmatprep.subr.bf16.mxu0 0
      %2713 = vmatpush1.bf16.msra.mxu0 %v2646
      %2714 = vmatprep.subr.bf16.mxu0 0
      %2715 = vmatpush1.bf16.msra.mxu0 %v2647
      %2716 = vmatprep.subr.bf16.mxu0 0
      %2717 = vmatpush1.bf16.msra.mxu0 %v2648
      %2718 = vmatprep.subr.bf16.mxu0 0
      %2719 = vmatpush1.bf16.msra.mxu0 %v2649
      %2720 = vmatprep.subr.bf16.mxu0 0
      %2721 = vmatpush1.bf16.msra.mxu0 %v2650
      %2722 = vmatprep.subr.bf16.mxu0 0
      %2723 = vmatpush1.bf16.msra.mxu0 %v2651
      %2724 = vmatprep.subr.bf16.mxu0 0
      %2725 = vmatpush1.bf16.msra.mxu0 %v2652
      %2726 = vmatprep.subr.bf16.mxu0 0
      %2727 = vmatpush1.bf16.msra.mxu0 %v2653
      %2728 = vmatprep.subr.bf16.mxu0 0
      %2729 = vmatpush1.bf16.msra.mxu0 %v2654
      %2730 = vmatprep.subr.bf16.mxu0 0
      %2731 = vmatpush1.bf16.msra.mxu0 %v2655
      %2732 = vmatprep.mubr.bf16.mxu0 %v2502
      %2733 = vmatmul.mubr.bf16.gmra.mrb[0].mxu0 %v2501
      %v2734 = vpop.f32.mrb[0].mxu0
      %v2735 = vadd.f32 %v2566, %v2734
      %v2736 = vpop.f32.mrb[0].mxu0
      %v2737 = vpop.f32.mrb[0].mxu0
      %v2738 = vadd.f32 %v2566, %v2737
      %v2739 = vpop.f32.mrb[0].mxu0
      %2740 = vmatprep.mubr.bf16.mxu0 %v2505
      %2741 = vmatmul.mubr.bf16.gmra.mrb[0].mxu0 %v2504
      %v2742 = vpop.f32.mrb[0].mxu0
      %v2743 = vadd.f32 %v2566, %v2742
      %v2744 = vpop.f32.mrb[0].mxu0
      %v2745 = vpop.f32.mrb[0].mxu0
      %v2746 = vadd.f32 %v2566, %v2745
      %v2747 = vpop.f32.mrb[0].mxu0
      %2748 = vmatprep.mubr.bf16.mxu0 %v2508
      %2749 = vmatmul.mubr.bf16.gmra.mrb[0].mxu0 %v2507
      %v2750 = vpop.f32.mrb[0].mxu0
      %v2751 = vadd.f32 %v2566, %v2750
      %v2752 = vpop.f32.mrb[0].mxu0
      %v2753 = vpop.f32.mrb[0].mxu0
      %v2754 = vadd.f32 %v2566, %v2753
      %v2755 = vpop.f32.mrb[0].mxu0
      %2756 = vmatprep.mubr.bf16.mxu0 %v2511
      %2757 = vmatmul.mubr.bf16.gmra.mrb[0].mxu0 %v2510
      %v2758 = vpop.f32.mrb[0].mxu0
      %v2759 = vadd.f32 %v2566, %v2758
      %v2760 = vpop.f32.mrb[0].mxu0
      %v2761 = vpop.f32.mrb[0].mxu0
      %v2762 = vadd.f32 %v2566, %v2761
      %v2763 = vpop.f32.mrb[0].mxu0
      %2764 = vmatprep.mubr.bf16.mxu0 %v2514
      %2765 = vmatmul.mubr.bf16.gmra.mrb[0].mxu0 %v2513
      %v2766 = vpop.f32.mrb[0].mxu0
      %v2767 = vadd.f32 %v2566, %v2766
      %v2768 = vpop.f32.mrb[0].mxu0
      %v2769 = vpop.f32.mrb[0].mxu0
      %v2770 = vadd.f32 %v2566, %v2769
      %v2771 = vpop.f32.mrb[0].mxu0
      %2772 = vmatprep.mubr.bf16.mxu0 %v2517
      %2773 = vmatmul.mubr.bf16.gmra.mrb[0].mxu0 %v2516
      %v2774 = vpop.f32.mrb[0].mxu0
      %v2775 = vadd.f32 %v2566, %v2774
      %v2776 = vpop.f32.mrb[0].mxu0
      %v2777 = vpop.f32.mrb[0].mxu0
      %v2778 = vadd.f32 %v2566, %v2777
      %v2779 = vpop.f32.mrb[0].mxu0
      %2780 = vmatprep.mubr.bf16.mxu0 %v2520
      %2781 = vmatmul.mubr.bf16.gmra.mrb[0].mxu0 %v2519
      %v2782 = vpop.f32.mrb[0].mxu0
      %v2783 = vadd.f32 %v2566, %v2782
      %v2784 = vpop.f32.mrb[0].mxu0
      %v2785 = vpop.f32.mrb[0].mxu0
      %v2786 = vadd.f32 %v2566, %v2785
      %v2787 = vpop.f32.mrb[0].mxu0
      %2788 = vmatprep.mubr.bf16.mxu0 %v2523
      %2789 = vmatmul.mubr.bf16.gmra.mrb[0].mxu0 %v2522
      %v2790 = vpop.f32.mrb[0].mxu0
      %v2791 = vadd.f32 %v2566, %v2790
      %v2792 = vpop.f32.mrb[0].mxu0
      %v2793 = vpop.f32.mrb[0].mxu0
      %v2794 = vadd.f32 %v2566, %v2793
      %v2795 = vpop.f32.mrb[0].mxu0
      %2796 = vdwg.mxu0
      %2797 = vmatprep.subr.bf16.mxu0 0
      %2798 = vmatpush1.bf16.msra.mxu0 %v2656
      %2799 = vmatprep.subr.bf16.mxu0 0
      %2800 = vmatpush1.bf16.msra.mxu0 %v2657
      %2801 = vmatprep.subr.bf16.mxu0 0
      %2802 = vmatpush1.bf16.msra.mxu0 0
      %2803 = vmatprep.subr.bf16.mxu0 0
      %2804 = vmatpush1.bf16.msra.mxu0 0
      %2805 = vmatprep.subr.bf16.mxu0 0
      %2806 = vmatpush1.bf16.msra.mxu0 0
      %2807 = vmatprep.subr.bf16.mxu0 0
      %2808 = vmatpush1.bf16.msra.mxu0 0
      %2809 = vmatprep.subr.bf16.mxu0 0
      %2810 = vmatpush1.bf16.msra.mxu0 0
      %2811 = vmatprep.subr.bf16.mxu0 0
      %2812 = vmatpush1.bf16.msra.mxu0 0
      %2813 = vmatprep.subr.bf16.mxu0 0
      %2814 = vmatpush1.bf16.msra.mxu0 0
      %2815 = vmatprep.subr.bf16.mxu0 0
      %2816 = vmatpush1.bf16.msra.mxu0 0
      %2817 = vmatprep.subr.bf16.mxu0 0
      %2818 = vmatpush1.bf16.msra.mxu0 0
      %2819 = vmatprep.subr.bf16.mxu0 0
      %2820 = vmatpush1.bf16.msra.mxu0 0
      %2821 = vmatprep.subr.bf16.mxu0 0
      %2822 = vmatpush1.bf16.msra.mxu0 0
      %2823 = vmatprep.subr.bf16.mxu0 0
      %2824 = vmatpush1.bf16.msra.mxu0 0
      %2825 = vmatprep.subr.bf16.mxu0 0
      %2826 = vmatpush1.bf16.msra.mxu0 0
      %2827 = vmatprep.subr.bf16.mxu0 0
      %2828 = vmatpush1.bf16.msra.mxu0 0
      %2829 = vmatprep.mubr.bf16.mxu0 0
      %2830 = vmatmul.mubr.bf16.gmra.mrb[0].mxu0 %v2677
      %v2831 = vpop.f32.mrb[0].mxu0
      %v2832 = vadd.f32 %v2735, %v2831
      %v2833 = vpop.f32.mrb[0].mxu0
      %v2834 = vpop.f32.mrb[0].mxu0
      %v2835 = vadd.f32 %v2738, %v2834
      %v2836 = vpop.f32.mrb[0].mxu0
      %2837 = vmatprep.mubr.bf16.mxu0 0
      %2838 = vmatmul.mubr.bf16.gmra.mrb[0].mxu0 %v2680
      %v2839 = vpop.f32.mrb[0].mxu0
      %v2840 = vadd.f32 %v2743, %v2839
      %v2841 = vpop.f32.mrb[0].mxu0
      %v2842 = vpop.f32.mrb[0].mxu0
      %v2843 = vadd.f32 %v2746, %v2842
      %v2844 = vpop.f32.mrb[0].mxu0
      %2845 = vmatprep.mubr.bf16.mxu0 0
      %2846 = vmatmul.mubr.bf16.gmra.mrb[0].mxu0 %v2683
      %v2847 = vpop.f32.mrb[0].mxu0
      %v2848 = vadd.f32 %v2751, %v2847
      %v2849 = vpop.f32.mrb[0].mxu0
      %v2850 = vpop.f32.mrb[0].mxu0
      %v2851 = vadd.f32 %v2754, %v2850
      %v2852 = vpop.f32.mrb[0].mxu0
      %2853 = vmatprep.mubr.bf16.mxu0 0
      %2854 = vmatmul.mubr.bf16.gmra.mrb[0].mxu0 %v2686
      %v2855 = vpop.f32.mrb[0].mxu0
      %v2856 = vadd.f32 %v2759, %v2855
      %v2857 = vpop.f32.mrb[0].mxu0
      %v2858 = vpop.f32.mrb[0].mxu0
      %v2859 = vadd.f32 %v2762, %v2858
      %v2860 = vpop.f32.mrb[0].mxu0
      %2861 = vmatprep.mubr.bf16.mxu0 0
      %2862 = vmatmul.mubr.bf16.gmra.mrb[0].mxu0 %v2689
      %v2863 = vpop.f32.mrb[0].mxu0
      %v2864 = vadd.f32 %v2767, %v2863
      %v2865 = vpop.f32.mrb[0].mxu0
      %v2866 = vpop.f32.mrb[0].mxu0
      %v2867 = vadd.f32 %v2770, %v2866
      %v2868 = vpop.f32.mrb[0].mxu0
      %2869 = vmatprep.mubr.bf16.mxu0 0
      %2870 = vmatmul.mubr.bf16.gmra.mrb[0].mxu0 %v2692
      %v2871 = vpop.f32.mrb[0].mxu0
      %v2872 = vadd.f32 %v2775, %v2871
      %v2873 = vpop.f32.mrb[0].mxu0
      %v2874 = vpop.f32.mrb[0].mxu0
      %v2875 = vadd.f32 %v2778, %v2874
      %v2876 = vpop.f32.mrb[0].mxu0
      %2877 = vmatprep.mubr.bf16.mxu0 0
      %2878 = vmatmul.mubr.bf16.gmra.mrb[0].mxu0 %v2695
      %v2879 = vpop.f32.mrb[0].mxu0
      %v2880 = vadd.f32 %v2783, %v2879
      %v2881 = vpop.f32.mrb[0].mxu0
      %v2882 = vpop.f32.mrb[0].mxu0
      %v2883 = vadd.f32 %v2786, %v2882
      %v2884 = vpop.f32.mrb[0].mxu0
      %2885 = vmatprep.mubr.bf16.mxu0 0
      %2886 = vmatmul.mubr.bf16.gmra.mrb[0].mxu0 %v2698
      %v2887 = vpop.f32.mrb[0].mxu0
      %v2888 = vadd.f32 %v2791, %v2887
      %v2889 = vpop.f32.mrb[0].mxu0
      %v2890 = vpop.f32.mrb[0].mxu0
      %v2891 = vadd.f32 %v2794, %v2890
      %v2892 = vpop.f32.mrb[0].mxu0
      %2893 = vdwg.mxu0
      %v2894 = vld [vmem:[%s5] sm:$0xf]
      %v2895 = vld [vmem:[%s5 + $0x4] sm:$0xf]
      %v2896 = vld [vmem:[%s6] sm:$0x1]
      %v2898 = vlaneseq
      %v2899 = vshrl.u32 %v2898, 7
      %v2900 = vsub.s32 0, %v2899
      %v2901 = vrot.slane %v2896, %v2900
      %2903 = vrot.lane.b32.xlu0 %v336, 80
      %v2904 = vpop.permute.xlu0 %2903
      %2905 = vrot.lane.b32.xlu0 %v337, 80
      %v2906 = vpop.permute.xlu0 %2905
      %2907 = vrot.lane.b32.xlu0 %v338, 80
      %v2908 = vpop.permute.xlu0 %2907
      %2909 = vrot.lane.b32.xlu0 %v339, 80
      %v2910 = vpop.permute.xlu0 %2909
      %2911 = vrot.lane.b32.xlu0 %v340, 80
      %v2912 = vpop.permute.xlu0 %2911
      %2913 = vrot.lane.b32.xlu0 %v341, 80
      %v2914 = vpop.permute.xlu0 %2913
      %2915 = vrot.lane.b32.xlu0 %v342, 80
      %v2916 = vpop.permute.xlu0 %2915
      %2917 = vrot.lane.b32.xlu0 %v343, 80
      %v2918 = vpop.permute.xlu0 %2917
      %v2921 = vunpack.c.l.b16 %v2894
      %v2922 = vunpack.c.l.b16 %v2895
      %v2923 = vpack.c.b16 %v2922, %v2921
      %v2926 = vsel %vm352, %v2904, 0
      %v2929 = vsel %vm352, %v2906, 0
      %v2932 = vsel %vm352, %v2908, 0
      %v2935 = vsel %vm352, %v2910, 0
      %v2938 = vsel %vm352, %v2912, 0
      %v2941 = vsel %vm352, %v2914, 0
      %v2944 = vsel %vm352, %v2916, 0
      %v2947 = vsel %vm352, %v2918, 0
      %2949 = vmatprep.subr.bf16.mxu0 0
      %2950 = vmatpush1.bf16.msra.mxu0 %v2923
      %2951 = vmatprep.subr.bf16.mxu0 0
      %2952 = vmatpush1.bf16.msra.mxu0 0
      %2953 = vmatprep.subr.bf16.mxu0 0
      %2954 = vmatpush1.bf16.msra.mxu0 0
      %2955 = vmatprep.subr.bf16.mxu0 0
      %2956 = vmatpush1.bf16.msra.mxu0 0
      %2957 = vmatprep.subr.bf16.mxu0 0
      %2958 = vmatpush1.bf16.msra.mxu0 0
      %2959 = vmatprep.subr.bf16.mxu0 0
      %2960 = vmatpush1.bf16.msra.mxu0 0
      %2961 = vmatprep.subr.bf16.mxu0 0
      %2962 = vmatpush1.bf16.msra.mxu0 0
      %2963 = vmatprep.subr.bf16.mxu0 0
      %2964 = vmatpush1.bf16.msra.mxu0 0
      %2965 = vmatprep.subr.bf16.mxu0 0
      %2966 = vmatpush1.bf16.msra.mxu0 0
      %2967 = vmatprep.subr.bf16.mxu0 0
      %2968 = vmatpush1.bf16.msra.mxu0 0
      %2969 = vmatprep.subr.bf16.mxu0 0
      %2970 = vmatpush1.bf16.msra.mxu0 0
      %2971 = vmatprep.subr.bf16.mxu0 0
      %2972 = vmatpush1.bf16.msra.mxu0 0
      %2973 = vmatprep.subr.bf16.mxu0 0
      %2974 = vmatpush1.bf16.msra.mxu0 0
      %2975 = vmatprep.subr.bf16.mxu0 0
      %2976 = vmatpush1.bf16.msra.mxu0 0
      %2977 = vmatprep.subr.bf16.mxu0 0
      %2978 = vmatpush1.bf16.msra.mxu0 0
      %2979 = vmatprep.subr.bf16.mxu0 0
      %2980 = vmatpush1.bf16.msra.mxu0 0
      %2981 = vmatprep.mubr.bf16.mxu0 0
      %2982 = vmatmul.mubr.bf16.gmra.mrb[0].mxu0 %v2926
      %v2983 = vpop.f32.mrb[0].mxu0
      %v2984 = vadd.f32 %v2901, %v2983
      %v2985 = vpop.f32.mrb[0].mxu0
      %v2986 = vpop.f32.mrb[0].mxu0
      %v2987 = vadd.f32 %v2901, %v2986
      %v2988 = vpop.f32.mrb[0].mxu0
      %2989 = vmatprep.mubr.bf16.mxu0 0
      %2990 = vmatmul.mubr.bf16.gmra.mrb[0].mxu0 %v2929
      %v2991 = vpop.f32.mrb[0].mxu0
      %v2992 = vadd.f32 %v2901, %v2991
      %v2993 = vpop.f32.mrb[0].mxu0
      %v2994 = vpop.f32.mrb[0].mxu0
      %v2995 = vadd.f32 %v2901, %v2994
      %v2996 = vpop.f32.mrb[0].mxu0
      %2997 = vmatprep.mubr.bf16.mxu0 0
      %2998 = vmatmul.mubr.bf16.gmra.mrb[0].mxu0 %v2932
      %v2999 = vpop.f32.mrb[0].mxu0
      %v3000 = vadd.f32 %v2901, %v2999
      %v3001 = vpop.f32.mrb[0].mxu0
      %v3002 = vpop.f32.mrb[0].mxu0
      %v3003 = vadd.f32 %v2901, %v3002
      %v3004 = vpop.f32.mrb[0].mxu0
      %3005 = vmatprep.mubr.bf16.mxu0 0
      %3006 = vmatmul.mubr.bf16.gmra.mrb[0].mxu0 %v2935
      %v3007 = vpop.f32.mrb[0].mxu0
      %v3008 = vadd.f32 %v2901, %v3007
      %v3009 = vpop.f32.mrb[0].mxu0
      %v3010 = vpop.f32.mrb[0].mxu0
      %v3011 = vadd.f32 %v2901, %v3010
      %v3012 = vpop.f32.mrb[0].mxu0
      %3013 = vmatprep.mubr.bf16.mxu0 0
      %3014 = vmatmul.mubr.bf16.gmra.mrb[0].mxu0 %v2938
      %v3015 = vpop.f32.mrb[0].mxu0
      %v3016 = vadd.f32 %v2901, %v3015
      %v3017 = vpop.f32.mrb[0].mxu0
      %v3018 = vpop.f32.mrb[0].mxu0
      %v3019 = vadd.f32 %v2901, %v3018
      %v3020 = vpop.f32.mrb[0].mxu0
      %3021 = vmatprep.mubr.bf16.mxu0 0
      %3022 = vmatmul.mubr.bf16.gmra.mrb[0].mxu0 %v2941
      %v3023 = vpop.f32.mrb[0].mxu0
      %v3024 = vadd.f32 %v2901, %v3023
      %v3025 = vpop.f32.mrb[0].mxu0
      %v3026 = vpop.f32.mrb[0].mxu0
      %v3027 = vadd.f32 %v2901, %v3026
      %v3028 = vpop.f32.mrb[0].mxu0
      %3029 = vmatprep.mubr.bf16.mxu0 0
      %3030 = vmatmul.mubr.bf16.gmra.mrb[0].mxu0 %v2944
      %v3031 = vpop.f32.mrb[0].mxu0
      %v3032 = vadd.f32 %v2901, %v3031
      %v3033 = vpop.f32.mrb[0].mxu0
      %v3034 = vpop.f32.mrb[0].mxu0
      %v3035 = vadd.f32 %v2901, %v3034
      %v3036 = vpop.f32.mrb[0].mxu0
      %3037 = vmatprep.mubr.bf16.mxu0 0
      %3038 = vmatmul.mubr.bf16.gmra.mrb[0].mxu0 %v2947
      %v3039 = vpop.f32.mrb[0].mxu0
      %v3040 = vadd.f32 %v2901, %v3039
      %v3041 = vpop.f32.mrb[0].mxu0
      %v3042 = vpop.f32.mrb[0].mxu0
      %v3043 = vadd.f32 %v2901, %v3042
      %v3044 = vpop.f32.mrb[0].mxu0
      %3045 = vdwg.mxu0
      %v3046 = vadd.f32 %v2832, %v2984
      %v3047 = vadd.f32 %v2835, %v2987
      %v3048 = vadd.f32 %v2840, %v2992
      %v3049 = vadd.f32 %v2843, %v2995
      %v3050 = vadd.f32 %v2848, %v3000
      %v3051 = vadd.f32 %v2851, %v3003
      %v3052 = vadd.f32 %v2856, %v3008
      %v3053 = vadd.f32 %v2859, %v3011
      %v3054 = vadd.f32 %v2864, %v3016
      %v3055 = vadd.f32 %v2867, %v3019
      %v3056 = vadd.f32 %v2872, %v3024
      %v3057 = vadd.f32 %v2875, %v3027
      %v3058 = vadd.f32 %v2880, %v3032
      %v3059 = vadd.f32 %v2883, %v3035
      %v3060 = vadd.f32 %v2888, %v3040
      %v3061 = vadd.f32 %v2891, %v3043
      %v3062 = vmax.f32 %v3046, 0.0
      %v3063 = vmax.f32 %v3047, 0.0
      %v3064 = vmax.f32 %v3048, 0.0
      %v3065 = vmax.f32 %v3049, 0.0
      %v3066 = vmax.f32 %v3050, 0.0
      %v3067 = vmax.f32 %v3051, 0.0
      %v3068 = vmax.f32 %v3052, 0.0
      %v3069 = vmax.f32 %v3053, 0.0
      %v3070 = vmax.f32 %v3054, 0.0
      %v3071 = vmax.f32 %v3055, 0.0
      %v3072 = vmax.f32 %v3056, 0.0
      %v3073 = vmax.f32 %v3057, 0.0
      %v3074 = vmax.f32 %v3058, 0.0
      %v3075 = vmax.f32 %v3059, 0.0
      %v3076 = vmax.f32 %v3060, 0.0
      %v3077 = vmax.f32 %v3061, 0.0
      %3078 = vst.msk [vmem:[%s285] sm:$0xff] %vm1948, %v3062
      %3079 = vst.msk [vmem:[%s285 + $0x8] sm:$0xff] %vm1948, %v3063
      %3080 = vst.msk [vmem:[%s285 + $0x10] sm:$0xff] %vm1948, %v3064
      %3081 = vst.msk [vmem:[%s285 + $0x18] sm:$0xff] %vm1948, %v3065
      %3082 = vst.msk [vmem:[%s285 + $0x20] sm:$0xff] %vm1948, %v3066
      %3083 = vst.msk [vmem:[%s285 + $0x28] sm:$0xff] %vm1948, %v3067
      %3084 = vst.msk [vmem:[%s285 + $0x30] sm:$0xff] %vm1948, %v3068
      %3085 = vst.msk [vmem:[%s285 + $0x38] sm:$0xff] %vm1948, %v3069
      %3086 = vst.msk [vmem:[%s285 + $0x40] sm:$0xff] %vm1948, %v3070
      %3087 = vst.msk [vmem:[%s285 + $0x48] sm:$0xff] %vm1948, %v3071
      %3088 = vst.msk [vmem:[%s285 + $0x50] sm:$0xff] %vm1948, %v3072
      %3089 = vst.msk [vmem:[%s285 + $0x58] sm:$0xff] %vm1948, %v3073
      %3090 = vst.msk [vmem:[%s285 + $0x60] sm:$0xff] %vm1948, %v3074
      %3091 = vst.msk [vmem:[%s285 + $0x68] sm:$0xff] %vm1948, %v3075
      %3092 = vst.msk [vmem:[%s285 + $0x70] sm:$0xff] %vm1948, %v3076
      %3093 = vst.msk [vmem:[%s285 + $0x78] sm:$0xff] %vm1948, %v3077
      %s3094 = smul.u32 2, %s18
      %p3095 = scmp.lt.s32.totalorder %s3094, 3
      %s3096 = scalar_select %p3095, %s3094, 3
      %s3097 = smul.addr %s3096, 8
      %s3098 = smul.addr %s3097, 8
      %s3099 = scalar_lea.vmem %s7, %s3098
      // Predicated region
      $region49: #{tpu_custom_call.1} parent=47 // pred_check
        %p3100 = pneg %p188
      $region50: #{tpu_custom_call.1} parent=47 // pred_check_branch
        %3102 = sbr.rel (%p3100) target = $region52
      $region51: #{tpu_custom_call.1} parent=47 // pred_region
        %s3103 = smul.u32 2, %s18
      $region52: #{tpu_custom_call.1} parent=47 // pred_fallthru
        _
    $region48: #{tpu_custom_call.1} parent=5 // pred_fallthru
      _
    %p3104 = scmp.le.s32.totalorder 2, %s13
    // Predicated region
    $region53: #{tpu_custom_call.1} parent=5 // pred_check
      %p3105 = pneg %p3104
    $region54: #{tpu_custom_call.1} parent=5 // pred_check_branch
      %3107 = sbr.rel (%p3105) target = $region56
    $region55: #{tpu_custom_call.1} parent=5 // pred_region
      %s3108 = ssub.s32 %s13, 2
      // Predicated region
      $region57: #{tpu_custom_call.1} parent=55 // pred_check
        %p3109 = pneg %p194
      $region58: #{tpu_custom_call.1} parent=55 // pred_check_branch
        %3111 = sbr.rel (%p3109) target = $region60
      $region59: #{tpu_custom_call.1} parent=55 // pred_region
        %s3112 = smul.u32 2, %s19
        %p3113 = scmp.lt.s32.totalorder %s3112, 3
        %s3114 = scalar_select %p3113, %s3112, 3
        %s3115 = smul.addr %s3114, 8
        %s3116 = smul.addr %s3115, 8
        %s3117 = scalar_lea.vmem %s7, %s3116
      $region60: #{tpu_custom_call.1} parent=55 // pred_fallthru
        _
    $region56: #{tpu_custom_call.1} parent=5 // pred_fallthru
      _
  $region6: #{tpu_custom_call.1} parent=0 // loop_footer
    %s17 = sadd.s32 1, %s13
  $region7: #{tpu_custom_call.1} parent=0 // loop_footer_branch
    %12 = sbr.rel target = $region3
  $region8: #{tpu_custom_call.1} parent=0 // loop_exit
    _

</llo_original>
